<compile_context>
chip_gen: v5e
topology: v5e:2x2
jax: 0.10.0
libtpu: 0.0.40
codegen_flags: <defaults>
</compile_context>

<pallas_src>
import numpy as np
import jax
import jax.numpy as jnp
from jax.experimental import pallas as pl
from jax.experimental.pallas import tpu as pltpu

LANES = 128      # lane-dense width of every matmul output
MAX_BT = 16      # images per grid step


# ----------------------------------------------------------------------------
# Fused kernel: conv1+pool1 -> conv2+pool2 -> fc1 -> fc2 -> fc3
# ----------------------------------------------------------------------------
def _lenet_fused_kernel(x_ref, w1_ref, b1_ref, w2_ref, b2_ref,
                        wf1_ref, bf1_ref, wf2_ref, bf2_ref, wf3_ref, bf3_ref,
                        out_ref, p1_ref, pp2_ref):
    n1 = p1_ref.shape[1]      # conv1 stage rows  (bt*8 + 16)
    n2 = pp2_ref.shape[0]     # conv2 stage rows  (bt*8 + 8)
    n3 = out_ref.shape[0]     # fc stage rows     (bt*8)

    # ------------- conv1 + bias + ReLU + 2x2 max-pool -------------
    # x_ref[r, 0, b*8 + i, w*3 + c] = x[b, 4*i + r, w, c]
    # P1[a] row (b*8 + q), lane (p1w*6 + oc) = pooled1[b, 2q + a, p1w, oc]
    for a in range(2):                       # parity of the pooled output row
        acc = [[None, None], [None, None]]   # acc[u][v], u/v = pre-pool parity
        for u in range(2):
            for dh in range(5):
                t = 2 * a + u + dh
                r, s = t & 3, t >> 2
                xs = x_ref[r, 0, s:s + n1, :]                       # [n1, 96]
                for v in range(2):
                    d = jnp.dot(xs, w1_ref[v, dh],
                                preferred_element_type=jnp.float32)
                    acc[u][v] = d if acc[u][v] is None else acc[u][v] + d
        m = jnp.maximum(jnp.maximum(acc[0][0], acc[0][1]),
                        jnp.maximum(acc[1][0], acc[1][1]))           # tree max
        p1_ref[a, :, :] = jnp.maximum(m + b1_ref[...], 0.0)

    # ------------- conv2 + bias + ReLU + 2x2 max-pool -------------
    # PP2 row (b*8 + j), lane (p2w*16 + c2) = pooled2[b, j, p2w, c2]
    acc2 = [[None, None], [None, None]]
    for u in range(2):
        for ki in range(5):
            t = u + ki
            a2, s2 = t & 1, t >> 1
            ps = p1_ref[a2, s2:s2 + n2, :]                          # [n2, 128]
            for v in range(2):
                d = jnp.dot(ps, w2_ref[v, ki],
                            preferred_element_type=jnp.float32)
                acc2[u][v] = d if acc2[u][v] is None else acc2[u][v] + d
    m2 = jnp.maximum(jnp.maximum(acc2[0][0], acc2[0][1]),
                     jnp.maximum(acc2[1][0], acc2[1][1]))
    pp2_ref[...] = jnp.maximum(m2 + b2_ref[...], 0.0)

    # ------------- fc1 -> ReLU -> fc2 -> ReLU -> fc3 -------------
    # Valid result lives at row (b*8) of the fc stage (other rows = discarded).
    h = None
    for j in range(5):        # fc1 split over the 5 pooled2 spatial rows
        d = jnp.dot(pp2_ref[j:j + n3, :], wf1_ref[j],
                    preferred_element_type=jnp.float32)
        h = d if h is None else h + d
    h = jnp.maximum(h + bf1_ref[...], 0.0)
    h = jnp.maximum(jnp.dot(h, wf2_ref[...],
                            preferred_element_type=jnp.float32) + bf2_ref[...],
                    0.0)
    out_ref[...] = jnp.dot(h, wf3_ref[...],
                           preferred_element_type=jnp.float32) + bf3_ref[...]


# ----------------------------------------------------------------------------
# Parameters (PyTorch shapes, deterministic synthetic init)
# ----------------------------------------------------------------------------
def init_params(key):
    ks = jax.random.split(key, 10)

    def u(k, shape, fan_in):
        bound = 1.0 / jnp.sqrt(fan_in)
        return jax.random.uniform(k, shape, jnp.float32, -bound, bound)

    return {
        "conv1_w": u(ks[0], (6, 3, 5, 5), 3 * 25),
        "conv1_b": u(ks[1], (6,), 3 * 25),
        "conv2_w": u(ks[2], (16, 6, 5, 5), 6 * 25),
        "conv2_b": u(ks[3], (16,), 6 * 25),
        "fc1_w": u(ks[4], (120, 400), 400),   # PyTorch Linear: [out, in]
        "fc1_b": u(ks[5], (120,), 400),
        "fc2_w": u(ks[6], (84, 120), 120),
        "fc2_b": u(ks[7], (84,), 120),
        "fc3_w": u(ks[8], (10, 84), 84),
        "fc3_b": u(ks[9], (10,), 84),
    }


# ----------------------------------------------------------------------------
# One-time weight prep: banded conv weights, lane-tiled biases, flatten folded
# into fc1.  All zero-padding invariants hold (zero rows/cols contribute 0).
# ----------------------------------------------------------------------------
def prepare_params(params):
    w1 = np.asarray(params["conv1_w"], np.float32)   # [6, 3, 5, 5]
    b1 = np.asarray(params["conv1_b"], np.float32)
    w2 = np.asarray(params["conv2_w"], np.float32)   # [16, 6, 5, 5]
    b2 = np.asarray(params["conv2_b"], np.float32)
    f1 = np.asarray(params["fc1_w"], np.float32)     # [120, 400]
    g1 = np.asarray(params["fc1_b"], np.float32)
    f2 = np.asarray(params["fc2_w"], np.float32)     # [84, 120]
    g2 = np.asarray(params["fc2_b"], np.float32)
    f3 = np.asarray(params["fc3_w"], np.float32)     # [10, 84]
    g3 = np.asarray(params["fc3_b"], np.float32)

    # conv1 band:  [v, dh, w*3 + c, p1w*6 + oc] = W1[oc, c, dh, w - (2*p1w+v)]
    w1b = np.zeros((2, 5, 96, LANES), np.float32)
    for v in range(2):
        for dh in range(5):
            for p1w in range(14):
                for dw in range(5):
                    w_in = 2 * p1w + v + dw
                    w1b[v, dh, w_in * 3:w_in * 3 + 3,
                        p1w * 6:p1w * 6 + 6] = w1[:, :, dh, dw].T   # [c, oc]
    b1t = np.zeros((1, LANES), np.float32)
    b1t[0, :84] = np.tile(b1, 14)

    # conv2 band:  [v2, ki, p1w*6 + c1, p2w*16 + c2] = W2[c2, c1, ki, p1w-(2*p2w+v2)]
    w2b = np.zeros((2, 5, LANES, LANES), np.float32)
    for v2 in range(2):
        for ki in range(5):
            for p2w in range(5):
                for kj in range(5):
                    p1w = 2 * p2w + v2 + kj
                    w2b[v2, ki, p1w * 6:p1w * 6 + 6,
                        p2w * 16:p2w * 16 + 16] = w2[:, :, ki, kj].T  # [c1, c2]
    b2t = np.zeros((1, LANES), np.float32)
    for p2w in range(5):
        b2t[0, p2w * 16:p2w * 16 + 16] = b2

    # fc1 split over pooled2 spatial rows j, PyTorch flatten order folded in:
    # wf1[j, p2w*16 + c2, o] = fc1_w[o, c2*25 + j*5 + p2w]
    wf1 = np.zeros((5, LANES, LANES), np.float32)
    for j in range(5):
        for p2w in range(5):
            for c2 in range(16):
                wf1[j, p2w * 16 + c2, :120] = f1[:, c2 * 25 + j * 5 + p2w]
    bf1 = np.zeros((1, LANES), np.float32)
    bf1[0, :120] = g1
    wf2 = np.zeros((LANES, LANES), np.float32)
    wf2[:120, :84] = f2.T
    bf2 = np.zeros((1, LANES), np.float32)
    bf2[0, :84] = g2
    wf3 = np.zeros((LANES, LANES), np.float32)
    wf3[:84, :10] = f3.T
    bf3 = np.zeros((1, LANES), np.float32)
    bf3[0, :10] = g3

    packed = dict(w1=w1b, b1=b1t, w2=w2b, b2=b2t,
                  wf1=wf1, bf1=bf1, wf2=wf2, bf2=bf2, wf3=wf3, bf3=bf3)
    return {k: jnp.asarray(v) for k, v in packed.items()}


# ----------------------------------------------------------------------------
# Forward pass: 1 pallas_call + tiny XLA layout glue on the raw input / logits
# ----------------------------------------------------------------------------
def _choose_bt(batch):
    # keep the 'parallel' grid >= 2 steps whenever batch >= 2 (v7x: 2 TCs)
    return min(MAX_BT, max(1, (batch + 1) // 2))


@jax.jit
def net_forward(prep, x_nchw):
    B = x_nchw.shape[0]
    bt = _choose_bt(B)
    G = -(-B // bt)
    Bp = G * bt
    R = bt * 8
    NX, N1, N2, N3 = R + 24, R + 16, R + 8, R

    xh = jnp.transpose(x_nchw.astype(jnp.float32), (0, 2, 3, 1))  # [B,32,32,3]
    if Bp > B:
        xh = jnp.pad(xh, ((0, Bp - B), (0, 0), (0, 0), (0, 0)))
    # mod-4 row-parity planes: xr[r, g, b*8 + i, w*3 + c] = x[b, 4*i + r, w, c]
    xr = xh.reshape(Bp, 8, 4, 96).transpose(2, 0, 1, 3).reshape(4, G, R, 96)
    xr = jnp.pad(xr, ((0, 0), (0, 0), (0, NX - R), (0, 0)))       # [4,G,NX,96]

    def resident(shp):
        return pl.BlockSpec(shp, lambda g: (0,) * len(shp))

    out_full = pl.pallas_call(
        _lenet_fused_kernel,
        out_shape=jax.ShapeDtypeStruct((G * N3, LANES), jnp.float32),
        grid=(G,),
        in_specs=[
            pl.BlockSpec((4, 1, NX, 96), lambda g: (0, g, 0, 0)),
            resident(prep["w1"].shape), resident(prep["b1"].shape),
            resident(prep["w2"].shape), resident(prep["b2"].shape),
            resident(prep["wf1"].shape), resident(prep["bf1"].shape),
            resident(prep["wf2"].shape), resident(prep["bf2"].shape),
            resident(prep["wf3"].shape), resident(prep["bf3"].shape),
        ],
        out_specs=pl.BlockSpec((N3, LANES), lambda g: (g, 0)),
        scratch_shapes=[pltpu.VMEM((2, N1, LANES), jnp.float32),   # pooled1
                        pltpu.VMEM((N2, LANES), jnp.float32)],     # pooled2
        compiler_params=pltpu.CompilerParams(
            dimension_semantics=("parallel",)),
    )(xr, prep["w1"], prep["b1"], prep["w2"], prep["b2"],
      prep["wf1"], prep["bf1"], prep["wf2"], prep["bf2"],
      prep["wf3"], prep["bf3"])

    # logits of image b live at row (b*8) of its tile, lanes 0..9
    return out_full.reshape(G * bt, 8, LANES)[:B, 0, :10]


# ----------------------------------------------------------------------------
# Pure-JAX reference (mirrors the PyTorch module) for a correctness check
# ----------------------------------------------------------------------------
def reference_forward(params, x):
    def conv(h, w, b):
        out = jax.lax.conv_general_dilated(
            h, w, (1, 1), "VALID",
            dimension_numbers=("NCHW", "OIHW", "NCHW"))
        return out + b[None, :, None, None]

    def pool(h):
        return jax.lax.reduce_window(h, -jnp.inf, jax.lax.max,
                                     (1, 1, 2, 2), (1, 1, 2, 2), "VALID")

    h = pool(jax.nn.relu(conv(x, params["conv1_w"], params["conv1_b"])))
    h = pool(jax.nn.relu(conv(h, params["conv2_w"], params["conv2_b"])))
    h = h.reshape(h.shape[0], -1)                       # (C, H, W) flatten
    h = jax.nn.relu(h @ params["fc1_w"].T + params["fc1_b"])
    h = jax.nn.relu(h @ params["fc2_w"].T + params["fc2_b"])
    return h @ params["fc3_w"].T + params["fc3_b"]


if __name__ == "__main__":
    key = jax.random.PRNGKey(0)
    pkey, xkey = jax.random.split(key)
    params = init_params(pkey)
    prep = prepare_params(params)               # one-time weight layout prep

    # fc1 fixes the spatial size: input must be [B, 3, 32, 32]
    x = jax.random.normal(xkey, (2, 3, 32, 32), jnp.float32)

    out = jax.block_until_ready(net_forward(prep, x))
    assert out.shape == (2, 10), out.shape
    assert bool(jnp.all(jnp.isfinite(out)))

    ref = jax.block_until_ready(reference_forward(params, x))
    assert bool(jnp.allclose(out, ref, atol=2e-3, rtol=2e-3)), \
        ("max abs err", float(jnp.max(jnp.abs(out - ref))))

    print("KERNEL_OK")
</pallas_src>

<mosaic_0001>
module attributes {stable_mosaic.version = 11 : i64} {
  func.func @_lenet_fused_kernel(%arg0: i32, %arg1: memref<4x1x32x96xf32, #tpu.memory_space<vmem>>, %arg2: memref<2x5x96x128xf32, #tpu.memory_space<vmem>>, %arg3: memref<1x128xf32, #tpu.memory_space<vmem>>, %arg4: memref<2x5x128x128xf32, #tpu.memory_space<vmem>>, %arg5: memref<1x128xf32, #tpu.memory_space<vmem>>, %arg6: memref<5x128x128xf32, #tpu.memory_space<vmem>>, %arg7: memref<1x128xf32, #tpu.memory_space<vmem>>, %arg8: memref<128x128xf32, #tpu.memory_space<vmem>>, %arg9: memref<1x128xf32, #tpu.memory_space<vmem>>, %arg10: memref<128x128xf32, #tpu.memory_space<vmem>>, %arg11: memref<1x128xf32, #tpu.memory_space<vmem>>, %arg12: memref<8x128xf32, #tpu.memory_space<vmem>>, %arg13: memref<2x24x128xf32, #tpu.memory_space<vmem>>, %arg14: memref<16x128xf32, #tpu.memory_space<vmem>>) attributes {dimension_semantics = [#tpu.dimension_semantics<parallel>], iteration_bounds = array<i64: 2>, scalar_prefetch = 0 : i64, scratch_operands = 2 : i64, tpu.core_type = #tpu.core_type<tc>, window_params = [{transform_indices = @transform_0, window_bounds = array<i64: 4, 1, 32, 96>}, {pipeline_mode = #tpu.pipeline_mode<synchronous>, transform_indices = @transform_1, window_bounds = array<i64: 2, 5, 96, 128>}, {pipeline_mode = #tpu.pipeline_mode<synchronous>, transform_indices = @transform_2, window_bounds = array<i64: 1, 128>}, {pipeline_mode = #tpu.pipeline_mode<synchronous>, transform_indices = @transform_3, window_bounds = array<i64: 2, 5, 128, 128>}, {pipeline_mode = #tpu.pipeline_mode<synchronous>, transform_indices = @transform_4, window_bounds = array<i64: 1, 128>}, {pipeline_mode = #tpu.pipeline_mode<synchronous>, transform_indices = @transform_5, window_bounds = array<i64: 5, 128, 128>}, {pipeline_mode = #tpu.pipeline_mode<synchronous>, transform_indices = @transform_6, window_bounds = array<i64: 1, 128>}, {pipeline_mode = #tpu.pipeline_mode<synchronous>, transform_indices = @transform_7, window_bounds = array<i64: 128, 128>}, {pipeline_mode = #tpu.pipeline_mode<synchronous>, transform_indices = @transform_8, window_bounds = array<i64: 1, 128>}, {pipeline_mode = #tpu.pipeline_mode<synchronous>, transform_indices = @transform_9, window_bounds = array<i64: 128, 128>}, {pipeline_mode = #tpu.pipeline_mode<synchronous>, transform_indices = @transform_10, window_bounds = array<i64: 1, 128>}, {transform_indices = @transform_11, window_bounds = array<i64: 8, 128>}]} {
    %c0 = arith.constant 0 : index
    %c0_0 = arith.constant 0 : index
    %c0_1 = arith.constant 0 : index
    %c0_2 = arith.constant 0 : index
    %0 = vector.load %arg1[%c0, %c0_0, %c0_1, %c0_2] : memref<4x1x32x96xf32, #tpu.memory_space<vmem>>, vector<1x1x24x96xf32>
    %1 = vector.shape_cast %0 : vector<1x1x24x96xf32> to vector<24x96xf32>
    %c0_3 = arith.constant 0 : index
    %c0_4 = arith.constant 0 : index
    %c0_5 = arith.constant 0 : index
    %c0_6 = arith.constant 0 : index
    %2 = vector.load %arg2[%c0_3, %c0_4, %c0_5, %c0_6] : memref<2x5x96x128xf32, #tpu.memory_space<vmem>>, vector<1x1x96x128xf32>
    %3 = vector.shape_cast %2 : vector<1x1x96x128xf32> to vector<96x128xf32>
    %cst = arith.constant dense<0.000000e+00> : vector<24x128xf32>
    %4 = tpu.matmul %1, %3, %cst {dimension_numbers = #tpu.dot_dimension_numbers<[1], [0], [0], [1], [0, 0, 1, 1], [], []>} : vector<24x96xf32>, vector<96x128xf32>, vector<24x128xf32> -> vector<24x128xf32>
    %c1 = arith.constant 1 : index
    %c0_7 = arith.constant 0 : index
    %c0_8 = arith.constant 0 : index
    %c0_9 = arith.constant 0 : index
    %5 = vector.load %arg2[%c1, %c0_7, %c0_8, %c0_9] : memref<2x5x96x128xf32, #tpu.memory_space<vmem>>, vector<1x1x96x128xf32>
    %6 = vector.shape_cast %5 : vector<1x1x96x128xf32> to vector<96x128xf32>
    %cst_10 = arith.constant dense<0.000000e+00> : vector<24x128xf32>
    %7 = tpu.matmul %1, %6, %cst_10 {dimension_numbers = #tpu.dot_dimension_numbers<[1], [0], [0], [1], [0, 0, 1, 1], [], []>} : vector<24x96xf32>, vector<96x128xf32>, vector<24x128xf32> -> vector<24x128xf32>
    %c1_11 = arith.constant 1 : index
    %c0_12 = arith.constant 0 : index
    %c0_13 = arith.constant 0 : index
    %c0_14 = arith.constant 0 : index
    %8 = vector.load %arg1[%c1_11, %c0_12, %c0_13, %c0_14] : memref<4x1x32x96xf32, #tpu.memory_space<vmem>>, vector<1x1x24x96xf32>
    %9 = vector.shape_cast %8 : vector<1x1x24x96xf32> to vector<24x96xf32>
    %c0_15 = arith.constant 0 : index
    %c1_16 = arith.constant 1 : index
    %c0_17 = arith.constant 0 : index
    %c0_18 = arith.constant 0 : index
    %10 = vector.load %arg2[%c0_15, %c1_16, %c0_17, %c0_18] : memref<2x5x96x128xf32, #tpu.memory_space<vmem>>, vector<1x1x96x128xf32>
    %11 = vector.shape_cast %10 : vector<1x1x96x128xf32> to vector<96x128xf32>
    %cst_19 = arith.constant dense<0.000000e+00> : vector<24x128xf32>
    %12 = tpu.matmul %9, %11, %cst_19 {dimension_numbers = #tpu.dot_dimension_numbers<[1], [0], [0], [1], [0, 0, 1, 1], [], []>} : vector<24x96xf32>, vector<96x128xf32>, vector<24x128xf32> -> vector<24x128xf32>
    %13 = arith.addf %4, %12 : vector<24x128xf32>
    %c1_20 = arith.constant 1 : index
    %c1_21 = arith.constant 1 : index
    %c0_22 = arith.constant 0 : index
    %c0_23 = arith.constant 0 : index
    %14 = vector.load %arg2[%c1_20, %c1_21, %c0_22, %c0_23] : memref<2x5x96x128xf32, #tpu.memory_space<vmem>>, vector<1x1x96x128xf32>
    %15 = vector.shape_cast %14 : vector<1x1x96x128xf32> to vector<96x128xf32>
    %cst_24 = arith.constant dense<0.000000e+00> : vector<24x128xf32>
    %16 = tpu.matmul %9, %15, %cst_24 {dimension_numbers = #tpu.dot_dimension_numbers<[1], [0], [0], [1], [0, 0, 1, 1], [], []>} : vector<24x96xf32>, vector<96x128xf32>, vector<24x128xf32> -> vector<24x128xf32>
    %17 = arith.addf %7, %16 : vector<24x128xf32>
    %c2 = arith.constant 2 : index
    %c0_25 = arith.constant 0 : index
    %c0_26 = arith.constant 0 : index
    %c0_27 = arith.constant 0 : index
    %18 = vector.load %arg1[%c2, %c0_25, %c0_26, %c0_27] : memref<4x1x32x96xf32, #tpu.memory_space<vmem>>, vector<1x1x24x96xf32>
    %19 = vector.shape_cast %18 : vector<1x1x24x96xf32> to vector<24x96xf32>
    %c0_28 = arith.constant 0 : index
    %c2_29 = arith.constant 2 : index
    %c0_30 = arith.constant 0 : index
    %c0_31 = arith.constant 0 : index
    %20 = vector.load %arg2[%c0_28, %c2_29, %c0_30, %c0_31] : memref<2x5x96x128xf32, #tpu.memory_space<vmem>>, vector<1x1x96x128xf32>
    %21 = vector.shape_cast %20 : vector<1x1x96x128xf32> to vector<96x128xf32>
    %cst_32 = arith.constant dense<0.000000e+00> : vector<24x128xf32>
    %22 = tpu.matmul %19, %21, %cst_32 {dimension_numbers = #tpu.dot_dimension_numbers<[1], [0], [0], [1], [0, 0, 1, 1], [], []>} : vector<24x96xf32>, vector<96x128xf32>, vector<24x128xf32> -> vector<24x128xf32>
    %23 = arith.addf %13, %22 : vector<24x128xf32>
    %c1_33 = arith.constant 1 : index
    %c2_34 = arith.constant 2 : index
    %c0_35 = arith.constant 0 : index
    %c0_36 = arith.constant 0 : index
    %24 = vector.load %arg2[%c1_33, %c2_34, %c0_35, %c0_36] : memref<2x5x96x128xf32, #tpu.memory_space<vmem>>, vector<1x1x96x128xf32>
    %25 = vector.shape_cast %24 : vector<1x1x96x128xf32> to vector<96x128xf32>
    %cst_37 = arith.constant dense<0.000000e+00> : vector<24x128xf32>
    %26 = tpu.matmul %19, %25, %cst_37 {dimension_numbers = #tpu.dot_dimension_numbers<[1], [0], [0], [1], [0, 0, 1, 1], [], []>} : vector<24x96xf32>, vector<96x128xf32>, vector<24x128xf32> -> vector<24x128xf32>
    %27 = arith.addf %17, %26 : vector<24x128xf32>
    %c3 = arith.constant 3 : index
    %c0_38 = arith.constant 0 : index
    %c0_39 = arith.constant 0 : index
    %c0_40 = arith.constant 0 : index
    %28 = vector.load %arg1[%c3, %c0_38, %c0_39, %c0_40] : memref<4x1x32x96xf32, #tpu.memory_space<vmem>>, vector<1x1x24x96xf32>
    %29 = vector.shape_cast %28 : vector<1x1x24x96xf32> to vector<24x96xf32>
    %c0_41 = arith.constant 0 : index
    %c3_42 = arith.constant 3 : index
    %c0_43 = arith.constant 0 : index
    %c0_44 = arith.constant 0 : index
    %30 = vector.load %arg2[%c0_41, %c3_42, %c0_43, %c0_44] : memref<2x5x96x128xf32, #tpu.memory_space<vmem>>, vector<1x1x96x128xf32>
    %31 = vector.shape_cast %30 : vector<1x1x96x128xf32> to vector<96x128xf32>
    %cst_45 = arith.constant dense<0.000000e+00> : vector<24x128xf32>
    %32 = tpu.matmul %29, %31, %cst_45 {dimension_numbers = #tpu.dot_dimension_numbers<[1], [0], [0], [1], [0, 0, 1, 1], [], []>} : vector<24x96xf32>, vector<96x128xf32>, vector<24x128xf32> -> vector<24x128xf32>
    %33 = arith.addf %23, %32 : vector<24x128xf32>
    %c1_46 = arith.constant 1 : index
    %c3_47 = arith.constant 3 : index
    %c0_48 = arith.constant 0 : index
    %c0_49 = arith.constant 0 : index
    %34 = vector.load %arg2[%c1_46, %c3_47, %c0_48, %c0_49] : memref<2x5x96x128xf32, #tpu.memory_space<vmem>>, vector<1x1x96x128xf32>
    %35 = vector.shape_cast %34 : vector<1x1x96x128xf32> to vector<96x128xf32>
    %cst_50 = arith.constant dense<0.000000e+00> : vector<24x128xf32>
    %36 = tpu.matmul %29, %35, %cst_50 {dimension_numbers = #tpu.dot_dimension_numbers<[1], [0], [0], [1], [0, 0, 1, 1], [], []>} : vector<24x96xf32>, vector<96x128xf32>, vector<24x128xf32> -> vector<24x128xf32>
    %37 = arith.addf %27, %36 : vector<24x128xf32>
    %c0_51 = arith.constant 0 : index
    %c0_52 = arith.constant 0 : index
    %c1_53 = arith.constant 1 : index
    %c0_54 = arith.constant 0 : index
    %38 = vector.load %arg1[%c0_51, %c0_52, %c1_53, %c0_54] : memref<4x1x32x96xf32, #tpu.memory_space<vmem>>, vector<1x1x24x96xf32>
    %39 = vector.shape_cast %38 : vector<1x1x24x96xf32> to vector<24x96xf32>
    %c0_55 = arith.constant 0 : index
    %c4 = arith.constant 4 : index
    %c0_56 = arith.constant 0 : index
    %c0_57 = arith.constant 0 : index
    %40 = vector.load %arg2[%c0_55, %c4, %c0_56, %c0_57] : memref<2x5x96x128xf32, #tpu.memory_space<vmem>>, vector<1x1x96x128xf32>
    %41 = vector.shape_cast %40 : vector<1x1x96x128xf32> to vector<96x128xf32>
    %cst_58 = arith.constant dense<0.000000e+00> : vector<24x128xf32>
    %42 = tpu.matmul %39, %41, %cst_58 {dimension_numbers = #tpu.dot_dimension_numbers<[1], [0], [0], [1], [0, 0, 1, 1], [], []>} : vector<24x96xf32>, vector<96x128xf32>, vector<24x128xf32> -> vector<24x128xf32>
    %43 = arith.addf %33, %42 : vector<24x128xf32>
    %c1_59 = arith.constant 1 : index
    %c4_60 = arith.constant 4 : index
    %c0_61 = arith.constant 0 : index
    %c0_62 = arith.constant 0 : index
    %44 = vector.load %arg2[%c1_59, %c4_60, %c0_61, %c0_62] : memref<2x5x96x128xf32, #tpu.memory_space<vmem>>, vector<1x1x96x128xf32>
    %45 = vector.shape_cast %44 : vector<1x1x96x128xf32> to vector<96x128xf32>
    %cst_63 = arith.constant dense<0.000000e+00> : vector<24x128xf32>
    %46 = tpu.matmul %39, %45, %cst_63 {dimension_numbers = #tpu.dot_dimension_numbers<[1], [0], [0], [1], [0, 0, 1, 1], [], []>} : vector<24x96xf32>, vector<96x128xf32>, vector<24x128xf32> -> vector<24x128xf32>
    %47 = arith.addf %37, %46 : vector<24x128xf32>
    %c1_64 = arith.constant 1 : index
    %c0_65 = arith.constant 0 : index
    %c0_66 = arith.constant 0 : index
    %c0_67 = arith.constant 0 : index
    %48 = vector.load %arg1[%c1_64, %c0_65, %c0_66, %c0_67] : memref<4x1x32x96xf32, #tpu.memory_space<vmem>>, vector<1x1x24x96xf32>
    %49 = vector.shape_cast %48 : vector<1x1x24x96xf32> to vector<24x96xf32>
    %c0_68 = arith.constant 0 : index
    %c0_69 = arith.constant 0 : index
    %c0_70 = arith.constant 0 : index
    %c0_71 = arith.constant 0 : index
    %50 = vector.load %arg2[%c0_68, %c0_69, %c0_70, %c0_71] : memref<2x5x96x128xf32, #tpu.memory_space<vmem>>, vector<1x1x96x128xf32>
    %51 = vector.shape_cast %50 : vector<1x1x96x128xf32> to vector<96x128xf32>
    %cst_72 = arith.constant dense<0.000000e+00> : vector<24x128xf32>
    %52 = tpu.matmul %49, %51, %cst_72 {dimension_numbers = #tpu.dot_dimension_numbers<[1], [0], [0], [1], [0, 0, 1, 1], [], []>} : vector<24x96xf32>, vector<96x128xf32>, vector<24x128xf32> -> vector<24x128xf32>
    %c1_73 = arith.constant 1 : index
    %c0_74 = arith.constant 0 : index
    %c0_75 = arith.constant 0 : index
    %c0_76 = arith.constant 0 : index
    %53 = vector.load %arg2[%c1_73, %c0_74, %c0_75, %c0_76] : memref<2x5x96x128xf32, #tpu.memory_space<vmem>>, vector<1x1x96x128xf32>
    %54 = vector.shape_cast %53 : vector<1x1x96x128xf32> to vector<96x128xf32>
    %cst_77 = arith.constant dense<0.000000e+00> : vector<24x128xf32>
    %55 = tpu.matmul %49, %54, %cst_77 {dimension_numbers = #tpu.dot_dimension_numbers<[1], [0], [0], [1], [0, 0, 1, 1], [], []>} : vector<24x96xf32>, vector<96x128xf32>, vector<24x128xf32> -> vector<24x128xf32>
    %c2_78 = arith.constant 2 : index
    %c0_79 = arith.constant 0 : index
    %c0_80 = arith.constant 0 : index
    %c0_81 = arith.constant 0 : index
    %56 = vector.load %arg1[%c2_78, %c0_79, %c0_80, %c0_81] : memref<4x1x32x96xf32, #tpu.memory_space<vmem>>, vector<1x1x24x96xf32>
    %57 = vector.shape_cast %56 : vector<1x1x24x96xf32> to vector<24x96xf32>
    %c0_82 = arith.constant 0 : index
    %c1_83 = arith.constant 1 : index
    %c0_84 = arith.constant 0 : index
    %c0_85 = arith.constant 0 : index
    %58 = vector.load %arg2[%c0_82, %c1_83, %c0_84, %c0_85] : memref<2x5x96x128xf32, #tpu.memory_space<vmem>>, vector<1x1x96x128xf32>
    %59 = vector.shape_cast %58 : vector<1x1x96x128xf32> to vector<96x128xf32>
    %cst_86 = arith.constant dense<0.000000e+00> : vector<24x128xf32>
    %60 = tpu.matmul %57, %59, %cst_86 {dimension_numbers = #tpu.dot_dimension_numbers<[1], [0], [0], [1], [0, 0, 1, 1], [], []>} : vector<24x96xf32>, vector<96x128xf32>, vector<24x128xf32> -> vector<24x128xf32>
    %61 = arith.addf %52, %60 : vector<24x128xf32>
    %c1_87 = arith.constant 1 : index
    %c1_88 = arith.constant 1 : index
    %c0_89 = arith.constant 0 : index
    %c0_90 = arith.constant 0 : index
    %62 = vector.load %arg2[%c1_87, %c1_88, %c0_89, %c0_90] : memref<2x5x96x128xf32, #tpu.memory_space<vmem>>, vector<1x1x96x128xf32>
    %63 = vector.shape_cast %62 : vector<1x1x96x128xf32> to vector<96x128xf32>
    %cst_91 = arith.constant dense<0.000000e+00> : vector<24x128xf32>
    %64 = tpu.matmul %57, %63, %cst_91 {dimension_numbers = #tpu.dot_dimension_numbers<[1], [0], [0], [1], [0, 0, 1, 1], [], []>} : vector<24x96xf32>, vector<96x128xf32>, vector<24x128xf32> -> vector<24x128xf32>
    %65 = arith.addf %55, %64 : vector<24x128xf32>
    %c3_92 = arith.constant 3 : index
    %c0_93 = arith.constant 0 : index
    %c0_94 = arith.constant 0 : index
    %c0_95 = arith.constant 0 : index
    %66 = vector.load %arg1[%c3_92, %c0_93, %c0_94, %c0_95] : memref<4x1x32x96xf32, #tpu.memory_space<vmem>>, vector<1x1x24x96xf32>
    %67 = vector.shape_cast %66 : vector<1x1x24x96xf32> to vector<24x96xf32>
    %c0_96 = arith.constant 0 : index
    %c2_97 = arith.constant 2 : index
    %c0_98 = arith.constant 0 : index
    %c0_99 = arith.constant 0 : index
    %68 = vector.load %arg2[%c0_96, %c2_97, %c0_98, %c0_99] : memref<2x5x96x128xf32, #tpu.memory_space<vmem>>, vector<1x1x96x128xf32>
    %69 = vector.shape_cast %68 : vector<1x1x96x128xf32> to vector<96x128xf32>
    %cst_100 = arith.constant dense<0.000000e+00> : vector<24x128xf32>
    %70 = tpu.matmul %67, %69, %cst_100 {dimension_numbers = #tpu.dot_dimension_numbers<[1], [0], [0], [1], [0, 0, 1, 1], [], []>} : vector<24x96xf32>, vector<96x128xf32>, vector<24x128xf32> -> vector<24x128xf32>
    %71 = arith.addf %61, %70 : vector<24x128xf32>
    %c1_101 = arith.constant 1 : index
    %c2_102 = arith.constant 2 : index
    %c0_103 = arith.constant 0 : index
    %c0_104 = arith.constant 0 : index
    %72 = vector.load %arg2[%c1_101, %c2_102, %c0_103, %c0_104] : memref<2x5x96x128xf32, #tpu.memory_space<vmem>>, vector<1x1x96x128xf32>
    %73 = vector.shape_cast %72 : vector<1x1x96x128xf32> to vector<96x128xf32>
    %cst_105 = arith.constant dense<0.000000e+00> : vector<24x128xf32>
    %74 = tpu.matmul %67, %73, %cst_105 {dimension_numbers = #tpu.dot_dimension_numbers<[1], [0], [0], [1], [0, 0, 1, 1], [], []>} : vector<24x96xf32>, vector<96x128xf32>, vector<24x128xf32> -> vector<24x128xf32>
    %75 = arith.addf %65, %74 : vector<24x128xf32>
    %c0_106 = arith.constant 0 : index
    %c0_107 = arith.constant 0 : index
    %c1_108 = arith.constant 1 : index
    %c0_109 = arith.constant 0 : index
    %76 = vector.load %arg1[%c0_106, %c0_107, %c1_108, %c0_109] : memref<4x1x32x96xf32, #tpu.memory_space<vmem>>, vector<1x1x24x96xf32>
    %77 = vector.shape_cast %76 : vector<1x1x24x96xf32> to vector<24x96xf32>
    %c0_110 = arith.constant 0 : index
    %c3_111 = arith.constant 3 : index
    %c0_112 = arith.constant 0 : index
    %c0_113 = arith.constant 0 : index
    %78 = vector.load %arg2[%c0_110, %c3_111, %c0_112, %c0_113] : memref<2x5x96x128xf32, #tpu.memory_space<vmem>>, vector<1x1x96x128xf32>
    %79 = vector.shape_cast %78 : vector<1x1x96x128xf32> to vector<96x128xf32>
    %cst_114 = arith.constant dense<0.000000e+00> : vector<24x128xf32>
    %80 = tpu.matmul %77, %79, %cst_114 {dimension_numbers = #tpu.dot_dimension_numbers<[1], [0], [0], [1], [0, 0, 1, 1], [], []>} : vector<24x96xf32>, vector<96x128xf32>, vector<24x128xf32> -> vector<24x128xf32>
    %81 = arith.addf %71, %80 : vector<24x128xf32>
    %c1_115 = arith.constant 1 : index
    %c3_116 = arith.constant 3 : index
    %c0_117 = arith.constant 0 : index
    %c0_118 = arith.constant 0 : index
    %82 = vector.load %arg2[%c1_115, %c3_116, %c0_117, %c0_118] : memref<2x5x96x128xf32, #tpu.memory_space<vmem>>, vector<1x1x96x128xf32>
    %83 = vector.shape_cast %82 : vector<1x1x96x128xf32> to vector<96x128xf32>
    %cst_119 = arith.constant dense<0.000000e+00> : vector<24x128xf32>
    %84 = tpu.matmul %77, %83, %cst_119 {dimension_numbers = #tpu.dot_dimension_numbers<[1], [0], [0], [1], [0, 0, 1, 1], [], []>} : vector<24x96xf32>, vector<96x128xf32>, vector<24x128xf32> -> vector<24x128xf32>
    %85 = arith.addf %75, %84 : vector<24x128xf32>
    %c1_120 = arith.constant 1 : index
    %c0_121 = arith.constant 0 : index
    %c1_122 = arith.constant 1 : index
    %c0_123 = arith.constant 0 : index
    %86 = vector.load %arg1[%c1_120, %c0_121, %c1_122, %c0_123] : memref<4x1x32x96xf32, #tpu.memory_space<vmem>>, vector<1x1x24x96xf32>
    %87 = vector.shape_cast %86 : vector<1x1x24x96xf32> to vector<24x96xf32>
    %c0_124 = arith.constant 0 : index
    %c4_125 = arith.constant 4 : index
    %c0_126 = arith.constant 0 : index
    %c0_127 = arith.constant 0 : index
    %88 = vector.load %arg2[%c0_124, %c4_125, %c0_126, %c0_127] : memref<2x5x96x128xf32, #tpu.memory_space<vmem>>, vector<1x1x96x128xf32>
    %89 = vector.shape_cast %88 : vector<1x1x96x128xf32> to vector<96x128xf32>
    %cst_128 = arith.constant dense<0.000000e+00> : vector<24x128xf32>
    %90 = tpu.matmul %87, %89, %cst_128 {dimension_numbers = #tpu.dot_dimension_numbers<[1], [0], [0], [1], [0, 0, 1, 1], [], []>} : vector<24x96xf32>, vector<96x128xf32>, vector<24x128xf32> -> vector<24x128xf32>
    %91 = arith.addf %81, %90 : vector<24x128xf32>
    %c1_129 = arith.constant 1 : index
    %c4_130 = arith.constant 4 : index
    %c0_131 = arith.constant 0 : index
    %c0_132 = arith.constant 0 : index
    %92 = vector.load %arg2[%c1_129, %c4_130, %c0_131, %c0_132] : memref<2x5x96x128xf32, #tpu.memory_space<vmem>>, vector<1x1x96x128xf32>
    %93 = vector.shape_cast %92 : vector<1x1x96x128xf32> to vector<96x128xf32>
    %cst_133 = arith.constant dense<0.000000e+00> : vector<24x128xf32>
    %94 = tpu.matmul %87, %93, %cst_133 {dimension_numbers = #tpu.dot_dimension_numbers<[1], [0], [0], [1], [0, 0, 1, 1], [], []>} : vector<24x96xf32>, vector<96x128xf32>, vector<24x128xf32> -> vector<24x128xf32>
    %95 = arith.addf %85, %94 : vector<24x128xf32>
    %96 = arith.maximumf %43, %47 : vector<24x128xf32>
    %97 = arith.maximumf %91, %95 : vector<24x128xf32>
    %98 = arith.maximumf %96, %97 : vector<24x128xf32>
    %c0_134 = arith.constant 0 : index
    %c0_135 = arith.constant 0 : index
    %99 = vector.load %arg3[%c0_134, %c0_135] : memref<1x128xf32, #tpu.memory_space<vmem>>, vector<1x128xf32>
    %100 = vector.broadcast %99 : vector<1x128xf32> to vector<24x128xf32>
    %101 = arith.addf %98, %100 : vector<24x128xf32>
    %cst_136 = arith.constant 0.000000e+00 : f32
    %102 = vector.broadcast %cst_136 : f32 to vector<24x128xf32>
    %103 = arith.maximumf %101, %102 : vector<24x128xf32>
    %c0_137 = arith.constant 0 : index
    %c0_138 = arith.constant 0 : index
    %c0_139 = arith.constant 0 : index
    %104 = vector.load %arg13[%c0_137, %c0_138, %c0_139] : memref<2x24x128xf32, #tpu.memory_space<vmem>>, vector<1x24x128xf32>
    %105 = vector.shape_cast %104 : vector<1x24x128xf32> to vector<24x128xf32>
    %106 = vector.shape_cast %103 : vector<24x128xf32> to vector<1x24x128xf32>
    tpu.vector_store %arg13[%c0_137, %c0_138, %c0_139], %106 {strides = array<i32>} : memref<2x24x128xf32, #tpu.memory_space<vmem>>, vector<1x24x128xf32>,
    %c2_140 = arith.constant 2 : index
    %c0_141 = arith.constant 0 : index
    %c0_142 = arith.constant 0 : index
    %c0_143 = arith.constant 0 : index
    %107 = vector.load %arg1[%c2_140, %c0_141, %c0_142, %c0_143] : memref<4x1x32x96xf32, #tpu.memory_space<vmem>>, vector<1x1x24x96xf32>
    %108 = vector.shape_cast %107 : vector<1x1x24x96xf32> to vector<24x96xf32>
    %c0_144 = arith.constant 0 : index
    %c0_145 = arith.constant 0 : index
    %c0_146 = arith.constant 0 : index
    %c0_147 = arith.constant 0 : index
    %109 = vector.load %arg2[%c0_144, %c0_145, %c0_146, %c0_147] : memref<2x5x96x128xf32, #tpu.memory_space<vmem>>, vector<1x1x96x128xf32>
    %110 = vector.shape_cast %109 : vector<1x1x96x128xf32> to vector<96x128xf32>
    %cst_148 = arith.constant dense<0.000000e+00> : vector<24x128xf32>
    %111 = tpu.matmul %108, %110, %cst_148 {dimension_numbers = #tpu.dot_dimension_numbers<[1], [0], [0], [1], [0, 0, 1, 1], [], []>} : vector<24x96xf32>, vector<96x128xf32>, vector<24x128xf32> -> vector<24x128xf32>
    %c1_149 = arith.constant 1 : index
    %c0_150 = arith.constant 0 : index
    %c0_151 = arith.constant 0 : index
    %c0_152 = arith.constant 0 : index
    %112 = vector.load %arg2[%c1_149, %c0_150, %c0_151, %c0_152] : memref<2x5x96x128xf32, #tpu.memory_space<vmem>>, vector<1x1x96x128xf32>
    %113 = vector.shape_cast %112 : vector<1x1x96x128xf32> to vector<96x128xf32>
    %cst_153 = arith.constant dense<0.000000e+00> : vector<24x128xf32>
    %114 = tpu.matmul %108, %113, %cst_153 {dimension_numbers = #tpu.dot_dimension_numbers<[1], [0], [0], [1], [0, 0, 1, 1], [], []>} : vector<24x96xf32>, vector<96x128xf32>, vector<24x128xf32> -> vector<24x128xf32>
    %c3_154 = arith.constant 3 : index
    %c0_155 = arith.constant 0 : index
    %c0_156 = arith.constant 0 : index
    %c0_157 = arith.constant 0 : index
    %115 = vector.load %arg1[%c3_154, %c0_155, %c0_156, %c0_157] : memref<4x1x32x96xf32, #tpu.memory_space<vmem>>, vector<1x1x24x96xf32>
    %116 = vector.shape_cast %115 : vector<1x1x24x96xf32> to vector<24x96xf32>
    %c0_158 = arith.constant 0 : index
    %c1_159 = arith.constant 1 : index
    %c0_160 = arith.constant 0 : index
    %c0_161 = arith.constant 0 : index
    %117 = vector.load %arg2[%c0_158, %c1_159, %c0_160, %c0_161] : memref<2x5x96x128xf32, #tpu.memory_space<vmem>>, vector<1x1x96x128xf32>
    %118 = vector.shape_cast %117 : vector<1x1x96x128xf32> to vector<96x128xf32>
    %cst_162 = arith.constant dense<0.000000e+00> : vector<24x128xf32>
    %119 = tpu.matmul %116, %118, %cst_162 {dimension_numbers = #tpu.dot_dimension_numbers<[1], [0], [0], [1], [0, 0, 1, 1], [], []>} : vector<24x96xf32>, vector<96x128xf32>, vector<24x128xf32> -> vector<24x128xf32>
    %120 = arith.addf %111, %119 : vector<24x128xf32>
    %c1_163 = arith.constant 1 : index
    %c1_164 = arith.constant 1 : index
    %c0_165 = arith.constant 0 : index
    %c0_166 = arith.constant 0 : index
    %121 = vector.load %arg2[%c1_163, %c1_164, %c0_165, %c0_166] : memref<2x5x96x128xf32, #tpu.memory_space<vmem>>, vector<1x1x96x128xf32>
    %122 = vector.shape_cast %121 : vector<1x1x96x128xf32> to vector<96x128xf32>
    %cst_167 = arith.constant dense<0.000000e+00> : vector<24x128xf32>
    %123 = tpu.matmul %116, %122, %cst_167 {dimension_numbers = #tpu.dot_dimension_numbers<[1], [0], [0], [1], [0, 0, 1, 1], [], []>} : vector<24x96xf32>, vector<96x128xf32>, vector<24x128xf32> -> vector<24x128xf32>
    %124 = arith.addf %114, %123 : vector<24x128xf32>
    %c0_168 = arith.constant 0 : index
    %c0_169 = arith.constant 0 : index
    %c1_170 = arith.constant 1 : index
    %c0_171 = arith.constant 0 : index
    %125 = vector.load %arg1[%c0_168, %c0_169, %c1_170, %c0_171] : memref<4x1x32x96xf32, #tpu.memory_space<vmem>>, vector<1x1x24x96xf32>
    %126 = vector.shape_cast %125 : vector<1x1x24x96xf32> to vector<24x96xf32>
    %c0_172 = arith.constant 0 : index
    %c2_173 = arith.constant 2 : index
    %c0_174 = arith.constant 0 : index
    %c0_175 = arith.constant 0 : index
    %127 = vector.load %arg2[%c0_172, %c2_173, %c0_174, %c0_175] : memref<2x5x96x128xf32, #tpu.memory_space<vmem>>, vector<1x1x96x128xf32>
    %128 = vector.shape_cast %127 : vector<1x1x96x128xf32> to vector<96x128xf32>
    %cst_176 = arith.constant dense<0.000000e+00> : vector<24x128xf32>
    %129 = tpu.matmul %126, %128, %cst_176 {dimension_numbers = #tpu.dot_dimension_numbers<[1], [0], [0], [1], [0, 0, 1, 1], [], []>} : vector<24x96xf32>, vector<96x128xf32>, vector<24x128xf32> -> vector<24x128xf32>
    %130 = arith.addf %120, %129 : vector<24x128xf32>
    %c1_177 = arith.constant 1 : index
    %c2_178 = arith.constant 2 : index
    %c0_179 = arith.constant 0 : index
    %c0_180 = arith.constant 0 : index
    %131 = vector.load %arg2[%c1_177, %c2_178, %c0_179, %c0_180] : memref<2x5x96x128xf32, #tpu.memory_space<vmem>>, vector<1x1x96x128xf32>
    %132 = vector.shape_cast %131 : vector<1x1x96x128xf32> to vector<96x128xf32>
    %cst_181 = arith.constant dense<0.000000e+00> : vector<24x128xf32>
    %133 = tpu.matmul %126, %132, %cst_181 {dimension_numbers = #tpu.dot_dimension_numbers<[1], [0], [0], [1], [0, 0, 1, 1], [], []>} : vector<24x96xf32>, vector<96x128xf32>, vector<24x128xf32> -> vector<24x128xf32>
    %134 = arith.addf %124, %133 : vector<24x128xf32>
    %c1_182 = arith.constant 1 : index
    %c0_183 = arith.constant 0 : index
    %c1_184 = arith.constant 1 : index
    %c0_185 = arith.constant 0 : index
    %135 = vector.load %arg1[%c1_182, %c0_183, %c1_184, %c0_185] : memref<4x1x32x96xf32, #tpu.memory_space<vmem>>, vector<1x1x24x96xf32>
    %136 = vector.shape_cast %135 : vector<1x1x24x96xf32> to vector<24x96xf32>
    %c0_186 = arith.constant 0 : index
    %c3_187 = arith.constant 3 : index
    %c0_188 = arith.constant 0 : index
    %c0_189 = arith.constant 0 : index
    %137 = vector.load %arg2[%c0_186, %c3_187, %c0_188, %c0_189] : memref<2x5x96x128xf32, #tpu.memory_space<vmem>>, vector<1x1x96x128xf32>
    %138 = vector.shape_cast %137 : vector<1x1x96x128xf32> to vector<96x128xf32>
    %cst_190 = arith.constant dense<0.000000e+00> : vector<24x128xf32>
    %139 = tpu.matmul %136, %138, %cst_190 {dimension_numbers = #tpu.dot_dimension_numbers<[1], [0], [0], [1], [0, 0, 1, 1], [], []>} : vector<24x96xf32>, vector<96x128xf32>, vector<24x128xf32> -> vector<24x128xf32>
    %140 = arith.addf %130, %139 : vector<24x128xf32>
    %c1_191 = arith.constant 1 : index
    %c3_192 = arith.constant 3 : index
    %c0_193 = arith.constant 0 : index
    %c0_194 = arith.constant 0 : index
    %141 = vector.load %arg2[%c1_191, %c3_192, %c0_193, %c0_194] : memref<2x5x96x128xf32, #tpu.memory_space<vmem>>, vector<1x1x96x128xf32>
    %142 = vector.shape_cast %141 : vector<1x1x96x128xf32> to vector<96x128xf32>
    %cst_195 = arith.constant dense<0.000000e+00> : vector<24x128xf32>
    %143 = tpu.matmul %136, %142, %cst_195 {dimension_numbers = #tpu.dot_dimension_numbers<[1], [0], [0], [1], [0, 0, 1, 1], [], []>} : vector<24x96xf32>, vector<96x128xf32>, vector<24x128xf32> -> vector<24x128xf32>
    %144 = arith.addf %134, %143 : vector<24x128xf32>
    %c2_196 = arith.constant 2 : index
    %c0_197 = arith.constant 0 : index
    %c1_198 = arith.constant 1 : index
    %c0_199 = arith.constant 0 : index
    %145 = vector.load %arg1[%c2_196, %c0_197, %c1_198, %c0_199] : memref<4x1x32x96xf32, #tpu.memory_space<vmem>>, vector<1x1x24x96xf32>
    %146 = vector.shape_cast %145 : vector<1x1x24x96xf32> to vector<24x96xf32>
    %c0_200 = arith.constant 0 : index
    %c4_201 = arith.constant 4 : index
    %c0_202 = arith.constant 0 : index
    %c0_203 = arith.constant 0 : index
    %147 = vector.load %arg2[%c0_200, %c4_201, %c0_202, %c0_203] : memref<2x5x96x128xf32, #tpu.memory_space<vmem>>, vector<1x1x96x128xf32>
    %148 = vector.shape_cast %147 : vector<1x1x96x128xf32> to vector<96x128xf32>
    %cst_204 = arith.constant dense<0.000000e+00> : vector<24x128xf32>
    %149 = tpu.matmul %146, %148, %cst_204 {dimension_numbers = #tpu.dot_dimension_numbers<[1], [0], [0], [1], [0, 0, 1, 1], [], []>} : vector<24x96xf32>, vector<96x128xf32>, vector<24x128xf32> -> vector<24x128xf32>
    %150 = arith.addf %140, %149 : vector<24x128xf32>
    %c1_205 = arith.constant 1 : index
    %c4_206 = arith.constant 4 : index
    %c0_207 = arith.constant 0 : index
    %c0_208 = arith.constant 0 : index
    %151 = vector.load %arg2[%c1_205, %c4_206, %c0_207, %c0_208] : memref<2x5x96x128xf32, #tpu.memory_space<vmem>>, vector<1x1x96x128xf32>
    %152 = vector.shape_cast %151 : vector<1x1x96x128xf32> to vector<96x128xf32>
    %cst_209 = arith.constant dense<0.000000e+00> : vector<24x128xf32>
    %153 = tpu.matmul %146, %152, %cst_209 {dimension_numbers = #tpu.dot_dimension_numbers<[1], [0], [0], [1], [0, 0, 1, 1], [], []>} : vector<24x96xf32>, vector<96x128xf32>, vector<24x128xf32> -> vector<24x128xf32>
    %154 = arith.addf %144, %153 : vector<24x128xf32>
    %c3_210 = arith.constant 3 : index
    %c0_211 = arith.constant 0 : index
    %c0_212 = arith.constant 0 : index
    %c0_213 = arith.constant 0 : index
    %155 = vector.load %arg1[%c3_210, %c0_211, %c0_212, %c0_213] : memref<4x1x32x96xf32, #tpu.memory_space<vmem>>, vector<1x1x24x96xf32>
    %156 = vector.shape_cast %155 : vector<1x1x24x96xf32> to vector<24x96xf32>
    %c0_214 = arith.constant 0 : index
    %c0_215 = arith.constant 0 : index
    %c0_216 = arith.constant 0 : index
    %c0_217 = arith.constant 0 : index
    %157 = vector.load %arg2[%c0_214, %c0_215, %c0_216, %c0_217] : memref<2x5x96x128xf32, #tpu.memory_space<vmem>>, vector<1x1x96x128xf32>
    %158 = vector.shape_cast %157 : vector<1x1x96x128xf32> to vector<96x128xf32>
    %cst_218 = arith.constant dense<0.000000e+00> : vector<24x128xf32>
    %159 = tpu.matmul %156, %158, %cst_218 {dimension_numbers = #tpu.dot_dimension_numbers<[1], [0], [0], [1], [0, 0, 1, 1], [], []>} : vector<24x96xf32>, vector<96x128xf32>, vector<24x128xf32> -> vector<24x128xf32>
    %c1_219 = arith.constant 1 : index
    %c0_220 = arith.constant 0 : index
    %c0_221 = arith.constant 0 : index
    %c0_222 = arith.constant 0 : index
    %160 = vector.load %arg2[%c1_219, %c0_220, %c0_221, %c0_222] : memref<2x5x96x128xf32, #tpu.memory_space<vmem>>, vector<1x1x96x128xf32>
    %161 = vector.shape_cast %160 : vector<1x1x96x128xf32> to vector<96x128xf32>
    %cst_223 = arith.constant dense<0.000000e+00> : vector<24x128xf32>
    %162 = tpu.matmul %156, %161, %cst_223 {dimension_numbers = #tpu.dot_dimension_numbers<[1], [0], [0], [1], [0, 0, 1, 1], [], []>} : vector<24x96xf32>, vector<96x128xf32>, vector<24x128xf32> -> vector<24x128xf32>
    %c0_224 = arith.constant 0 : index
    %c0_225 = arith.constant 0 : index
    %c1_226 = arith.constant 1 : index
    %c0_227 = arith.constant 0 : index
    %163 = vector.load %arg1[%c0_224, %c0_225, %c1_226, %c0_227] : memref<4x1x32x96xf32, #tpu.memory_space<vmem>>, vector<1x1x24x96xf32>
    %164 = vector.shape_cast %163 : vector<1x1x24x96xf32> to vector<24x96xf32>
    %c0_228 = arith.constant 0 : index
    %c1_229 = arith.constant 1 : index
    %c0_230 = arith.constant 0 : index
    %c0_231 = arith.constant 0 : index
    %165 = vector.load %arg2[%c0_228, %c1_229, %c0_230, %c0_231] : memref<2x5x96x128xf32, #tpu.memory_space<vmem>>, vector<1x1x96x128xf32>
    %166 = vector.shape_cast %165 : vector<1x1x96x128xf32> to vector<96x128xf32>
    %cst_232 = arith.constant dense<0.000000e+00> : vector<24x128xf32>
    %167 = tpu.matmul %164, %166, %cst_232 {dimension_numbers = #tpu.dot_dimension_numbers<[1], [0], [0], [1], [0, 0, 1, 1], [], []>} : vector<24x96xf32>, vector<96x128xf32>, vector<24x128xf32> -> vector<24x128xf32>
    %168 = arith.addf %159, %167 : vector<24x128xf32>
    %c1_233 = arith.constant 1 : index
    %c1_234 = arith.constant 1 : index
    %c0_235 = arith.constant 0 : index
    %c0_236 = arith.constant 0 : index
    %169 = vector.load %arg2[%c1_233, %c1_234, %c0_235, %c0_236] : memref<2x5x96x128xf32, #tpu.memory_space<vmem>>, vector<1x1x96x128xf32>
    %170 = vector.shape_cast %169 : vector<1x1x96x128xf32> to vector<96x128xf32>
    %cst_237 = arith.constant dense<0.000000e+00> : vector<24x128xf32>
    %171 = tpu.matmul %164, %170, %cst_237 {dimension_numbers = #tpu.dot_dimension_numbers<[1], [0], [0], [1], [0, 0, 1, 1], [], []>} : vector<24x96xf32>, vector<96x128xf32>, vector<24x128xf32> -> vector<24x128xf32>
    %172 = arith.addf %162, %171 : vector<24x128xf32>
    %c1_238 = arith.constant 1 : index
    %c0_239 = arith.constant 0 : index
    %c1_240 = arith.constant 1 : index
    %c0_241 = arith.constant 0 : index
    %173 = vector.load %arg1[%c1_238, %c0_239, %c1_240, %c0_241] : memref<4x1x32x96xf32, #tpu.memory_space<vmem>>, vector<1x1x24x96xf32>
    %174 = vector.shape_cast %173 : vector<1x1x24x96xf32> to vector<24x96xf32>
    %c0_242 = arith.constant 0 : index
    %c2_243 = arith.constant 2 : index
    %c0_244 = arith.constant 0 : index
    %c0_245 = arith.constant 0 : index
    %175 = vector.load %arg2[%c0_242, %c2_243, %c0_244, %c0_245] : memref<2x5x96x128xf32, #tpu.memory_space<vmem>>, vector<1x1x96x128xf32>
    %176 = vector.shape_cast %175 : vector<1x1x96x128xf32> to vector<96x128xf32>
    %cst_246 = arith.constant dense<0.000000e+00> : vector<24x128xf32>
    %177 = tpu.matmul %174, %176, %cst_246 {dimension_numbers = #tpu.dot_dimension_numbers<[1], [0], [0], [1], [0, 0, 1, 1], [], []>} : vector<24x96xf32>, vector<96x128xf32>, vector<24x128xf32> -> vector<24x128xf32>
    %178 = arith.addf %168, %177 : vector<24x128xf32>
    %c1_247 = arith.constant 1 : index
    %c2_248 = arith.constant 2 : index
    %c0_249 = arith.constant 0 : index
    %c0_250 = arith.constant 0 : index
    %179 = vector.load %arg2[%c1_247, %c2_248, %c0_249, %c0_250] : memref<2x5x96x128xf32, #tpu.memory_space<vmem>>, vector<1x1x96x128xf32>
    %180 = vector.shape_cast %179 : vector<1x1x96x128xf32> to vector<96x128xf32>
    %cst_251 = arith.constant dense<0.000000e+00> : vector<24x128xf32>
    %181 = tpu.matmul %174, %180, %cst_251 {dimension_numbers = #tpu.dot_dimension_numbers<[1], [0], [0], [1], [0, 0, 1, 1], [], []>} : vector<24x96xf32>, vector<96x128xf32>, vector<24x128xf32> -> vector<24x128xf32>
    %182 = arith.addf %172, %181 : vector<24x128xf32>
    %c2_252 = arith.constant 2 : index
    %c0_253 = arith.constant 0 : index
    %c1_254 = arith.constant 1 : index
    %c0_255 = arith.constant 0 : index
    %183 = vector.load %arg1[%c2_252, %c0_253, %c1_254, %c0_255] : memref<4x1x32x96xf32, #tpu.memory_space<vmem>>, vector<1x1x24x96xf32>
    %184 = vector.shape_cast %183 : vector<1x1x24x96xf32> to vector<24x96xf32>
    %c0_256 = arith.constant 0 : index
    %c3_257 = arith.constant 3 : index
    %c0_258 = arith.constant 0 : index
    %c0_259 = arith.constant 0 : index
    %185 = vector.load %arg2[%c0_256, %c3_257, %c0_258, %c0_259] : memref<2x5x96x128xf32, #tpu.memory_space<vmem>>, vector<1x1x96x128xf32>
    %186 = vector.shape_cast %185 : vector<1x1x96x128xf32> to vector<96x128xf32>
    %cst_260 = arith.constant dense<0.000000e+00> : vector<24x128xf32>
    %187 = tpu.matmul %184, %186, %cst_260 {dimension_numbers = #tpu.dot_dimension_numbers<[1], [0], [0], [1], [0, 0, 1, 1], [], []>} : vector<24x96xf32>, vector<96x128xf32>, vector<24x128xf32> -> vector<24x128xf32>
    %188 = arith.addf %178, %187 : vector<24x128xf32>
    %c1_261 = arith.constant 1 : index
    %c3_262 = arith.constant 3 : index
    %c0_263 = arith.constant 0 : index
    %c0_264 = arith.constant 0 : index
    %189 = vector.load %arg2[%c1_261, %c3_262, %c0_263, %c0_264] : memref<2x5x96x128xf32, #tpu.memory_space<vmem>>, vector<1x1x96x128xf32>
    %190 = vector.shape_cast %189 : vector<1x1x96x128xf32> to vector<96x128xf32>
    %cst_265 = arith.constant dense<0.000000e+00> : vector<24x128xf32>
    %191 = tpu.matmul %184, %190, %cst_265 {dimension_numbers = #tpu.dot_dimension_numbers<[1], [0], [0], [1], [0, 0, 1, 1], [], []>} : vector<24x96xf32>, vector<96x128xf32>, vector<24x128xf32> -> vector<24x128xf32>
    %192 = arith.addf %182, %191 : vector<24x128xf32>
    %c3_266 = arith.constant 3 : index
    %c0_267 = arith.constant 0 : index
    %c1_268 = arith.constant 1 : index
    %c0_269 = arith.constant 0 : index
    %193 = vector.load %arg1[%c3_266, %c0_267, %c1_268, %c0_269] : memref<4x1x32x96xf32, #tpu.memory_space<vmem>>, vector<1x1x24x96xf32>
    %194 = vector.shape_cast %193 : vector<1x1x24x96xf32> to vector<24x96xf32>
    %c0_270 = arith.constant 0 : index
    %c4_271 = arith.constant 4 : index
    %c0_272 = arith.constant 0 : index
    %c0_273 = arith.constant 0 : index
    %195 = vector.load %arg2[%c0_270, %c4_271, %c0_272, %c0_273] : memref<2x5x96x128xf32, #tpu.memory_space<vmem>>, vector<1x1x96x128xf32>
    %196 = vector.shape_cast %195 : vector<1x1x96x128xf32> to vector<96x128xf32>
    %cst_274 = arith.constant dense<0.000000e+00> : vector<24x128xf32>
    %197 = tpu.matmul %194, %196, %cst_274 {dimension_numbers = #tpu.dot_dimension_numbers<[1], [0], [0], [1], [0, 0, 1, 1], [], []>} : vector<24x96xf32>, vector<96x128xf32>, vector<24x128xf32> -> vector<24x128xf32>
    %198 = arith.addf %188, %197 : vector<24x128xf32>
    %c1_275 = arith.constant 1 : index
    %c4_276 = arith.constant 4 : index
    %c0_277 = arith.constant 0 : index
    %c0_278 = arith.constant 0 : index
    %199 = vector.load %arg2[%c1_275, %c4_276, %c0_277, %c0_278] : memref<2x5x96x128xf32, #tpu.memory_space<vmem>>, vector<1x1x96x128xf32>
    %200 = vector.shape_cast %199 : vector<1x1x96x128xf32> to vector<96x128xf32>
    %cst_279 = arith.constant dense<0.000000e+00> : vector<24x128xf32>
    %201 = tpu.matmul %194, %200, %cst_279 {dimension_numbers = #tpu.dot_dimension_numbers<[1], [0], [0], [1], [0, 0, 1, 1], [], []>} : vector<24x96xf32>, vector<96x128xf32>, vector<24x128xf32> -> vector<24x128xf32>
    %202 = arith.addf %192, %201 : vector<24x128xf32>
    %203 = arith.maximumf %150, %154 : vector<24x128xf32>
    %204 = arith.maximumf %198, %202 : vector<24x128xf32>
    %205 = arith.maximumf %203, %204 : vector<24x128xf32>
    %c0_280 = arith.constant 0 : index
    %c0_281 = arith.constant 0 : index
    %206 = vector.load %arg3[%c0_280, %c0_281] : memref<1x128xf32, #tpu.memory_space<vmem>>, vector<1x128xf32>
    %207 = vector.broadcast %206 : vector<1x128xf32> to vector<24x128xf32>
    %208 = arith.addf %205, %207 : vector<24x128xf32>
    %cst_282 = arith.constant 0.000000e+00 : f32
    %209 = vector.broadcast %cst_282 : f32 to vector<24x128xf32>
    %210 = arith.maximumf %208, %209 : vector<24x128xf32>
    %c1_283 = arith.constant 1 : index
    %c0_284 = arith.constant 0 : index
    %c0_285 = arith.constant 0 : index
    %211 = vector.load %arg13[%c1_283, %c0_284, %c0_285] : memref<2x24x128xf32, #tpu.memory_space<vmem>>, vector<1x24x128xf32>
    %212 = vector.shape_cast %211 : vector<1x24x128xf32> to vector<24x128xf32>
    %213 = vector.shape_cast %210 : vector<24x128xf32> to vector<1x24x128xf32>
    tpu.vector_store %arg13[%c1_283, %c0_284, %c0_285], %213 {strides = array<i32>} : memref<2x24x128xf32, #tpu.memory_space<vmem>>, vector<1x24x128xf32>,
    %c0_286 = arith.constant 0 : index
    %c0_287 = arith.constant 0 : index
    %c0_288 = arith.constant 0 : index
    %214 = vector.load %arg13[%c0_286, %c0_287, %c0_288] : memref<2x24x128xf32, #tpu.memory_space<vmem>>, vector<1x16x128xf32>
    %215 = vector.shape_cast %214 : vector<1x16x128xf32> to vector<16x128xf32>
    %c0_289 = arith.constant 0 : index
    %c0_290 = arith.constant 0 : index
    %c0_291 = arith.constant 0 : index
    %c0_292 = arith.constant 0 : index
    %216 = vector.load %arg4[%c0_289, %c0_290, %c0_291, %c0_292] : memref<2x5x128x128xf32, #tpu.memory_space<vmem>>, vector<1x1x128x128xf32>
    %217 = vector.shape_cast %216 : vector<1x1x128x128xf32> to vector<128x128xf32>
    %cst_293 = arith.constant dense<0.000000e+00> : vector<16x128xf32>
    %218 = tpu.matmul %215, %217, %cst_293 {dimension_numbers = #tpu.dot_dimension_numbers<[1], [0], [0], [1], [0, 0, 1, 1], [], []>} : vector<16x128xf32>, vector<128x128xf32>, vector<16x128xf32> -> vector<16x128xf32>
    %c1_294 = arith.constant 1 : index
    %c0_295 = arith.constant 0 : index
    %c0_296 = arith.constant 0 : index
    %c0_297 = arith.constant 0 : index
    %219 = vector.load %arg4[%c1_294, %c0_295, %c0_296, %c0_297] : memref<2x5x128x128xf32, #tpu.memory_space<vmem>>, vector<1x1x128x128xf32>
    %220 = vector.shape_cast %219 : vector<1x1x128x128xf32> to vector<128x128xf32>
    %cst_298 = arith.constant dense<0.000000e+00> : vector<16x128xf32>
    %221 = tpu.matmul %215, %220, %cst_298 {dimension_numbers = #tpu.dot_dimension_numbers<[1], [0], [0], [1], [0, 0, 1, 1], [], []>} : vector<16x128xf32>, vector<128x128xf32>, vector<16x128xf32> -> vector<16x128xf32>
    %c1_299 = arith.constant 1 : index
    %c0_300 = arith.constant 0 : index
    %c0_301 = arith.constant 0 : index
    %222 = vector.load %arg13[%c1_299, %c0_300, %c0_301] : memref<2x24x128xf32, #tpu.memory_space<vmem>>, vector<1x16x128xf32>
    %223 = vector.shape_cast %222 : vector<1x16x128xf32> to vector<16x128xf32>
    %c0_302 = arith.constant 0 : index
    %c1_303 = arith.constant 1 : index
    %c0_304 = arith.constant 0 : index
    %c0_305 = arith.constant 0 : index
    %224 = vector.load %arg4[%c0_302, %c1_303, %c0_304, %c0_305] : memref<2x5x128x128xf32, #tpu.memory_space<vmem>>, vector<1x1x128x128xf32>
    %225 = vector.shape_cast %224 : vector<1x1x128x128xf32> to vector<128x128xf32>
    %cst_306 = arith.constant dense<0.000000e+00> : vector<16x128xf32>
    %226 = tpu.matmul %223, %225, %cst_306 {dimension_numbers = #tpu.dot_dimension_numbers<[1], [0], [0], [1], [0, 0, 1, 1], [], []>} : vector<16x128xf32>, vector<128x128xf32>, vector<16x128xf32> -> vector<16x128xf32>
    %227 = arith.addf %218, %226 : vector<16x128xf32>
    %c1_307 = arith.constant 1 : index
    %c1_308 = arith.constant 1 : index
    %c0_309 = arith.constant 0 : index
    %c0_310 = arith.constant 0 : index
    %228 = vector.load %arg4[%c1_307, %c1_308, %c0_309, %c0_310] : memref<2x5x128x128xf32, #tpu.memory_space<vmem>>, vector<1x1x128x128xf32>
    %229 = vector.shape_cast %228 : vector<1x1x128x128xf32> to vector<128x128xf32>
    %cst_311 = arith.constant dense<0.000000e+00> : vector<16x128xf32>
    %230 = tpu.matmul %223, %229, %cst_311 {dimension_numbers = #tpu.dot_dimension_numbers<[1], [0], [0], [1], [0, 0, 1, 1], [], []>} : vector<16x128xf32>, vector<128x128xf32>, vector<16x128xf32> -> vector<16x128xf32>
    %231 = arith.addf %221, %230 : vector<16x128xf32>
    %c0_312 = arith.constant 0 : index
    %c1_313 = arith.constant 1 : index
    %c0_314 = arith.constant 0 : index
    %232 = vector.load %arg13[%c0_312, %c1_313, %c0_314] : memref<2x24x128xf32, #tpu.memory_space<vmem>>, vector<1x16x128xf32>
    %233 = vector.shape_cast %232 : vector<1x16x128xf32> to vector<16x128xf32>
    %c0_315 = arith.constant 0 : index
    %c2_316 = arith.constant 2 : index
    %c0_317 = arith.constant 0 : index
    %c0_318 = arith.constant 0 : index
    %234 = vector.load %arg4[%c0_315, %c2_316, %c0_317, %c0_318] : memref<2x5x128x128xf32, #tpu.memory_space<vmem>>, vector<1x1x128x128xf32>
    %235 = vector.shape_cast %234 : vector<1x1x128x128xf32> to vector<128x128xf32>
    %cst_319 = arith.constant dense<0.000000e+00> : vector<16x128xf32>
    %236 = tpu.matmul %233, %235, %cst_319 {dimension_numbers = #tpu.dot_dimension_numbers<[1], [0], [0], [1], [0, 0, 1, 1], [], []>} : vector<16x128xf32>, vector<128x128xf32>, vector<16x128xf32> -> vector<16x128xf32>
    %237 = arith.addf %227, %236 : vector<16x128xf32>
    %c1_320 = arith.constant 1 : index
    %c2_321 = arith.constant 2 : index
    %c0_322 = arith.constant 0 : index
    %c0_323 = arith.constant 0 : index
    %238 = vector.load %arg4[%c1_320, %c2_321, %c0_322, %c0_323] : memref<2x5x128x128xf32, #tpu.memory_space<vmem>>, vector<1x1x128x128xf32>
    %239 = vector.shape_cast %238 : vector<1x1x128x128xf32> to vector<128x128xf32>
    %cst_324 = arith.constant dense<0.000000e+00> : vector<16x128xf32>
    %240 = tpu.matmul %233, %239, %cst_324 {dimension_numbers = #tpu.dot_dimension_numbers<[1], [0], [0], [1], [0, 0, 1, 1], [], []>} : vector<16x128xf32>, vector<128x128xf32>, vector<16x128xf32> -> vector<16x128xf32>
    %241 = arith.addf %231, %240 : vector<16x128xf32>
    %c1_325 = arith.constant 1 : index
    %c1_326 = arith.constant 1 : index
    %c0_327 = arith.constant 0 : index
    %242 = vector.load %arg13[%c1_325, %c1_326, %c0_327] : memref<2x24x128xf32, #tpu.memory_space<vmem>>, vector<1x16x128xf32>
    %243 = vector.shape_cast %242 : vector<1x16x128xf32> to vector<16x128xf32>
    %c0_328 = arith.constant 0 : index
    %c3_329 = arith.constant 3 : index
    %c0_330 = arith.constant 0 : index
    %c0_331 = arith.constant 0 : index
    %244 = vector.load %arg4[%c0_328, %c3_329, %c0_330, %c0_331] : memref<2x5x128x128xf32, #tpu.memory_space<vmem>>, vector<1x1x128x128xf32>
    %245 = vector.shape_cast %244 : vector<1x1x128x128xf32> to vector<128x128xf32>
    %cst_332 = arith.constant dense<0.000000e+00> : vector<16x128xf32>
    %246 = tpu.matmul %243, %245, %cst_332 {dimension_numbers = #tpu.dot_dimension_numbers<[1], [0], [0], [1], [0, 0, 1, 1], [], []>} : vector<16x128xf32>, vector<128x128xf32>, vector<16x128xf32> -> vector<16x128xf32>
    %247 = arith.addf %237, %246 : vector<16x128xf32>
    %c1_333 = arith.constant 1 : index
    %c3_334 = arith.constant 3 : index
    %c0_335 = arith.constant 0 : index
    %c0_336 = arith.constant 0 : index
    %248 = vector.load %arg4[%c1_333, %c3_334, %c0_335, %c0_336] : memref<2x5x128x128xf32, #tpu.memory_space<vmem>>, vector<1x1x128x128xf32>
    %249 = vector.shape_cast %248 : vector<1x1x128x128xf32> to vector<128x128xf32>
    %cst_337 = arith.constant dense<0.000000e+00> : vector<16x128xf32>
    %250 = tpu.matmul %243, %249, %cst_337 {dimension_numbers = #tpu.dot_dimension_numbers<[1], [0], [0], [1], [0, 0, 1, 1], [], []>} : vector<16x128xf32>, vector<128x128xf32>, vector<16x128xf32> -> vector<16x128xf32>
    %251 = arith.addf %241, %250 : vector<16x128xf32>
    %c0_338 = arith.constant 0 : index
    %c2_339 = arith.constant 2 : index
    %c0_340 = arith.constant 0 : index
    %252 = vector.load %arg13[%c0_338, %c2_339, %c0_340] : memref<2x24x128xf32, #tpu.memory_space<vmem>>, vector<1x16x128xf32>
    %253 = vector.shape_cast %252 : vector<1x16x128xf32> to vector<16x128xf32>
    %c0_341 = arith.constant 0 : index
    %c4_342 = arith.constant 4 : index
    %c0_343 = arith.constant 0 : index
    %c0_344 = arith.constant 0 : index
    %254 = vector.load %arg4[%c0_341, %c4_342, %c0_343, %c0_344] : memref<2x5x128x128xf32, #tpu.memory_space<vmem>>, vector<1x1x128x128xf32>
    %255 = vector.shape_cast %254 : vector<1x1x128x128xf32> to vector<128x128xf32>
    %cst_345 = arith.constant dense<0.000000e+00> : vector<16x128xf32>
    %256 = tpu.matmul %253, %255, %cst_345 {dimension_numbers = #tpu.dot_dimension_numbers<[1], [0], [0], [1], [0, 0, 1, 1], [], []>} : vector<16x128xf32>, vector<128x128xf32>, vector<16x128xf32> -> vector<16x128xf32>
    %257 = arith.addf %247, %256 : vector<16x128xf32>
    %c1_346 = arith.constant 1 : index
    %c4_347 = arith.constant 4 : index
    %c0_348 = arith.constant 0 : index
    %c0_349 = arith.constant 0 : index
    %258 = vector.load %arg4[%c1_346, %c4_347, %c0_348, %c0_349] : memref<2x5x128x128xf32, #tpu.memory_space<vmem>>, vector<1x1x128x128xf32>
    %259 = vector.shape_cast %258 : vector<1x1x128x128xf32> to vector<128x128xf32>
    %cst_350 = arith.constant dense<0.000000e+00> : vector<16x128xf32>
    %260 = tpu.matmul %253, %259, %cst_350 {dimension_numbers = #tpu.dot_dimension_numbers<[1], [0], [0], [1], [0, 0, 1, 1], [], []>} : vector<16x128xf32>, vector<128x128xf32>, vector<16x128xf32> -> vector<16x128xf32>
    %261 = arith.addf %251, %260 : vector<16x128xf32>
    %c1_351 = arith.constant 1 : index
    %c0_352 = arith.constant 0 : index
    %c0_353 = arith.constant 0 : index
    %262 = vector.load %arg13[%c1_351, %c0_352, %c0_353] : memref<2x24x128xf32, #tpu.memory_space<vmem>>, vector<1x16x128xf32>
    %263 = vector.shape_cast %262 : vector<1x16x128xf32> to vector<16x128xf32>
    %c0_354 = arith.constant 0 : index
    %c0_355 = arith.constant 0 : index
    %c0_356 = arith.constant 0 : index
    %c0_357 = arith.constant 0 : index
    %264 = vector.load %arg4[%c0_354, %c0_355, %c0_356, %c0_357] : memref<2x5x128x128xf32, #tpu.memory_space<vmem>>, vector<1x1x128x128xf32>
    %265 = vector.shape_cast %264 : vector<1x1x128x128xf32> to vector<128x128xf32>
    %cst_358 = arith.constant dense<0.000000e+00> : vector<16x128xf32>
    %266 = tpu.matmul %263, %265, %cst_358 {dimension_numbers = #tpu.dot_dimension_numbers<[1], [0], [0], [1], [0, 0, 1, 1], [], []>} : vector<16x128xf32>, vector<128x128xf32>, vector<16x128xf32> -> vector<16x128xf32>
    %c1_359 = arith.constant 1 : index
    %c0_360 = arith.constant 0 : index
    %c0_361 = arith.constant 0 : index
    %c0_362 = arith.constant 0 : index
    %267 = vector.load %arg4[%c1_359, %c0_360, %c0_361, %c0_362] : memref<2x5x128x128xf32, #tpu.memory_space<vmem>>, vector<1x1x128x128xf32>
    %268 = vector.shape_cast %267 : vector<1x1x128x128xf32> to vector<128x128xf32>
    %cst_363 = arith.constant dense<0.000000e+00> : vector<16x128xf32>
    %269 = tpu.matmul %263, %268, %cst_363 {dimension_numbers = #tpu.dot_dimension_numbers<[1], [0], [0], [1], [0, 0, 1, 1], [], []>} : vector<16x128xf32>, vector<128x128xf32>, vector<16x128xf32> -> vector<16x128xf32>
    %c0_364 = arith.constant 0 : index
    %c1_365 = arith.constant 1 : index
    %c0_366 = arith.constant 0 : index
    %270 = vector.load %arg13[%c0_364, %c1_365, %c0_366] : memref<2x24x128xf32, #tpu.memory_space<vmem>>, vector<1x16x128xf32>
    %271 = vector.shape_cast %270 : vector<1x16x128xf32> to vector<16x128xf32>
    %c0_367 = arith.constant 0 : index
    %c1_368 = arith.constant 1 : index
    %c0_369 = arith.constant 0 : index
    %c0_370 = arith.constant 0 : index
    %272 = vector.load %arg4[%c0_367, %c1_368, %c0_369, %c0_370] : memref<2x5x128x128xf32, #tpu.memory_space<vmem>>, vector<1x1x128x128xf32>
    %273 = vector.shape_cast %272 : vector<1x1x128x128xf32> to vector<128x128xf32>
    %cst_371 = arith.constant dense<0.000000e+00> : vector<16x128xf32>
    %274 = tpu.matmul %271, %273, %cst_371 {dimension_numbers = #tpu.dot_dimension_numbers<[1], [0], [0], [1], [0, 0, 1, 1], [], []>} : vector<16x128xf32>, vector<128x128xf32>, vector<16x128xf32> -> vector<16x128xf32>
    %275 = arith.addf %266, %274 : vector<16x128xf32>
    %c1_372 = arith.constant 1 : index
    %c1_373 = arith.constant 1 : index
    %c0_374 = arith.constant 0 : index
    %c0_375 = arith.constant 0 : index
    %276 = vector.load %arg4[%c1_372, %c1_373, %c0_374, %c0_375] : memref<2x5x128x128xf32, #tpu.memory_space<vmem>>, vector<1x1x128x128xf32>
    %277 = vector.shape_cast %276 : vector<1x1x128x128xf32> to vector<128x128xf32>
    %cst_376 = arith.constant dense<0.000000e+00> : vector<16x128xf32>
    %278 = tpu.matmul %271, %277, %cst_376 {dimension_numbers = #tpu.dot_dimension_numbers<[1], [0], [0], [1], [0, 0, 1, 1], [], []>} : vector<16x128xf32>, vector<128x128xf32>, vector<16x128xf32> -> vector<16x128xf32>
    %279 = arith.addf %269, %278 : vector<16x128xf32>
    %c1_377 = arith.constant 1 : index
    %c1_378 = arith.constant 1 : index
    %c0_379 = arith.constant 0 : index
    %280 = vector.load %arg13[%c1_377, %c1_378, %c0_379] : memref<2x24x128xf32, #tpu.memory_space<vmem>>, vector<1x16x128xf32>
    %281 = vector.shape_cast %280 : vector<1x16x128xf32> to vector<16x128xf32>
    %c0_380 = arith.constant 0 : index
    %c2_381 = arith.constant 2 : index
    %c0_382 = arith.constant 0 : index
    %c0_383 = arith.constant 0 : index
    %282 = vector.load %arg4[%c0_380, %c2_381, %c0_382, %c0_383] : memref<2x5x128x128xf32, #tpu.memory_space<vmem>>, vector<1x1x128x128xf32>
    %283 = vector.shape_cast %282 : vector<1x1x128x128xf32> to vector<128x128xf32>
    %cst_384 = arith.constant dense<0.000000e+00> : vector<16x128xf32>
    %284 = tpu.matmul %281, %283, %cst_384 {dimension_numbers = #tpu.dot_dimension_numbers<[1], [0], [0], [1], [0, 0, 1, 1], [], []>} : vector<16x128xf32>, vector<128x128xf32>, vector<16x128xf32> -> vector<16x128xf32>
    %285 = arith.addf %275, %284 : vector<16x128xf32>
    %c1_385 = arith.constant 1 : index
    %c2_386 = arith.constant 2 : index
    %c0_387 = arith.constant 0 : index
    %c0_388 = arith.constant 0 : index
    %286 = vector.load %arg4[%c1_385, %c2_386, %c0_387, %c0_388] : memref<2x5x128x128xf32, #tpu.memory_space<vmem>>, vector<1x1x128x128xf32>
    %287 = vector.shape_cast %286 : vector<1x1x128x128xf32> to vector<128x128xf32>
    %cst_389 = arith.constant dense<0.000000e+00> : vector<16x128xf32>
    %288 = tpu.matmul %281, %287, %cst_389 {dimension_numbers = #tpu.dot_dimension_numbers<[1], [0], [0], [1], [0, 0, 1, 1], [], []>} : vector<16x128xf32>, vector<128x128xf32>, vector<16x128xf32> -> vector<16x128xf32>
    %289 = arith.addf %279, %288 : vector<16x128xf32>
    %c0_390 = arith.constant 0 : index
    %c2_391 = arith.constant 2 : index
    %c0_392 = arith.constant 0 : index
    %290 = vector.load %arg13[%c0_390, %c2_391, %c0_392] : memref<2x24x128xf32, #tpu.memory_space<vmem>>, vector<1x16x128xf32>
    %291 = vector.shape_cast %290 : vector<1x16x128xf32> to vector<16x128xf32>
    %c0_393 = arith.constant 0 : index
    %c3_394 = arith.constant 3 : index
    %c0_395 = arith.constant 0 : index
    %c0_396 = arith.constant 0 : index
    %292 = vector.load %arg4[%c0_393, %c3_394, %c0_395, %c0_396] : memref<2x5x128x128xf32, #tpu.memory_space<vmem>>, vector<1x1x128x128xf32>
    %293 = vector.shape_cast %292 : vector<1x1x128x128xf32> to vector<128x128xf32>
    %cst_397 = arith.constant dense<0.000000e+00> : vector<16x128xf32>
    %294 = tpu.matmul %291, %293, %cst_397 {dimension_numbers = #tpu.dot_dimension_numbers<[1], [0], [0], [1], [0, 0, 1, 1], [], []>} : vector<16x128xf32>, vector<128x128xf32>, vector<16x128xf32> -> vector<16x128xf32>
    %295 = arith.addf %285, %294 : vector<16x128xf32>
    %c1_398 = arith.constant 1 : index
    %c3_399 = arith.constant 3 : index
    %c0_400 = arith.constant 0 : index
    %c0_401 = arith.constant 0 : index
    %296 = vector.load %arg4[%c1_398, %c3_399, %c0_400, %c0_401] : memref<2x5x128x128xf32, #tpu.memory_space<vmem>>, vector<1x1x128x128xf32>
    %297 = vector.shape_cast %296 : vector<1x1x128x128xf32> to vector<128x128xf32>
    %cst_402 = arith.constant dense<0.000000e+00> : vector<16x128xf32>
    %298 = tpu.matmul %291, %297, %cst_402 {dimension_numbers = #tpu.dot_dimension_numbers<[1], [0], [0], [1], [0, 0, 1, 1], [], []>} : vector<16x128xf32>, vector<128x128xf32>, vector<16x128xf32> -> vector<16x128xf32>
    %299 = arith.addf %289, %298 : vector<16x128xf32>
    %c1_403 = arith.constant 1 : index
    %c2_404 = arith.constant 2 : index
    %c0_405 = arith.constant 0 : index
    %300 = vector.load %arg13[%c1_403, %c2_404, %c0_405] : memref<2x24x128xf32, #tpu.memory_space<vmem>>, vector<1x16x128xf32>
    %301 = vector.shape_cast %300 : vector<1x16x128xf32> to vector<16x128xf32>
    %c0_406 = arith.constant 0 : index
    %c4_407 = arith.constant 4 : index
    %c0_408 = arith.constant 0 : index
    %c0_409 = arith.constant 0 : index
    %302 = vector.load %arg4[%c0_406, %c4_407, %c0_408, %c0_409] : memref<2x5x128x128xf32, #tpu.memory_space<vmem>>, vector<1x1x128x128xf32>
    %303 = vector.shape_cast %302 : vector<1x1x128x128xf32> to vector<128x128xf32>
    %cst_410 = arith.constant dense<0.000000e+00> : vector<16x128xf32>
    %304 = tpu.matmul %301, %303, %cst_410 {dimension_numbers = #tpu.dot_dimension_numbers<[1], [0], [0], [1], [0, 0, 1, 1], [], []>} : vector<16x128xf32>, vector<128x128xf32>, vector<16x128xf32> -> vector<16x128xf32>
    %305 = arith.addf %295, %304 : vector<16x128xf32>
    %c1_411 = arith.constant 1 : index
    %c4_412 = arith.constant 4 : index
    %c0_413 = arith.constant 0 : index
    %c0_414 = arith.constant 0 : index
    %306 = vector.load %arg4[%c1_411, %c4_412, %c0_413, %c0_414] : memref<2x5x128x128xf32, #tpu.memory_space<vmem>>, vector<1x1x128x128xf32>
    %307 = vector.shape_cast %306 : vector<1x1x128x128xf32> to vector<128x128xf32>
    %cst_415 = arith.constant dense<0.000000e+00> : vector<16x128xf32>
    %308 = tpu.matmul %301, %307, %cst_415 {dimension_numbers = #tpu.dot_dimension_numbers<[1], [0], [0], [1], [0, 0, 1, 1], [], []>} : vector<16x128xf32>, vector<128x128xf32>, vector<16x128xf32> -> vector<16x128xf32>
    %309 = arith.addf %299, %308 : vector<16x128xf32>
    %310 = arith.maximumf %257, %261 : vector<16x128xf32>
    %311 = arith.maximumf %305, %309 : vector<16x128xf32>
    %312 = arith.maximumf %310, %311 : vector<16x128xf32>
    %c0_416 = arith.constant 0 : index
    %c0_417 = arith.constant 0 : index
    %313 = vector.load %arg5[%c0_416, %c0_417] : memref<1x128xf32, #tpu.memory_space<vmem>>, vector<1x128xf32>
    %314 = vector.broadcast %313 : vector<1x128xf32> to vector<16x128xf32>
    %315 = arith.addf %312, %314 : vector<16x128xf32>
    %cst_418 = arith.constant 0.000000e+00 : f32
    %316 = vector.broadcast %cst_418 : f32 to vector<16x128xf32>
    %317 = arith.maximumf %315, %316 : vector<16x128xf32>
    %c0_419 = arith.constant 0 : index
    %c0_420 = arith.constant 0 : index
    %318 = vector.load %arg14[%c0_419, %c0_420] : memref<16x128xf32, #tpu.memory_space<vmem>>, vector<16x128xf32>
    tpu.vector_store %arg14[%c0_419, %c0_420], %317 {strides = array<i32>} : memref<16x128xf32, #tpu.memory_space<vmem>>, vector<16x128xf32>,
    %c0_421 = arith.constant 0 : index
    %c0_422 = arith.constant 0 : index
    %319 = vector.load %arg14[%c0_421, %c0_422] : memref<16x128xf32, #tpu.memory_space<vmem>>, vector<8x128xf32>
    %c0_423 = arith.constant 0 : index
    %c0_424 = arith.constant 0 : index
    %c0_425 = arith.constant 0 : index
    %320 = vector.load %arg6[%c0_423, %c0_424, %c0_425] : memref<5x128x128xf32, #tpu.memory_space<vmem>>, vector<1x128x128xf32>
    %321 = vector.shape_cast %320 : vector<1x128x128xf32> to vector<128x128xf32>
    %cst_426 = arith.constant dense<0.000000e+00> : vector<8x128xf32>
    %322 = tpu.matmul %319, %321, %cst_426 {dimension_numbers = #tpu.dot_dimension_numbers<[1], [0], [0], [1], [0, 0, 1, 1], [], []>} : vector<8x128xf32>, vector<128x128xf32>, vector<8x128xf32> -> vector<8x128xf32>
    %c1_427 = arith.constant 1 : index
    %c0_428 = arith.constant 0 : index
    %323 = vector.load %arg14[%c1_427, %c0_428] : memref<16x128xf32, #tpu.memory_space<vmem>>, vector<8x128xf32>
    %c1_429 = arith.constant 1 : index
    %c0_430 = arith.constant 0 : index
    %c0_431 = arith.constant 0 : index
    %324 = vector.load %arg6[%c1_429, %c0_430, %c0_431] : memref<5x128x128xf32, #tpu.memory_space<vmem>>, vector<1x128x128xf32>
    %325 = vector.shape_cast %324 : vector<1x128x128xf32> to vector<128x128xf32>
    %cst_432 = arith.constant dense<0.000000e+00> : vector<8x128xf32>
    %326 = tpu.matmul %323, %325, %cst_432 {dimension_numbers = #tpu.dot_dimension_numbers<[1], [0], [0], [1], [0, 0, 1, 1], [], []>} : vector<8x128xf32>, vector<128x128xf32>, vector<8x128xf32> -> vector<8x128xf32>
    %327 = arith.addf %322, %326 : vector<8x128xf32>
    %c2_433 = arith.constant 2 : index
    %c0_434 = arith.constant 0 : index
    %328 = vector.load %arg14[%c2_433, %c0_434] : memref<16x128xf32, #tpu.memory_space<vmem>>, vector<8x128xf32>
    %c2_435 = arith.constant 2 : index
    %c0_436 = arith.constant 0 : index
    %c0_437 = arith.constant 0 : index
    %329 = vector.load %arg6[%c2_435, %c0_436, %c0_437] : memref<5x128x128xf32, #tpu.memory_space<vmem>>, vector<1x128x128xf32>
    %330 = vector.shape_cast %329 : vector<1x128x128xf32> to vector<128x128xf32>
    %cst_438 = arith.constant dense<0.000000e+00> : vector<8x128xf32>
    %331 = tpu.matmul %328, %330, %cst_438 {dimension_numbers = #tpu.dot_dimension_numbers<[1], [0], [0], [1], [0, 0, 1, 1], [], []>} : vector<8x128xf32>, vector<128x128xf32>, vector<8x128xf32> -> vector<8x128xf32>
    %332 = arith.addf %327, %331 : vector<8x128xf32>
    %c3_439 = arith.constant 3 : index
    %c0_440 = arith.constant 0 : index
    %333 = vector.load %arg14[%c3_439, %c0_440] : memref<16x128xf32, #tpu.memory_space<vmem>>, vector<8x128xf32>
    %c3_441 = arith.constant 3 : index
    %c0_442 = arith.constant 0 : index
    %c0_443 = arith.constant 0 : index
    %334 = vector.load %arg6[%c3_441, %c0_442, %c0_443] : memref<5x128x128xf32, #tpu.memory_space<vmem>>, vector<1x128x128xf32>
    %335 = vector.shape_cast %334 : vector<1x128x128xf32> to vector<128x128xf32>
    %cst_444 = arith.constant dense<0.000000e+00> : vector<8x128xf32>
    %336 = tpu.matmul %333, %335, %cst_444 {dimension_numbers = #tpu.dot_dimension_numbers<[1], [0], [0], [1], [0, 0, 1, 1], [], []>} : vector<8x128xf32>, vector<128x128xf32>, vector<8x128xf32> -> vector<8x128xf32>
    %337 = arith.addf %332, %336 : vector<8x128xf32>
    %c4_445 = arith.constant 4 : index
    %c0_446 = arith.constant 0 : index
    %338 = vector.load %arg14[%c4_445, %c0_446] : memref<16x128xf32, #tpu.memory_space<vmem>>, vector<8x128xf32>
    %c4_447 = arith.constant 4 : index
    %c0_448 = arith.constant 0 : index
    %c0_449 = arith.constant 0 : index
    %339 = vector.load %arg6[%c4_447, %c0_448, %c0_449] : memref<5x128x128xf32, #tpu.memory_space<vmem>>, vector<1x128x128xf32>
    %340 = vector.shape_cast %339 : vector<1x128x128xf32> to vector<128x128xf32>
    %cst_450 = arith.constant dense<0.000000e+00> : vector<8x128xf32>
    %341 = tpu.matmul %338, %340, %cst_450 {dimension_numbers = #tpu.dot_dimension_numbers<[1], [0], [0], [1], [0, 0, 1, 1], [], []>} : vector<8x128xf32>, vector<128x128xf32>, vector<8x128xf32> -> vector<8x128xf32>
    %342 = arith.addf %337, %341 : vector<8x128xf32>
    %c0_451 = arith.constant 0 : index
    %c0_452 = arith.constant 0 : index
    %343 = vector.load %arg7[%c0_451, %c0_452] : memref<1x128xf32, #tpu.memory_space<vmem>>, vector<1x128xf32>
    %344 = vector.broadcast %343 : vector<1x128xf32> to vector<8x128xf32>
    %345 = arith.addf %342, %344 : vector<8x128xf32>
    %cst_453 = arith.constant 0.000000e+00 : f32
    %346 = vector.broadcast %cst_453 : f32 to vector<8x128xf32>
    %347 = arith.maximumf %345, %346 : vector<8x128xf32>
    %c0_454 = arith.constant 0 : index
    %c0_455 = arith.constant 0 : index
    %348 = vector.load %arg8[%c0_454, %c0_455] : memref<128x128xf32, #tpu.memory_space<vmem>>, vector<128x128xf32>
    %cst_456 = arith.constant dense<0.000000e+00> : vector<8x128xf32>
    %349 = tpu.matmul %347, %348, %cst_456 {dimension_numbers = #tpu.dot_dimension_numbers<[1], [0], [0], [1], [0, 0, 1, 1], [], []>} : vector<8x128xf32>, vector<128x128xf32>, vector<8x128xf32> -> vector<8x128xf32>
    %c0_457 = arith.constant 0 : index
    %c0_458 = arith.constant 0 : index
    %350 = vector.load %arg9[%c0_457, %c0_458] : memref<1x128xf32, #tpu.memory_space<vmem>>, vector<1x128xf32>
    %351 = vector.broadcast %350 : vector<1x128xf32> to vector<8x128xf32>
    %352 = arith.addf %349, %351 : vector<8x128xf32>
    %cst_459 = arith.constant 0.000000e+00 : f32
    %353 = vector.broadcast %cst_459 : f32 to vector<8x128xf32>
    %354 = arith.maximumf %352, %353 : vector<8x128xf32>
    %c0_460 = arith.constant 0 : index
    %c0_461 = arith.constant 0 : index
    %355 = vector.load %arg10[%c0_460, %c0_461] : memref<128x128xf32, #tpu.memory_space<vmem>>, vector<128x128xf32>
    %cst_462 = arith.constant dense<0.000000e+00> : vector<8x128xf32>
    %356 = tpu.matmul %354, %355, %cst_462 {dimension_numbers = #tpu.dot_dimension_numbers<[1], [0], [0], [1], [0, 0, 1, 1], [], []>} : vector<8x128xf32>, vector<128x128xf32>, vector<8x128xf32> -> vector<8x128xf32>
    %c0_463 = arith.constant 0 : index
    %c0_464 = arith.constant 0 : index
    %357 = vector.load %arg11[%c0_463, %c0_464] : memref<1x128xf32, #tpu.memory_space<vmem>>, vector<1x128xf32>
    %358 = vector.broadcast %357 : vector<1x128xf32> to vector<8x128xf32>
    %359 = arith.addf %356, %358 : vector<8x128xf32>
    %c0_465 = arith.constant 0 : index
    %c0_466 = arith.constant 0 : index
    %360 = vector.load %arg12[%c0_465, %c0_466] : memref<8x128xf32, #tpu.memory_space<vmem>>, vector<8x128xf32>
    tpu.vector_store %arg12[%c0_465, %c0_466], %359 {strides = array<i32>} : memref<8x128xf32, #tpu.memory_space<vmem>>, vector<8x128xf32>,
    return
  }
  func.func @transform_0(%arg0: i32) -> (i32, i32, i32, i32) {
    %c0_i32 = arith.constant 0 : i32
    %c0_i32_0 = arith.constant 0 : i32
    %c0_i32_1 = arith.constant 0 : i32
    %c0_i32_2 = arith.constant 0 : i32
    return %c0_i32, %arg0, %c0_i32_0, %c0_i32_1 : i32, i32, i32, i32
  }
  func.func @transform_1(%arg0: i32) -> (i32, i32, i32, i32) {
    %c0_i32 = arith.constant 0 : i32
    %c0_i32_0 = arith.constant 0 : i32
    %c0_i32_1 = arith.constant 0 : i32
    %c0_i32_2 = arith.constant 0 : i32
    %c0_i32_3 = arith.constant 0 : i32
    return %c0_i32, %c0_i32_0, %c0_i32_1, %c0_i32_2 : i32, i32, i32, i32
  }
  func.func @transform_2(%arg0: i32) -> (i32, i32) {
    %c0_i32 = arith.constant 0 : i32
    %c0_i32_0 = arith.constant 0 : i32
    %c0_i32_1 = arith.constant 0 : i32
    return %c0_i32, %c0_i32_0 : i32, i32
  }
  func.func @transform_3(%arg0: i32) -> (i32, i32, i32, i32) {
    %c0_i32 = arith.constant 0 : i32
    %c0_i32_0 = arith.constant 0 : i32
    %c0_i32_1 = arith.constant 0 : i32
    %c0_i32_2 = arith.constant 0 : i32
    %c0_i32_3 = arith.constant 0 : i32
    return %c0_i32, %c0_i32_0, %c0_i32_1, %c0_i32_2 : i32, i32, i32, i32
  }
  func.func @transform_4(%arg0: i32) -> (i32, i32) {
    %c0_i32 = arith.constant 0 : i32
    %c0_i32_0 = arith.constant 0 : i32
    %c0_i32_1 = arith.constant 0 : i32
    return %c0_i32, %c0_i32_0 : i32, i32
  }
  func.func @transform_5(%arg0: i32) -> (i32, i32, i32) {
    %c0_i32 = arith.constant 0 : i32
    %c0_i32_0 = arith.constant 0 : i32
    %c0_i32_1 = arith.constant 0 : i32
    %c0_i32_2 = arith.constant 0 : i32
    return %c0_i32, %c0_i32_0, %c0_i32_1 : i32, i32, i32
  }
  func.func @transform_6(%arg0: i32) -> (i32, i32) {
    %c0_i32 = arith.constant 0 : i32
    %c0_i32_0 = arith.constant 0 : i32
    %c0_i32_1 = arith.constant 0 : i32
    return %c0_i32, %c0_i32_0 : i32, i32
  }
  func.func @transform_7(%arg0: i32) -> (i32, i32) {
    %c0_i32 = arith.constant 0 : i32
    %c0_i32_0 = arith.constant 0 : i32
    %c0_i32_1 = arith.constant 0 : i32
    return %c0_i32, %c0_i32_0 : i32, i32
  }
  func.func @transform_8(%arg0: i32) -> (i32, i32) {
    %c0_i32 = arith.constant 0 : i32
    %c0_i32_0 = arith.constant 0 : i32
    %c0_i32_1 = arith.constant 0 : i32
    return %c0_i32, %c0_i32_0 : i32, i32
  }
  func.func @transform_9(%arg0: i32) -> (i32, i32) {
    %c0_i32 = arith.constant 0 : i32
    %c0_i32_0 = arith.constant 0 : i32
    %c0_i32_1 = arith.constant 0 : i32
    return %c0_i32, %c0_i32_0 : i32, i32
  }
  func.func @transform_10(%arg0: i32) -> (i32, i32) {
    %c0_i32 = arith.constant 0 : i32
    %c0_i32_0 = arith.constant 0 : i32
    %c0_i32_1 = arith.constant 0 : i32
    return %c0_i32, %c0_i32_0 : i32, i32
  }
  func.func @transform_11(%arg0: i32) -> (i32, i32) {
    %c0_i32 = arith.constant 0 : i32
    %c0_i32_0 = arith.constant 0 : i32
    return %arg0, %c0_i32 : i32, i32
  }
}

</mosaic_0001>

<llo_original>
// kernel: net_forward.1
$region0: #{net_forward.1}
  #allocation0 [shape = 'u32[]', space=smem, size = 0x4, offset = 0x4, fixed_abs, tag = 'smem constant byte address 0x4 - core index']
  #allocation1 [shape = 'u32[72,128]{1,0:T(1,128)}', space=vmem, size = 0x9000, scoped, tag = 'internal scratch']
  #allocation2 [shape = 'f32[2,24,128]{2,1,0:T(8,128)}', space=vmem, size = 0x6000, scoped, tag = 'scratch operand']
  #allocation3 [shape = 'f32[16,128]{1,0:T(8,128)}', space=vmem, size = 0x2000, scoped, tag = 'scratch operand']
  %s0 = inlined_call_operand.vmem [shape: f32[4,2,32,96], index: 0, kind: input, shape index: {}]
  %s1 = inlined_call_operand.vmem [shape: f32[2,5,96,128], index: 1, kind: input, shape index: {}]
  %s2 = inlined_call_operand.vmem [shape: f32[1,128], index: 2, kind: input, shape index: {}]
  %s3 = inlined_call_operand.vmem [shape: f32[2,5,128,128], index: 3, kind: input, shape index: {}]
  %s4 = inlined_call_operand.vmem [shape: f32[1,128], index: 4, kind: input, shape index: {}]
  %s5 = inlined_call_operand.vmem [shape: f32[5,128,128], index: 5, kind: input, shape index: {}]
  %s6 = inlined_call_operand.vmem [shape: f32[1,128], index: 6, kind: input, shape index: {}]
  %s7 = inlined_call_operand.vmem [shape: f32[128,128], index: 7, kind: input, shape index: {}]
  %s8 = inlined_call_operand.vmem [shape: f32[1,128], index: 8, kind: input, shape index: {}]
  %s9 = inlined_call_operand.vmem [shape: f32[128,128], index: 9, kind: input, shape index: {}]
  %s10 = inlined_call_operand.vmem [shape: f32[1,128], index: 10, kind: input, shape index: {}]
  %s11 = inlined_call_operand.vmem [shape: f32[16,128], index: 11, kind: output, shape index: {}]
  %s12 = sld [smem:[#allocation0]]
  $region115: #{net_forward.1} parent=0
    _
  %s14 = ssub.s32 1, %s12
  %s15 = scalar_select 0, %s14, %s12
  $region1: #{net_forward.1} parent=0
    #allocation4 [shape = 'u8[131072]{0}', space=vmem, size = 0x20000, scoped, tag = 'input window, operand 0']
    loop: start=0, step=1, limit=4
    $region2: #{net_forward.1} parent=1 // loop_pre_header
      _
    $region3: #{net_forward.1} parent=1 // loop_header
      %s17 = sphi 0, %s21
      %p18 = scmp.ge.s32.totalorder %s17, 4
      %s27 = sphi 0, %s29
      %s30 = sphi 0, %s27
      %s31 = sphi 0, %s30
      %s47 = sphi 0, %s31
      %s51 = sphi 0, %s51
      %s53 = sphi 0, %s51
      %s54 = sphi 0, %s53
      %s68 = sphi 0, %s54
      %s72 = sphi 0, %s72
      %s74 = sphi 0, %s72
      %s75 = sphi 0, %s74
      %s89 = sphi 0, %s75
      %s93 = sphi 0, %s93
      %s95 = sphi 0, %s93
      %s96 = sphi 0, %s95
      %s110 = sphi 0, %s96
      %s114 = sphi 0, %s114
      %s116 = sphi 0, %s114
      %s117 = sphi 0, %s116
      %s131 = sphi 0, %s117
      %s135 = sphi 0, %s135
      %s137 = sphi 0, %s135
      %s138 = sphi 0, %s137
      %s152 = sphi 0, %s138
      %s156 = sphi 0, %s156
      %s158 = sphi 0, %s156
      %s159 = sphi 0, %s158
      %s173 = sphi 0, %s159
      %s177 = sphi 0, %s177
      %s179 = sphi 0, %s177
      %s180 = sphi 0, %s179
      %s194 = sphi 0, %s180
      %s198 = sphi 0, %s198
      %s200 = sphi 0, %s198
      %s201 = sphi 0, %s200
      %s215 = sphi 0, %s201
      %s219 = sphi 0, %s219
      %s221 = sphi 0, %s219
      %s222 = sphi 0, %s221
      %s236 = sphi 0, %s222
      %s240 = sphi 0, %s240
      %s242 = sphi 0, %s240
      %s243 = sphi 0, %s242
      %s257 = sphi 0, %s243
      %s263 = sphi 0, %s265
      %s266 = sphi 0, %s263
      %s267 = sphi 0, %s266
      %s283 = sphi 0, %s267
    $region4: #{net_forward.1} parent=1 // loop_header_branch
      %20 = sbr.rel (%p18) target = $region8
    $region5: #{net_forward.1} parent=1 // loop_body
      %s22 = ssub.s32 %s17, 1
      %s23 = ssub.s32 %s17, 2
      %s24 = sadd.s32 %s17, 1
      %s25 = ssub.s32 %s17, %s24
      %p26 = scmp.eq.s32.totalorder %s25, 0
      %s28 = sadd.s32 %s27, 1
      %s29 = scalar_select %p26, %s27, %s28
      %p32 = pneg %p26
      %p33 = scmp.eq.s32.totalorder %s17, 1
      %p34 = por %p32, %p33
      %p35 = scmp.ne.s32.totalorder %s27, %s30
      %p36 = scmp.eq.s32.totalorder %s17, 0
      %p37 = por %p35, %p36
      %p38 = scmp.ne.s32.totalorder %s27, %s30
      %p39 = scmp.eq.s32.totalorder %s22, 1
      %p40 = por %p38, %p39
      %p41 = scmp.ne.s32.totalorder %s30, %s31
      %p42 = scmp.eq.s32.totalorder %s22, 0
      %p43 = por %p41, %p42
      %p44 = scmp.ne.s32.totalorder %s30, %s31
      %p45 = scmp.eq.s32.totalorder %s23, 1
      %p46 = por %p44, %p45
      %p48 = scmp.ne.s32.totalorder %s31, %s47
      %p49 = scmp.eq.s32.totalorder %s23, 0
      %p50 = por %p48, %p49
      %s52 = sadd.s32 %s51, 1
      %p55 = scmp.eq.s32.totalorder %s17, 1
      %p56 = scmp.ne.s32.totalorder %s51, %s53
      %p57 = scmp.eq.s32.totalorder %s17, 0
      %p58 = por %p56, %p57
      %p59 = scmp.ne.s32.totalorder %s51, %s53
      %p60 = scmp.eq.s32.totalorder %s22, 1
      %p61 = por %p59, %p60
      %p62 = scmp.ne.s32.totalorder %s53, %s54
      %p63 = scmp.eq.s32.totalorder %s22, 0
      %p64 = por %p62, %p63
      %p65 = scmp.ne.s32.totalorder %s53, %s54
      %p66 = scmp.eq.s32.totalorder %s23, 1
      %p67 = por %p65, %p66
      %p69 = scmp.ne.s32.totalorder %s54, %s68
      %p70 = scmp.eq.s32.totalorder %s23, 0
      %p71 = por %p69, %p70
      %s73 = sadd.s32 %s72, 1
      %p76 = scmp.eq.s32.totalorder %s17, 1
      %p77 = scmp.ne.s32.totalorder %s72, %s74
      %p78 = scmp.eq.s32.totalorder %s17, 0
      %p79 = por %p77, %p78
      %p80 = scmp.ne.s32.totalorder %s72, %s74
      %p81 = scmp.eq.s32.totalorder %s22, 1
      %p82 = por %p80, %p81
      %p83 = scmp.ne.s32.totalorder %s74, %s75
      %p84 = scmp.eq.s32.totalorder %s22, 0
      %p85 = por %p83, %p84
      %p86 = scmp.ne.s32.totalorder %s74, %s75
      %p87 = scmp.eq.s32.totalorder %s23, 1
      %p88 = por %p86, %p87
      %p90 = scmp.ne.s32.totalorder %s75, %s89
      %p91 = scmp.eq.s32.totalorder %s23, 0
      %p92 = por %p90, %p91
      %s94 = sadd.s32 %s93, 1
      %p97 = scmp.eq.s32.totalorder %s17, 1
      %p98 = scmp.ne.s32.totalorder %s93, %s95
      %p99 = scmp.eq.s32.totalorder %s17, 0
      %p100 = por %p98, %p99
      %p101 = scmp.ne.s32.totalorder %s93, %s95
      %p102 = scmp.eq.s32.totalorder %s22, 1
      %p103 = por %p101, %p102
      %p104 = scmp.ne.s32.totalorder %s95, %s96
      %p105 = scmp.eq.s32.totalorder %s22, 0
      %p106 = por %p104, %p105
      %p107 = scmp.ne.s32.totalorder %s95, %s96
      %p108 = scmp.eq.s32.totalorder %s23, 1
      %p109 = por %p107, %p108
      %p111 = scmp.ne.s32.totalorder %s96, %s110
      %p112 = scmp.eq.s32.totalorder %s23, 0
      %p113 = por %p111, %p112
      %s115 = sadd.s32 %s114, 1
      %p118 = scmp.eq.s32.totalorder %s17, 1
      %p119 = scmp.ne.s32.totalorder %s114, %s116
      %p120 = scmp.eq.s32.totalorder %s17, 0
      %p121 = por %p119, %p120
      %p122 = scmp.ne.s32.totalorder %s114, %s116
      %p123 = scmp.eq.s32.totalorder %s22, 1
      %p124 = por %p122, %p123
      %p125 = scmp.ne.s32.totalorder %s116, %s117
      %p126 = scmp.eq.s32.totalorder %s22, 0
      %p127 = por %p125, %p126
      %p128 = scmp.ne.s32.totalorder %s116, %s117
      %p129 = scmp.eq.s32.totalorder %s23, 1
      %p130 = por %p128, %p129
      %p132 = scmp.ne.s32.totalorder %s117, %s131
      %p133 = scmp.eq.s32.totalorder %s23, 0
      %p134 = por %p132, %p133
      %s136 = sadd.s32 %s135, 1
      %p139 = scmp.eq.s32.totalorder %s17, 1
      %p140 = scmp.ne.s32.totalorder %s135, %s137
      %p141 = scmp.eq.s32.totalorder %s17, 0
      %p142 = por %p140, %p141
      %p143 = scmp.ne.s32.totalorder %s135, %s137
      %p144 = scmp.eq.s32.totalorder %s22, 1
      %p145 = por %p143, %p144
      %p146 = scmp.ne.s32.totalorder %s137, %s138
      %p147 = scmp.eq.s32.totalorder %s22, 0
      %p148 = por %p146, %p147
      %p149 = scmp.ne.s32.totalorder %s137, %s138
      %p150 = scmp.eq.s32.totalorder %s23, 1
      %p151 = por %p149, %p150
      %p153 = scmp.ne.s32.totalorder %s138, %s152
      %p154 = scmp.eq.s32.totalorder %s23, 0
      %p155 = por %p153, %p154
      %s157 = sadd.s32 %s156, 1
      %p160 = scmp.eq.s32.totalorder %s17, 1
      %p161 = scmp.ne.s32.totalorder %s156, %s158
      %p162 = scmp.eq.s32.totalorder %s17, 0
      %p163 = por %p161, %p162
      %p164 = scmp.ne.s32.totalorder %s156, %s158
      %p165 = scmp.eq.s32.totalorder %s22, 1
      %p166 = por %p164, %p165
      %p167 = scmp.ne.s32.totalorder %s158, %s159
      %p168 = scmp.eq.s32.totalorder %s22, 0
      %p169 = por %p167, %p168
      %p170 = scmp.ne.s32.totalorder %s158, %s159
      %p171 = scmp.eq.s32.totalorder %s23, 1
      %p172 = por %p170, %p171
      %p174 = scmp.ne.s32.totalorder %s159, %s173
      %p175 = scmp.eq.s32.totalorder %s23, 0
      %p176 = por %p174, %p175
      %s178 = sadd.s32 %s177, 1
      %p181 = scmp.eq.s32.totalorder %s17, 1
      %p182 = scmp.ne.s32.totalorder %s177, %s179
      %p183 = scmp.eq.s32.totalorder %s17, 0
      %p184 = por %p182, %p183
      %p185 = scmp.ne.s32.totalorder %s177, %s179
      %p186 = scmp.eq.s32.totalorder %s22, 1
      %p187 = por %p185, %p186
      %p188 = scmp.ne.s32.totalorder %s179, %s180
      %p189 = scmp.eq.s32.totalorder %s22, 0
      %p190 = por %p188, %p189
      %p191 = scmp.ne.s32.totalorder %s179, %s180
      %p192 = scmp.eq.s32.totalorder %s23, 1
      %p193 = por %p191, %p192
      %p195 = scmp.ne.s32.totalorder %s180, %s194
      %p196 = scmp.eq.s32.totalorder %s23, 0
      %p197 = por %p195, %p196
      %s199 = sadd.s32 %s198, 1
      %p202 = scmp.eq.s32.totalorder %s17, 1
      %p203 = scmp.ne.s32.totalorder %s198, %s200
      %p204 = scmp.eq.s32.totalorder %s17, 0
      %p205 = por %p203, %p204
      %p206 = scmp.ne.s32.totalorder %s198, %s200
      %p207 = scmp.eq.s32.totalorder %s22, 1
      %p208 = por %p206, %p207
      %p209 = scmp.ne.s32.totalorder %s200, %s201
      %p210 = scmp.eq.s32.totalorder %s22, 0
      %p211 = por %p209, %p210
      %p212 = scmp.ne.s32.totalorder %s200, %s201
      %p213 = scmp.eq.s32.totalorder %s23, 1
      %p214 = por %p212, %p213
      %p216 = scmp.ne.s32.totalorder %s201, %s215
      %p217 = scmp.eq.s32.totalorder %s23, 0
      %p218 = por %p216, %p217
      %s220 = sadd.s32 %s219, 1
      %p223 = scmp.eq.s32.totalorder %s17, 1
      %p224 = scmp.ne.s32.totalorder %s219, %s221
      %p225 = scmp.eq.s32.totalorder %s17, 0
      %p226 = por %p224, %p225
      %p227 = scmp.ne.s32.totalorder %s219, %s221
      %p228 = scmp.eq.s32.totalorder %s22, 1
      %p229 = por %p227, %p228
      %p230 = scmp.ne.s32.totalorder %s221, %s222
      %p231 = scmp.eq.s32.totalorder %s22, 0
      %p232 = por %p230, %p231
      %p233 = scmp.ne.s32.totalorder %s221, %s222
      %p234 = scmp.eq.s32.totalorder %s23, 1
      %p235 = por %p233, %p234
      %p237 = scmp.ne.s32.totalorder %s222, %s236
      %p238 = scmp.eq.s32.totalorder %s23, 0
      %p239 = por %p237, %p238
      %s241 = sadd.s32 %s240, 1
      %p244 = scmp.eq.s32.totalorder %s17, 1
      %p245 = scmp.ne.s32.totalorder %s240, %s242
      %p246 = scmp.eq.s32.totalorder %s17, 0
      %p247 = por %p245, %p246
      %p248 = scmp.ne.s32.totalorder %s240, %s242
      %p249 = scmp.eq.s32.totalorder %s22, 1
      %p250 = por %p248, %p249
      %p251 = scmp.ne.s32.totalorder %s242, %s243
      %p252 = scmp.eq.s32.totalorder %s22, 0
      %p253 = por %p251, %p252
      %p254 = scmp.ne.s32.totalorder %s242, %s243
      %p255 = scmp.eq.s32.totalorder %s23, 1
      %p256 = por %p254, %p255
      %p258 = scmp.ne.s32.totalorder %s243, %s257
      %p259 = scmp.eq.s32.totalorder %s23, 0
      %p260 = por %p258, %p259
      %s261 = ssub.s32 %s17, %s24
      %p262 = scmp.eq.s32.totalorder %s261, 0
      %s264 = sadd.s32 %s263, 1
      %s265 = scalar_select %p262, %s263, %s264
      %p268 = pneg %p262
      %p269 = scmp.eq.s32.totalorder %s17, 1
      %p270 = por %p268, %p269
      %p271 = scmp.ne.s32.totalorder %s263, %s266
      %p272 = scmp.eq.s32.totalorder %s17, 0
      %p273 = por %p271, %p272
      %p274 = scmp.ne.s32.totalorder %s263, %s266
      %p275 = scmp.eq.s32.totalorder %s22, 1
      %p276 = por %p274, %p275
      %p277 = scmp.ne.s32.totalorder %s266, %s267
      %p278 = scmp.eq.s32.totalorder %s22, 0
      %p279 = por %p277, %p278
      %p280 = scmp.ne.s32.totalorder %s266, %s267
      %p281 = scmp.eq.s32.totalorder %s23, 1
      %p282 = por %p280, %p281
      %p284 = scmp.ne.s32.totalorder %s267, %s283
      %p285 = scmp.eq.s32.totalorder %s23, 0
      %p286 = por %p284, %p285
      %p287 = scmp.le.s32.totalorder 1, %s17
      %p288 = scmp.lt.s32.totalorder %s17, 3
      %p289 = pnand %p287, %p288
      %p290 = pneg %p289
      // Predicated region
      $region9: #{net_forward.1} parent=5 // pred_check
        _
      $region10: #{net_forward.1} parent=5 // pred_check_branch
        %292 = sbr.rel (%p289) target = $region12
      $region11: #{net_forward.1} parent=5 // pred_region
        %s293 = ssub.s32 %s17, 1
        // Predicated region
        $region13: #{net_forward.1} parent=11 // pred_check
          %p294 = pneg %p64
        $region14: #{net_forward.1} parent=11 // pred_check_branch
          %296 = sbr.rel (%p294) target = $region16
        $region15: #{net_forward.1} parent=11 // pred_region
          _
        $region16: #{net_forward.1} parent=11 // pred_fallthru
          _
        // Predicated region
        $region17: #{net_forward.1} parent=11 // pred_check
          %p297 = pneg %p85
        $region18: #{net_forward.1} parent=11 // pred_check_branch
          %299 = sbr.rel (%p297) target = $region20
        $region19: #{net_forward.1} parent=11 // pred_region
          _
        $region20: #{net_forward.1} parent=11 // pred_fallthru
          _
        // Predicated region
        $region21: #{net_forward.1} parent=11 // pred_check
          %p300 = pneg %p106
        $region22: #{net_forward.1} parent=11 // pred_check_branch
          %302 = sbr.rel (%p300) target = $region24
        $region23: #{net_forward.1} parent=11 // pred_region
          _
        $region24: #{net_forward.1} parent=11 // pred_fallthru
          _
        // Predicated region
        $region25: #{net_forward.1} parent=11 // pred_check
          %p303 = pneg %p127
        $region26: #{net_forward.1} parent=11 // pred_check_branch
          %305 = sbr.rel (%p303) target = $region28
        $region27: #{net_forward.1} parent=11 // pred_region
          _
        $region28: #{net_forward.1} parent=11 // pred_fallthru
          _
        // Predicated region
        $region29: #{net_forward.1} parent=11 // pred_check
          %p306 = pneg %p148
        $region30: #{net_forward.1} parent=11 // pred_check_branch
          %308 = sbr.rel (%p306) target = $region32
        $region31: #{net_forward.1} parent=11 // pred_region
          _
        $region32: #{net_forward.1} parent=11 // pred_fallthru
          _
        // Predicated region
        $region33: #{net_forward.1} parent=11 // pred_check
          %p309 = pneg %p169
        $region34: #{net_forward.1} parent=11 // pred_check_branch
          %311 = sbr.rel (%p309) target = $region36
        $region35: #{net_forward.1} parent=11 // pred_region
          _
        $region36: #{net_forward.1} parent=11 // pred_fallthru
          _
        // Predicated region
        $region37: #{net_forward.1} parent=11 // pred_check
          %p312 = pneg %p190
        $region38: #{net_forward.1} parent=11 // pred_check_branch
          %314 = sbr.rel (%p312) target = $region40
        $region39: #{net_forward.1} parent=11 // pred_region
          _
        $region40: #{net_forward.1} parent=11 // pred_fallthru
          _
        // Predicated region
        $region41: #{net_forward.1} parent=11 // pred_check
          %p315 = pneg %p211
        $region42: #{net_forward.1} parent=11 // pred_check_branch
          %317 = sbr.rel (%p315) target = $region44
        $region43: #{net_forward.1} parent=11 // pred_region
          _
        $region44: #{net_forward.1} parent=11 // pred_fallthru
          _
        // Predicated region
        $region45: #{net_forward.1} parent=11 // pred_check
          %p318 = pneg %p232
        $region46: #{net_forward.1} parent=11 // pred_check_branch
          %320 = sbr.rel (%p318) target = $region48
        $region47: #{net_forward.1} parent=11 // pred_region
          _
        $region48: #{net_forward.1} parent=11 // pred_fallthru
          _
        // Predicated region
        $region49: #{net_forward.1} parent=11 // pred_check
          %p321 = pneg %p253
        $region50: #{net_forward.1} parent=11 // pred_check_branch
          %323 = sbr.rel (%p321) target = $region52
        $region51: #{net_forward.1} parent=11 // pred_region
          _
        $region52: #{net_forward.1} parent=11 // pred_fallthru
          _
      $region12: #{net_forward.1} parent=5 // pred_fallthru
        _
      %p324 = scmp.lt.s32.totalorder %s17, 2
      // Predicated region
      $region53: #{net_forward.1} parent=5 // pred_check
        %p325 = pneg %p324
      $region54: #{net_forward.1} parent=5 // pred_check_branch
        %327 = sbr.rel (%p325) target = $region56
      $region55: #{net_forward.1} parent=5 // pred_region
        // Predicated region
        $region57: #{net_forward.1} parent=55 // pred_check
          %p328 = pneg %p37
        $region58: #{net_forward.1} parent=55 // pred_check_branch
          %330 = sbr.rel (%p328) target = $region60
        $region59: #{net_forward.1} parent=55 // pred_region
          %s331 = sand.u32 %s27, 1
          %s332 = sand.u32 %s27, 1
          %s333 = smul.addr %s332, 128
          %s334 = scalar_lea.vmem [#allocation4], %s333
          %s335 = smul.addr %s17, 4
          %s336 = smul.addr %s335, 8
          %s337 = scalar_lea.vmem %s0, %s336
          // Predicated region
          $region61: #{net_forward.1} parent=59 // pred_check
            _
          $region62: #{net_forward.1} parent=59 // pred_check_branch
            %339 = sbr.rel (0) target = $region64
          $region63: #{net_forward.1} parent=59 // pred_region
            // Predicated region
            $region65: #{net_forward.1} parent=63 // pred_check
              _
            $region66: #{net_forward.1} parent=63 // pred_check_branch
              %341 = sbr.rel (0) target = $region68
            $region67: #{net_forward.1} parent=63 // pred_region
              // Predicated region
              $region80: #{net_forward.1} parent=67 // pred_check
                _
              $region81: #{net_forward.1} parent=67 // pred_check_branch
                %387 = sbr.rel (0) target = $region83
              $region82: #{net_forward.1} parent=67 // pred_region
                loop: start=0, step=1, limit=1
                $region84: #{net_forward.1} parent=82 // loop_pre_header
                  _
                $region85: #{net_forward.1} parent=82 // loop_header
                  %s389 = sphi 0, %s393
                  %p390 = scmp.ge.s32.totalorder %s389, 1
                  %s394 = sphi %s337, %s337
                  %s395 = sphi %s334, %s334
                $region86: #{net_forward.1} parent=82 // loop_header_branch
                  %392 = sbr.rel (%p390) target = $region90
                $region87: #{net_forward.1} parent=82 // loop_body
                  %v396 = vld [vmem:[%s394] sm:$0xff]
                  %397 = vst [vmem:[%s395] sm:$0xff] %v396
                  %v398 = vld [vmem:[%s394 + $0x8] sm:$0xff]
                  %399 = vst [vmem:[%s395 + $0x8] sm:$0xff] %v398
                  %v400 = vld [vmem:[%s394 + $0x10] sm:$0xff]
                  %401 = vst [vmem:[%s395 + $0x10] sm:$0xff] %v400
                  %v402 = vld [vmem:[%s394 + $0x18] sm:$0xff]
                  %403 = vst [vmem:[%s395 + $0x18] sm:$0xff] %v402
                  %v404 = vld [vmem:[%s394 + $0x40] sm:$0xff]
                  %405 = vst [vmem:[%s395 + $0x20] sm:$0xff] %v404
                  %v406 = vld [vmem:[%s394 + $0x48] sm:$0xff]
                  %407 = vst [vmem:[%s395 + $0x28] sm:$0xff] %v406
                  %v408 = vld [vmem:[%s394 + $0x50] sm:$0xff]
                  %409 = vst [vmem:[%s395 + $0x30] sm:$0xff] %v408
                  %v410 = vld [vmem:[%s394 + $0x58] sm:$0xff]
                  %411 = vst [vmem:[%s395 + $0x38] sm:$0xff] %v410
                  %v412 = vld [vmem:[%s394 + $0x80] sm:$0xff]
                  %413 = vst [vmem:[%s395 + $0x40] sm:$0xff] %v412
                  %v414 = vld [vmem:[%s394 + $0x88] sm:$0xff]
                  %415 = vst [vmem:[%s395 + $0x48] sm:$0xff] %v414
                  %v416 = vld [vmem:[%s394 + $0x90] sm:$0xff]
                  %417 = vst [vmem:[%s395 + $0x50] sm:$0xff] %v416
                  %v418 = vld [vmem:[%s394 + $0x98] sm:$0xff]
                  %419 = vst [vmem:[%s395 + $0x58] sm:$0xff] %v418
                  %v420 = vld [vmem:[%s394 + $0xc0] sm:$0xff]
                  %421 = vst [vmem:[%s395 + $0x60] sm:$0xff] %v420
                  %v422 = vld [vmem:[%s394 + $0xc8] sm:$0xff]
                  %423 = vst [vmem:[%s395 + $0x68] sm:$0xff] %v422
                  %v424 = vld [vmem:[%s394 + $0xd0] sm:$0xff]
                  %425 = vst [vmem:[%s395 + $0x70] sm:$0xff] %v424
                  %v426 = vld [vmem:[%s394 + $0xd8] sm:$0xff]
                  %427 = vst [vmem:[%s395 + $0x78] sm:$0xff] %v426
                $region88: #{net_forward.1} parent=82 // loop_footer
                  %s393 = sadd.s32 1, %s389
                $region89: #{net_forward.1} parent=82 // loop_footer_branch
                  %388 = sbr.rel target = $region85
                $region90: #{net_forward.1} parent=82 // loop_exit
                  _
              $region83: #{net_forward.1} parent=67 // pred_fallthru
                _
              // Predicated region
              $region91: #{net_forward.1} parent=67 // pred_check
                _
              $region92: #{net_forward.1} parent=67 // pred_check_branch
                %429 = sbr.rel target = $region94
              $region93: #{net_forward.1} parent=67 // pred_region
                _
              $region94: #{net_forward.1} parent=67 // pred_fallthru
                _
            $region68: #{net_forward.1} parent=63 // pred_fallthru
              _
            // Predicated region
            $region69: #{net_forward.1} parent=63 // pred_check
              _
            $region70: #{net_forward.1} parent=63 // pred_check_branch
              %343 = sbr.rel target = $region72
            $region71: #{net_forward.1} parent=63 // pred_region
              %s345 = ssub.s32 256, 1
              loop: start=0, step=1, limit=1
              $region73: #{net_forward.1} parent=71 // loop_pre_header
                _
              $region74: #{net_forward.1} parent=71 // loop_header
                %s347 = sphi 0, %s351
                %p348 = scmp.ge.s32.totalorder %s347, 1
                %s352 = sphi %s337, %s337
                %s353 = sphi %s334, %s334
              $region75: #{net_forward.1} parent=71 // loop_header_branch
                %350 = sbr.rel (%p348) target = $region79
              $region76: #{net_forward.1} parent=71 // loop_body
                %v354 = vld [vmem:[%s352] sm:%s345]
                %355 = vst [vmem:[%s353] sm:%s345] %v354
                %v356 = vld [vmem:[%s352 + $0x8] sm:%s345]
                %357 = vst [vmem:[%s353 + $0x8] sm:%s345] %v356
                %v358 = vld [vmem:[%s352 + $0x10] sm:%s345]
                %359 = vst [vmem:[%s353 + $0x10] sm:%s345] %v358
                %v360 = vld [vmem:[%s352 + $0x18] sm:%s345]
                %361 = vst [vmem:[%s353 + $0x18] sm:%s345] %v360
                %v362 = vld [vmem:[%s352 + $0x40] sm:%s345]
                %363 = vst [vmem:[%s353 + $0x20] sm:%s345] %v362
                %v364 = vld [vmem:[%s352 + $0x48] sm:%s345]
                %365 = vst [vmem:[%s353 + $0x28] sm:%s345] %v364
                %v366 = vld [vmem:[%s352 + $0x50] sm:%s345]
                %367 = vst [vmem:[%s353 + $0x30] sm:%s345] %v366
                %v368 = vld [vmem:[%s352 + $0x58] sm:%s345]
                %369 = vst [vmem:[%s353 + $0x38] sm:%s345] %v368
                %v370 = vld [vmem:[%s352 + $0x80] sm:%s345]
                %371 = vst [vmem:[%s353 + $0x40] sm:%s345] %v370
                %v372 = vld [vmem:[%s352 + $0x88] sm:%s345]
                %373 = vst [vmem:[%s353 + $0x48] sm:%s345] %v372
                %v374 = vld [vmem:[%s352 + $0x90] sm:%s345]
                %375 = vst [vmem:[%s353 + $0x50] sm:%s345] %v374
                %v376 = vld [vmem:[%s352 + $0x98] sm:%s345]
                %377 = vst [vmem:[%s353 + $0x58] sm:%s345] %v376
                %v378 = vld [vmem:[%s352 + $0xc0] sm:%s345]
                %379 = vst [vmem:[%s353 + $0x60] sm:%s345] %v378
                %v380 = vld [vmem:[%s352 + $0xc8] sm:%s345]
                %381 = vst [vmem:[%s353 + $0x68] sm:%s345] %v380
                %v382 = vld [vmem:[%s352 + $0xd0] sm:%s345]
                %383 = vst [vmem:[%s353 + $0x70] sm:%s345] %v382
                %v384 = vld [vmem:[%s352 + $0xd8] sm:%s345]
                %385 = vst [vmem:[%s353 + $0x78] sm:%s345] %v384
              $region77: #{net_forward.1} parent=71 // loop_footer
                %s351 = sadd.s32 1, %s347
              $region78: #{net_forward.1} parent=71 // loop_footer_branch
                %346 = sbr.rel target = $region74
              $region79: #{net_forward.1} parent=71 // loop_exit
                _
            $region72: #{net_forward.1} parent=63 // pred_fallthru
              _
          $region64: #{net_forward.1} parent=59 // pred_fallthru
            _
          %430 = vnop
        $region60: #{net_forward.1} parent=55 // pred_fallthru
          _
      $region56: #{net_forward.1} parent=5 // pred_fallthru
        _
      %p431 = scmp.le.s32.totalorder 1, %s17
      %p432 = scmp.lt.s32.totalorder %s17, 3
      %p433 = pnand %p431, %p432
      %p434 = pneg %p433
      // Predicated region
      $region95: #{net_forward.1} parent=5 // pred_check
        _
      $region96: #{net_forward.1} parent=5 // pred_check_branch
        %436 = sbr.rel (%p433) target = $region98
      $region97: #{net_forward.1} parent=5 // pred_region
        %s437 = ssub.s32 %s17, 1
        %s438 = sand.u32 %s30, 1
        %s439 = sand.u32 %s30, 1
        %s440 = smul.addr %s439, 128
        %s441 = scalar_lea.vmem [#allocation4], %s440
        // Predicated region
        $region99: #{net_forward.1} parent=97 // pred_check
          %p442 = pneg %p43
        $region100: #{net_forward.1} parent=97 // pred_check_branch
          %444 = sbr.rel (%p442) target = $region102
        $region101: #{net_forward.1} parent=97 // pred_region
          _
        $region102: #{net_forward.1} parent=97 // pred_fallthru
          _
        %s445 = sand.u32 %s30, 1
        %s446 = sand.u32 %s30, 1
        %s447 = smul.addr %s446, 128
        %s448 = scalar_lea.vmem [#allocation4], %s447
        %p449 = pneg %p43
        %p450 = pneg %p40
        %p451 = pneg %p64
        %p452 = pneg %p61
        %p453 = pneg %p85
        %p454 = pneg %p82
        %p455 = pneg %p106
        %p456 = pneg %p103
        %p457 = pneg %p127
        %p458 = pneg %p124
        %p459 = pneg %p148
        %p460 = pneg %p145
        %p461 = pneg %p169
        %p462 = pneg %p166
        %p463 = pneg %p190
        %p464 = pneg %p187
        %p465 = pneg %p211
        %p466 = pneg %p208
        %p467 = pneg %p232
        %p468 = pneg %p229
        %p469 = pneg %p253
        %p470 = pneg %p250
        %p471 = pneg %p279
        %p472 = pneg %p276
        %p473 = scmp.lt.s32.totalorder %s22, 1
        %s474 = scalar_select %p473, %s22, 1
        %s475 = smul.addr %s474, 8
        %s476 = scalar_lea.vmem %s11, %s475
        %p477 = scmp.lt.s32.totalorder %s22, 1
        %s478 = scalar_select %p477, %s22, 1
        %s479 = smul.addr %s478, 8
        %s480 = scalar_lea.vmem %s11, %s479
        %v481 = vld [vmem:[%s441] sm:$0xff]
        %v482 = vld [vmem:[%s441 + $0x8] sm:$0xff]
        %v483 = vld [vmem:[%s441 + $0x10] sm:$0xff]
        %v484 = vld [vmem:[%s1] sm:$0xff]
        %v485 = vld [vmem:[%s1 + $0x8] sm:$0xff]
        %v486 = vld [vmem:[%s1 + $0x10] sm:$0xff]
        %v487 = vld [vmem:[%s1 + $0x18] sm:$0xff]
        %v488 = vld [vmem:[%s1 + $0x20] sm:$0xff]
        %v489 = vld [vmem:[%s1 + $0x28] sm:$0xff]
        %v490 = vld [vmem:[%s1 + $0x30] sm:$0xff]
        %v491 = vld [vmem:[%s1 + $0x38] sm:$0xff]
        %v492 = vld [vmem:[%s1 + $0x40] sm:$0xff]
        %v493 = vld [vmem:[%s1 + $0x48] sm:$0xff]
        %v494 = vld [vmem:[%s1 + $0x50] sm:$0xff]
        %v495 = vld [vmem:[%s1 + $0x58] sm:$0xff]
        %s496 = scalar_lea.vmem %s1, 480
        %v497 = vld [vmem:[%s496] sm:$0xff]
        %v498 = vld [vmem:[%s496 + $0x8] sm:$0xff]
        %v499 = vld [vmem:[%s496 + $0x10] sm:$0xff]
        %v500 = vld [vmem:[%s496 + $0x18] sm:$0xff]
        %v501 = vld [vmem:[%s496 + $0x20] sm:$0xff]
        %v502 = vld [vmem:[%s496 + $0x28] sm:$0xff]
        %v503 = vld [vmem:[%s496 + $0x30] sm:$0xff]
        %v504 = vld [vmem:[%s496 + $0x38] sm:$0xff]
        %v505 = vld [vmem:[%s496 + $0x40] sm:$0xff]
        %v506 = vld [vmem:[%s496 + $0x48] sm:$0xff]
        %v507 = vld [vmem:[%s496 + $0x50] sm:$0xff]
        %v508 = vld [vmem:[%s496 + $0x58] sm:$0xff]
        %s509 = scalar_lea.vmem %s441, 32 [#allocation4]
        %v510 = vld [vmem:[%s509] sm:$0xff]
        %v511 = vld [vmem:[%s509 + $0x8] sm:$0xff]
        %v512 = vld [vmem:[%s509 + $0x10] sm:$0xff]
        %s513 = scalar_lea.vmem %s1, 96
        %v514 = vld [vmem:[%s513] sm:$0xff]
        %v515 = vld [vmem:[%s513 + $0x8] sm:$0xff]
        %v516 = vld [vmem:[%s513 + $0x10] sm:$0xff]
        %v517 = vld [vmem:[%s513 + $0x18] sm:$0xff]
        %v518 = vld [vmem:[%s513 + $0x20] sm:$0xff]
        %v519 = vld [vmem:[%s513 + $0x28] sm:$0xff]
        %v520 = vld [vmem:[%s513 + $0x30] sm:$0xff]
        %v521 = vld [vmem:[%s513 + $0x38] sm:$0xff]
        %v522 = vld [vmem:[%s513 + $0x40] sm:$0xff]
        %v523 = vld [vmem:[%s513 + $0x48] sm:$0xff]
        %v524 = vld [vmem:[%s513 + $0x50] sm:$0xff]
        %v525 = vld [vmem:[%s513 + $0x58] sm:$0xff]
        %vm526 = vcmask 785408
        %v528 = vsel %vm526, %v510, 0
        %v531 = vsel %vm526, %v511, 0
        %v534 = vsel %vm526, %v512, 0
        %536 = vmatpush.msra.mxu0 0.0
        %537 = vmatpush.msra.mxu0 0.0
        %538 = vmatpush.msra.mxu0 0.0
        %539 = vmatpush.msra.mxu0 0.0
        %540 = vmatpush.msra.mxu0 %v525
        %541 = vmatpush.msra.mxu0 %v524
        %542 = vmatpush.msra.mxu0 %v523
        %543 = vmatpush.msra.mxu0 %v522
        %544 = vmatpush.msra.mxu0 %v521
        %545 = vmatpush.msra.mxu0 %v520
        %546 = vmatpush.msra.mxu0 %v519
        %547 = vmatpush.msra.mxu0 %v518
        %548 = vmatpush.msra.mxu0 %v517
        %549 = vmatpush.msra.mxu0 %v516
        %550 = vmatpush.msra.mxu0 %v515
        %551 = vmatpush.msra.mxu0 %v514
        %552 = vmatmul.f32.gmra.mxu0 %v528
        %v553 = vpop.f32.mrf.mxu0
        %v554 = vadd.f32 0.0, %v553
        %555 = vmatmul.f32.gmra.mxu0 %v531
        %v556 = vpop.f32.mrf.mxu0
        %v557 = vadd.f32 0.0, %v556
        %558 = vmatmul.f32.gmra.mxu0 %v534
        %v559 = vpop.f32.mrf.mxu0
        %v560 = vadd.f32 0.0, %v559
        %561 = vdwg.mxu0
        %v563 = vsel %vm526, %v481, 0
        %v566 = vsel %vm526, %v482, 0
        %v569 = vsel %vm526, %v483, 0
        %571 = vmatpush.msra.mxu0 0.0
        %572 = vmatpush.msra.mxu0 0.0
        %573 = vmatpush.msra.mxu0 0.0
        %574 = vmatpush.msra.mxu0 0.0
        %575 = vmatpush.msra.mxu0 %v495
        %576 = vmatpush.msra.mxu0 %v494
        %577 = vmatpush.msra.mxu0 %v493
        %578 = vmatpush.msra.mxu0 %v492
        %579 = vmatpush.msra.mxu0 %v491
        %580 = vmatpush.msra.mxu0 %v490
        %581 = vmatpush.msra.mxu0 %v489
        %582 = vmatpush.msra.mxu0 %v488
        %583 = vmatpush.msra.mxu0 %v487
        %584 = vmatpush.msra.mxu0 %v486
        %585 = vmatpush.msra.mxu0 %v485
        %586 = vmatpush.msra.mxu0 %v484
        %587 = vmatmul.f32.gmra.mxu0 %v563
        %v588 = vpop.f32.mrf.mxu0
        %v589 = vadd.f32 %v554, %v588
        %590 = vmatmul.f32.gmra.mxu0 %v566
        %v591 = vpop.f32.mrf.mxu0
        %v592 = vadd.f32 %v557, %v591
        %593 = vmatmul.f32.gmra.mxu0 %v569
        %v594 = vpop.f32.mrf.mxu0
        %v595 = vadd.f32 %v560, %v594
        %596 = vdwg.mxu0
        %s597 = scalar_lea.vmem %s1, 576
        %v598 = vld [vmem:[%s597] sm:$0xff]
        %v599 = vld [vmem:[%s597 + $0x8] sm:$0xff]
        %v600 = vld [vmem:[%s597 + $0x10] sm:$0xff]
        %v601 = vld [vmem:[%s597 + $0x18] sm:$0xff]
        %v602 = vld [vmem:[%s597 + $0x20] sm:$0xff]
        %v603 = vld [vmem:[%s597 + $0x28] sm:$0xff]
        %v604 = vld [vmem:[%s597 + $0x30] sm:$0xff]
        %v605 = vld [vmem:[%s597 + $0x38] sm:$0xff]
        %v606 = vld [vmem:[%s597 + $0x40] sm:$0xff]
        %v607 = vld [vmem:[%s597 + $0x48] sm:$0xff]
        %v608 = vld [vmem:[%s597 + $0x50] sm:$0xff]
        %v609 = vld [vmem:[%s597 + $0x58] sm:$0xff]
        %610 = vmatpush.msra.mxu0 0.0
        %611 = vmatpush.msra.mxu0 0.0
        %612 = vmatpush.msra.mxu0 0.0
        %613 = vmatpush.msra.mxu0 0.0
        %614 = vmatpush.msra.mxu0 %v609
        %615 = vmatpush.msra.mxu0 %v608
        %616 = vmatpush.msra.mxu0 %v607
        %617 = vmatpush.msra.mxu0 %v606
        %618 = vmatpush.msra.mxu0 %v605
        %619 = vmatpush.msra.mxu0 %v604
        %620 = vmatpush.msra.mxu0 %v603
        %621 = vmatpush.msra.mxu0 %v602
        %622 = vmatpush.msra.mxu0 %v601
        %623 = vmatpush.msra.mxu0 %v600
        %624 = vmatpush.msra.mxu0 %v599
        %625 = vmatpush.msra.mxu0 %v598
        %626 = vmatmul.f32.gmra.mxu0 %v528
        %v627 = vpop.f32.mrf.mxu0
        %v628 = vadd.f32 0.0, %v627
        %629 = vmatmul.f32.gmra.mxu0 %v531
        %v630 = vpop.f32.mrf.mxu0
        %v631 = vadd.f32 0.0, %v630
        %632 = vmatmul.f32.gmra.mxu0 %v534
        %v633 = vpop.f32.mrf.mxu0
        %v634 = vadd.f32 0.0, %v633
        %635 = vdwg.mxu0
        %636 = vmatpush.msra.mxu0 0.0
        %637 = vmatpush.msra.mxu0 0.0
        %638 = vmatpush.msra.mxu0 0.0
        %639 = vmatpush.msra.mxu0 0.0
        %640 = vmatpush.msra.mxu0 %v508
        %641 = vmatpush.msra.mxu0 %v507
        %642 = vmatpush.msra.mxu0 %v506
        %643 = vmatpush.msra.mxu0 %v505
        %644 = vmatpush.msra.mxu0 %v504
        %645 = vmatpush.msra.mxu0 %v503
        %646 = vmatpush.msra.mxu0 %v502
        %647 = vmatpush.msra.mxu0 %v501
        %648 = vmatpush.msra.mxu0 %v500
        %649 = vmatpush.msra.mxu0 %v499
        %650 = vmatpush.msra.mxu0 %v498
        %651 = vmatpush.msra.mxu0 %v497
        %652 = vmatmul.f32.gmra.mxu0 %v563
        %v653 = vpop.f32.mrf.mxu0
        %v654 = vadd.f32 %v628, %v653
        %655 = vmatmul.f32.gmra.mxu0 %v566
        %v656 = vpop.f32.mrf.mxu0
        %v657 = vadd.f32 %v631, %v656
        %658 = vmatmul.f32.gmra.mxu0 %v569
        %v659 = vpop.f32.mrf.mxu0
        %v660 = vadd.f32 %v634, %v659
        %661 = vdwg.mxu0
        %s662 = scalar_lea.vmem %s441, 64 [#allocation4]
        %v663 = vld [vmem:[%s662] sm:$0xff]
        %v664 = vld [vmem:[%s662 + $0x8] sm:$0xff]
        %v665 = vld [vmem:[%s662 + $0x10] sm:$0xff]
        %s666 = scalar_lea.vmem %s1, 192
        %v667 = vld [vmem:[%s666] sm:$0xff]
        %v668 = vld [vmem:[%s666 + $0x8] sm:$0xff]
        %v669 = vld [vmem:[%s666 + $0x10] sm:$0xff]
        %v670 = vld [vmem:[%s666 + $0x18] sm:$0xff]
        %v671 = vld [vmem:[%s666 + $0x20] sm:$0xff]
        %v672 = vld [vmem:[%s666 + $0x28] sm:$0xff]
        %v673 = vld [vmem:[%s666 + $0x30] sm:$0xff]
        %v674 = vld [vmem:[%s666 + $0x38] sm:$0xff]
        %v675 = vld [vmem:[%s666 + $0x40] sm:$0xff]
        %v676 = vld [vmem:[%s666 + $0x48] sm:$0xff]
        %v677 = vld [vmem:[%s666 + $0x50] sm:$0xff]
        %v678 = vld [vmem:[%s666 + $0x58] sm:$0xff]
        %v680 = vsel %vm526, %v663, 0
        %v683 = vsel %vm526, %v664, 0
        %v686 = vsel %vm526, %v665, 0
        %688 = vmatpush.msra.mxu0 0.0
        %689 = vmatpush.msra.mxu0 0.0
        %690 = vmatpush.msra.mxu0 0.0
        %691 = vmatpush.msra.mxu0 0.0
        %692 = vmatpush.msra.mxu0 %v678
        %693 = vmatpush.msra.mxu0 %v677
        %694 = vmatpush.msra.mxu0 %v676
        %695 = vmatpush.msra.mxu0 %v675
        %696 = vmatpush.msra.mxu0 %v674
        %697 = vmatpush.msra.mxu0 %v673
        %698 = vmatpush.msra.mxu0 %v672
        %699 = vmatpush.msra.mxu0 %v671
        %700 = vmatpush.msra.mxu0 %v670
        %701 = vmatpush.msra.mxu0 %v669
        %702 = vmatpush.msra.mxu0 %v668
        %703 = vmatpush.msra.mxu0 %v667
        %704 = vmatmul.f32.gmra.mxu0 %v680
        %v705 = vpop.f32.mrf.mxu0
        %v706 = vadd.f32 0.0, %v705
        %707 = vmatmul.f32.gmra.mxu0 %v683
        %v708 = vpop.f32.mrf.mxu0
        %v709 = vadd.f32 0.0, %v708
        %710 = vmatmul.f32.gmra.mxu0 %v686
        %v711 = vpop.f32.mrf.mxu0
        %v712 = vadd.f32 0.0, %v711
        %713 = vdwg.mxu0
        %v714 = vadd.f32 %v589, %v706
        %v715 = vadd.f32 %v592, %v709
        %v716 = vadd.f32 %v595, %v712
        %s717 = scalar_lea.vmem %s1, 672
        %v718 = vld [vmem:[%s717] sm:$0xff]
        %v719 = vld [vmem:[%s717 + $0x8] sm:$0xff]
        %v720 = vld [vmem:[%s717 + $0x10] sm:$0xff]
        %v721 = vld [vmem:[%s717 + $0x18] sm:$0xff]
        %v722 = vld [vmem:[%s717 + $0x20] sm:$0xff]
        %v723 = vld [vmem:[%s717 + $0x28] sm:$0xff]
        %v724 = vld [vmem:[%s717 + $0x30] sm:$0xff]
        %v725 = vld [vmem:[%s717 + $0x38] sm:$0xff]
        %v726 = vld [vmem:[%s717 + $0x40] sm:$0xff]
        %v727 = vld [vmem:[%s717 + $0x48] sm:$0xff]
        %v728 = vld [vmem:[%s717 + $0x50] sm:$0xff]
        %v729 = vld [vmem:[%s717 + $0x58] sm:$0xff]
        %730 = vmatpush.msra.mxu0 0.0
        %731 = vmatpush.msra.mxu0 0.0
        %732 = vmatpush.msra.mxu0 0.0
        %733 = vmatpush.msra.mxu0 0.0
        %734 = vmatpush.msra.mxu0 %v729
        %735 = vmatpush.msra.mxu0 %v728
        %736 = vmatpush.msra.mxu0 %v727
        %737 = vmatpush.msra.mxu0 %v726
        %738 = vmatpush.msra.mxu0 %v725
        %739 = vmatpush.msra.mxu0 %v724
        %740 = vmatpush.msra.mxu0 %v723
        %741 = vmatpush.msra.mxu0 %v722
        %742 = vmatpush.msra.mxu0 %v721
        %743 = vmatpush.msra.mxu0 %v720
        %744 = vmatpush.msra.mxu0 %v719
        %745 = vmatpush.msra.mxu0 %v718
        %746 = vmatmul.f32.gmra.mxu0 %v680
        %v747 = vpop.f32.mrf.mxu0
        %v748 = vadd.f32 0.0, %v747
        %749 = vmatmul.f32.gmra.mxu0 %v683
        %v750 = vpop.f32.mrf.mxu0
        %v751 = vadd.f32 0.0, %v750
        %752 = vmatmul.f32.gmra.mxu0 %v686
        %v753 = vpop.f32.mrf.mxu0
        %v754 = vadd.f32 0.0, %v753
        %755 = vdwg.mxu0
        %v756 = vadd.f32 %v654, %v748
        %v757 = vadd.f32 %v657, %v751
        %v758 = vadd.f32 %v660, %v754
        %s759 = scalar_lea.vmem %s441, 96 [#allocation4]
        %v760 = vld [vmem:[%s759] sm:$0xff]
        %v761 = vld [vmem:[%s759 + $0x8] sm:$0xff]
        %v762 = vld [vmem:[%s759 + $0x10] sm:$0xff]
        %s763 = scalar_lea.vmem %s1, 288
        %v764 = vld [vmem:[%s763] sm:$0xff]
        %v765 = vld [vmem:[%s763 + $0x8] sm:$0xff]
        %v766 = vld [vmem:[%s763 + $0x10] sm:$0xff]
        %v767 = vld [vmem:[%s763 + $0x18] sm:$0xff]
        %v768 = vld [vmem:[%s763 + $0x20] sm:$0xff]
        %v769 = vld [vmem:[%s763 + $0x28] sm:$0xff]
        %v770 = vld [vmem:[%s763 + $0x30] sm:$0xff]
        %v771 = vld [vmem:[%s763 + $0x38] sm:$0xff]
        %v772 = vld [vmem:[%s763 + $0x40] sm:$0xff]
        %v773 = vld [vmem:[%s763 + $0x48] sm:$0xff]
        %v774 = vld [vmem:[%s763 + $0x50] sm:$0xff]
        %v775 = vld [vmem:[%s763 + $0x58] sm:$0xff]
        %v777 = vsel %vm526, %v760, 0
        %v780 = vsel %vm526, %v761, 0
        %v783 = vsel %vm526, %v762, 0
        %785 = vmatpush.msra.mxu0 0.0
        %786 = vmatpush.msra.mxu0 0.0
        %787 = vmatpush.msra.mxu0 0.0
        %788 = vmatpush.msra.mxu0 0.0
        %789 = vmatpush.msra.mxu0 %v775
        %790 = vmatpush.msra.mxu0 %v774
        %791 = vmatpush.msra.mxu0 %v773
        %792 = vmatpush.msra.mxu0 %v772
        %793 = vmatpush.msra.mxu0 %v771
        %794 = vmatpush.msra.mxu0 %v770
        %795 = vmatpush.msra.mxu0 %v769
        %796 = vmatpush.msra.mxu0 %v768
        %797 = vmatpush.msra.mxu0 %v767
        %798 = vmatpush.msra.mxu0 %v766
        %799 = vmatpush.msra.mxu0 %v765
        %800 = vmatpush.msra.mxu0 %v764
        %801 = vmatmul.f32.gmra.mxu0 %v777
        %v802 = vpop.f32.mrf.mxu0
        %v803 = vadd.f32 0.0, %v802
        %804 = vmatmul.f32.gmra.mxu0 %v780
        %v805 = vpop.f32.mrf.mxu0
        %v806 = vadd.f32 0.0, %v805
        %807 = vmatmul.f32.gmra.mxu0 %v783
        %v808 = vpop.f32.mrf.mxu0
        %v809 = vadd.f32 0.0, %v808
        %810 = vdwg.mxu0
        %v811 = vadd.f32 %v714, %v803
        %v812 = vadd.f32 %v715, %v806
        %v813 = vadd.f32 %v716, %v809
        %s814 = scalar_lea.vmem %s1, 768
        %v815 = vld [vmem:[%s814] sm:$0xff]
        %v816 = vld [vmem:[%s814 + $0x8] sm:$0xff]
        %v817 = vld [vmem:[%s814 + $0x10] sm:$0xff]
        %v818 = vld [vmem:[%s814 + $0x18] sm:$0xff]
        %v819 = vld [vmem:[%s814 + $0x20] sm:$0xff]
        %v820 = vld [vmem:[%s814 + $0x28] sm:$0xff]
        %v821 = vld [vmem:[%s814 + $0x30] sm:$0xff]
        %v822 = vld [vmem:[%s814 + $0x38] sm:$0xff]
        %v823 = vld [vmem:[%s814 + $0x40] sm:$0xff]
        %v824 = vld [vmem:[%s814 + $0x48] sm:$0xff]
        %v825 = vld [vmem:[%s814 + $0x50] sm:$0xff]
        %v826 = vld [vmem:[%s814 + $0x58] sm:$0xff]
        %827 = vmatpush.msra.mxu0 0.0
        %828 = vmatpush.msra.mxu0 0.0
        %829 = vmatpush.msra.mxu0 0.0
        %830 = vmatpush.msra.mxu0 0.0
        %831 = vmatpush.msra.mxu0 %v826
        %832 = vmatpush.msra.mxu0 %v825
        %833 = vmatpush.msra.mxu0 %v824
        %834 = vmatpush.msra.mxu0 %v823
        %835 = vmatpush.msra.mxu0 %v822
        %836 = vmatpush.msra.mxu0 %v821
        %837 = vmatpush.msra.mxu0 %v820
        %838 = vmatpush.msra.mxu0 %v819
        %839 = vmatpush.msra.mxu0 %v818
        %840 = vmatpush.msra.mxu0 %v817
        %841 = vmatpush.msra.mxu0 %v816
        %842 = vmatpush.msra.mxu0 %v815
        %843 = vmatmul.f32.gmra.mxu0 %v777
        %v844 = vpop.f32.mrf.mxu0
        %v845 = vadd.f32 0.0, %v844
        %846 = vmatmul.f32.gmra.mxu0 %v780
        %v847 = vpop.f32.mrf.mxu0
        %v848 = vadd.f32 0.0, %v847
        %849 = vmatmul.f32.gmra.mxu0 %v783
        %v850 = vpop.f32.mrf.mxu0
        %v851 = vadd.f32 0.0, %v850
        %852 = vdwg.mxu0
        %v853 = vadd.f32 %v756, %v845
        %v854 = vadd.f32 %v757, %v848
        %v855 = vadd.f32 %v758, %v851
        %v856 = vld [vmem:[%s441 + $0x1] sm:$0xff]
        %v857 = vld [vmem:[%s441 + $0x9] sm:$0xff]
        %v858 = vld [vmem:[%s441 + $0x11] sm:$0xff]
        %s859 = scalar_lea.vmem %s1, 384
        %v860 = vld [vmem:[%s859] sm:$0xff]
        %v861 = vld [vmem:[%s859 + $0x8] sm:$0xff]
        %v862 = vld [vmem:[%s859 + $0x10] sm:$0xff]
        %v863 = vld [vmem:[%s859 + $0x18] sm:$0xff]
        %v864 = vld [vmem:[%s859 + $0x20] sm:$0xff]
        %v865 = vld [vmem:[%s859 + $0x28] sm:$0xff]
        %v866 = vld [vmem:[%s859 + $0x30] sm:$0xff]
        %v867 = vld [vmem:[%s859 + $0x38] sm:$0xff]
        %v868 = vld [vmem:[%s859 + $0x40] sm:$0xff]
        %v869 = vld [vmem:[%s859 + $0x48] sm:$0xff]
        %v870 = vld [vmem:[%s859 + $0x50] sm:$0xff]
        %v871 = vld [vmem:[%s859 + $0x58] sm:$0xff]
        %v873 = vsel %vm526, %v856, 0
        %v876 = vsel %vm526, %v857, 0
        %v879 = vsel %vm526, %v858, 0
        %881 = vmatpush.msra.mxu0 0.0
        %882 = vmatpush.msra.mxu0 0.0
        %883 = vmatpush.msra.mxu0 0.0
        %884 = vmatpush.msra.mxu0 0.0
        %885 = vmatpush.msra.mxu0 %v871
        %886 = vmatpush.msra.mxu0 %v870
        %887 = vmatpush.msra.mxu0 %v869
        %888 = vmatpush.msra.mxu0 %v868
        %889 = vmatpush.msra.mxu0 %v867
        %890 = vmatpush.msra.mxu0 %v866
        %891 = vmatpush.msra.mxu0 %v865
        %892 = vmatpush.msra.mxu0 %v864
        %893 = vmatpush.msra.mxu0 %v863
        %894 = vmatpush.msra.mxu0 %v862
        %895 = vmatpush.msra.mxu0 %v861
        %896 = vmatpush.msra.mxu0 %v860
        %897 = vmatmul.f32.gmra.mxu0 %v873
        %v898 = vpop.f32.mrf.mxu0
        %v899 = vadd.f32 0.0, %v898
        %900 = vmatmul.f32.gmra.mxu0 %v876
        %v901 = vpop.f32.mrf.mxu0
        %v902 = vadd.f32 0.0, %v901
        %903 = vmatmul.f32.gmra.mxu0 %v879
        %v904 = vpop.f32.mrf.mxu0
        %v905 = vadd.f32 0.0, %v904
        %906 = vdwg.mxu0
        %v907 = vadd.f32 %v811, %v899
        %v908 = vadd.f32 %v812, %v902
        %v909 = vadd.f32 %v813, %v905
        %s910 = scalar_lea.vmem %s1, 864
        %v911 = vld [vmem:[%s910] sm:$0xff]
        %v912 = vld [vmem:[%s910 + $0x8] sm:$0xff]
        %v913 = vld [vmem:[%s910 + $0x10] sm:$0xff]
        %v914 = vld [vmem:[%s910 + $0x18] sm:$0xff]
        %v915 = vld [vmem:[%s910 + $0x20] sm:$0xff]
        %v916 = vld [vmem:[%s910 + $0x28] sm:$0xff]
        %v917 = vld [vmem:[%s910 + $0x30] sm:$0xff]
        %v918 = vld [vmem:[%s910 + $0x38] sm:$0xff]
        %v919 = vld [vmem:[%s910 + $0x40] sm:$0xff]
        %v920 = vld [vmem:[%s910 + $0x48] sm:$0xff]
        %v921 = vld [vmem:[%s910 + $0x50] sm:$0xff]
        %v922 = vld [vmem:[%s910 + $0x58] sm:$0xff]
        %923 = vmatpush.msra.mxu0 0.0
        %924 = vmatpush.msra.mxu0 0.0
        %925 = vmatpush.msra.mxu0 0.0
        %926 = vmatpush.msra.mxu0 0.0
        %927 = vmatpush.msra.mxu0 %v922
        %928 = vmatpush.msra.mxu0 %v921
        %929 = vmatpush.msra.mxu0 %v920
        %930 = vmatpush.msra.mxu0 %v919
        %931 = vmatpush.msra.mxu0 %v918
        %932 = vmatpush.msra.mxu0 %v917
        %933 = vmatpush.msra.mxu0 %v916
        %934 = vmatpush.msra.mxu0 %v915
        %935 = vmatpush.msra.mxu0 %v914
        %936 = vmatpush.msra.mxu0 %v913
        %937 = vmatpush.msra.mxu0 %v912
        %938 = vmatpush.msra.mxu0 %v911
        %939 = vmatmul.f32.gmra.mxu0 %v873
        %v940 = vpop.f32.mrf.mxu0
        %v941 = vadd.f32 0.0, %v940
        %942 = vmatmul.f32.gmra.mxu0 %v876
        %v943 = vpop.f32.mrf.mxu0
        %v944 = vadd.f32 0.0, %v943
        %945 = vmatmul.f32.gmra.mxu0 %v879
        %v946 = vpop.f32.mrf.mxu0
        %v947 = vadd.f32 0.0, %v946
        %948 = vdwg.mxu0
        %v949 = vadd.f32 %v853, %v941
        %v950 = vadd.f32 %v854, %v944
        %v951 = vadd.f32 %v855, %v947
        %952 = vmatpush.msra.mxu0 0.0
        %953 = vmatpush.msra.mxu0 0.0
        %954 = vmatpush.msra.mxu0 0.0
        %955 = vmatpush.msra.mxu0 0.0
        %956 = vmatpush.msra.mxu0 %v525
        %957 = vmatpush.msra.mxu0 %v524
        %958 = vmatpush.msra.mxu0 %v523
        %959 = vmatpush.msra.mxu0 %v522
        %960 = vmatpush.msra.mxu0 %v521
        %961 = vmatpush.msra.mxu0 %v520
        %962 = vmatpush.msra.mxu0 %v519
        %963 = vmatpush.msra.mxu0 %v518
        %964 = vmatpush.msra.mxu0 %v517
        %965 = vmatpush.msra.mxu0 %v516
        %966 = vmatpush.msra.mxu0 %v515
        %967 = vmatpush.msra.mxu0 %v514
        %968 = vmatmul.f32.gmra.mxu0 %v680
        %v969 = vpop.f32.mrf.mxu0
        %v970 = vadd.f32 0.0, %v969
        %971 = vmatmul.f32.gmra.mxu0 %v683
        %v972 = vpop.f32.mrf.mxu0
        %v973 = vadd.f32 0.0, %v972
        %974 = vmatmul.f32.gmra.mxu0 %v686
        %v975 = vpop.f32.mrf.mxu0
        %v976 = vadd.f32 0.0, %v975
        %977 = vdwg.mxu0
        %978 = vmatpush.msra.mxu0 0.0
        %979 = vmatpush.msra.mxu0 0.0
        %980 = vmatpush.msra.mxu0 0.0
        %981 = vmatpush.msra.mxu0 0.0
        %982 = vmatpush.msra.mxu0 %v495
        %983 = vmatpush.msra.mxu0 %v494
        %984 = vmatpush.msra.mxu0 %v493
        %985 = vmatpush.msra.mxu0 %v492
        %986 = vmatpush.msra.mxu0 %v491
        %987 = vmatpush.msra.mxu0 %v490
        %988 = vmatpush.msra.mxu0 %v489
        %989 = vmatpush.msra.mxu0 %v488
        %990 = vmatpush.msra.mxu0 %v487
        %991 = vmatpush.msra.mxu0 %v486
        %992 = vmatpush.msra.mxu0 %v485
        %993 = vmatpush.msra.mxu0 %v484
        %994 = vmatmul.f32.gmra.mxu0 %v528
        %v995 = vpop.f32.mrf.mxu0
        %v996 = vadd.f32 %v970, %v995
        %997 = vmatmul.f32.gmra.mxu0 %v531
        %v998 = vpop.f32.mrf.mxu0
        %v999 = vadd.f32 %v973, %v998
        %1000 = vmatmul.f32.gmra.mxu0 %v534
        %v1001 = vpop.f32.mrf.mxu0
        %v1002 = vadd.f32 %v976, %v1001
        %1003 = vdwg.mxu0
        %1004 = vmatpush.msra.mxu0 0.0
        %1005 = vmatpush.msra.mxu0 0.0
        %1006 = vmatpush.msra.mxu0 0.0
        %1007 = vmatpush.msra.mxu0 0.0
        %1008 = vmatpush.msra.mxu0 %v609
        %1009 = vmatpush.msra.mxu0 %v608
        %1010 = vmatpush.msra.mxu0 %v607
        %1011 = vmatpush.msra.mxu0 %v606
        %1012 = vmatpush.msra.mxu0 %v605
        %1013 = vmatpush.msra.mxu0 %v604
        %1014 = vmatpush.msra.mxu0 %v603
        %1015 = vmatpush.msra.mxu0 %v602
        %1016 = vmatpush.msra.mxu0 %v601
        %1017 = vmatpush.msra.mxu0 %v600
        %1018 = vmatpush.msra.mxu0 %v599
        %1019 = vmatpush.msra.mxu0 %v598
        %1020 = vmatmul.f32.gmra.mxu0 %v680
        %v1021 = vpop.f32.mrf.mxu0
        %v1022 = vadd.f32 0.0, %v1021
        %1023 = vmatmul.f32.gmra.mxu0 %v683
        %v1024 = vpop.f32.mrf.mxu0
        %v1025 = vadd.f32 0.0, %v1024
        %1026 = vmatmul.f32.gmra.mxu0 %v686
        %v1027 = vpop.f32.mrf.mxu0
        %v1028 = vadd.f32 0.0, %v1027
        %1029 = vdwg.mxu0
        %1030 = vmatpush.msra.mxu0 0.0
        %1031 = vmatpush.msra.mxu0 0.0
        %1032 = vmatpush.msra.mxu0 0.0
        %1033 = vmatpush.msra.mxu0 0.0
        %1034 = vmatpush.msra.mxu0 %v508
        %1035 = vmatpush.msra.mxu0 %v507
        %1036 = vmatpush.msra.mxu0 %v506
        %1037 = vmatpush.msra.mxu0 %v505
        %1038 = vmatpush.msra.mxu0 %v504
        %1039 = vmatpush.msra.mxu0 %v503
        %1040 = vmatpush.msra.mxu0 %v502
        %1041 = vmatpush.msra.mxu0 %v501
        %1042 = vmatpush.msra.mxu0 %v500
        %1043 = vmatpush.msra.mxu0 %v499
        %1044 = vmatpush.msra.mxu0 %v498
        %1045 = vmatpush.msra.mxu0 %v497
        %1046 = vmatmul.f32.gmra.mxu0 %v528
        %v1047 = vpop.f32.mrf.mxu0
        %v1048 = vadd.f32 %v1022, %v1047
        %1049 = vmatmul.f32.gmra.mxu0 %v531
        %v1050 = vpop.f32.mrf.mxu0
        %v1051 = vadd.f32 %v1025, %v1050
        %1052 = vmatmul.f32.gmra.mxu0 %v534
        %v1053 = vpop.f32.mrf.mxu0
        %v1054 = vadd.f32 %v1028, %v1053
        %1055 = vdwg.mxu0
        %1056 = vmatpush.msra.mxu0 0.0
        %1057 = vmatpush.msra.mxu0 0.0
        %1058 = vmatpush.msra.mxu0 0.0
        %1059 = vmatpush.msra.mxu0 0.0
        %1060 = vmatpush.msra.mxu0 %v678
        %1061 = vmatpush.msra.mxu0 %v677
        %1062 = vmatpush.msra.mxu0 %v676
        %1063 = vmatpush.msra.mxu0 %v675
        %1064 = vmatpush.msra.mxu0 %v674
        %1065 = vmatpush.msra.mxu0 %v673
        %1066 = vmatpush.msra.mxu0 %v672
        %1067 = vmatpush.msra.mxu0 %v671
        %1068 = vmatpush.msra.mxu0 %v670
        %1069 = vmatpush.msra.mxu0 %v669
        %1070 = vmatpush.msra.mxu0 %v668
        %1071 = vmatpush.msra.mxu0 %v667
        %1072 = vmatmul.f32.gmra.mxu0 %v777
        %v1073 = vpop.f32.mrf.mxu0
        %v1074 = vadd.f32 0.0, %v1073
        %1075 = vmatmul.f32.gmra.mxu0 %v780
        %v1076 = vpop.f32.mrf.mxu0
        %v1077 = vadd.f32 0.0, %v1076
        %1078 = vmatmul.f32.gmra.mxu0 %v783
        %v1079 = vpop.f32.mrf.mxu0
        %v1080 = vadd.f32 0.0, %v1079
        %1081 = vdwg.mxu0
        %v1082 = vadd.f32 %v996, %v1074
        %v1083 = vadd.f32 %v999, %v1077
        %v1084 = vadd.f32 %v1002, %v1080
        %1085 = vmatpush.msra.mxu0 0.0
        %1086 = vmatpush.msra.mxu0 0.0
        %1087 = vmatpush.msra.mxu0 0.0
        %1088 = vmatpush.msra.mxu0 0.0
        %1089 = vmatpush.msra.mxu0 %v729
        %1090 = vmatpush.msra.mxu0 %v728
        %1091 = vmatpush.msra.mxu0 %v727
        %1092 = vmatpush.msra.mxu0 %v726
        %1093 = vmatpush.msra.mxu0 %v725
        %1094 = vmatpush.msra.mxu0 %v724
        %1095 = vmatpush.msra.mxu0 %v723
        %1096 = vmatpush.msra.mxu0 %v722
        %1097 = vmatpush.msra.mxu0 %v721
        %1098 = vmatpush.msra.mxu0 %v720
        %1099 = vmatpush.msra.mxu0 %v719
        %1100 = vmatpush.msra.mxu0 %v718
        %1101 = vmatmul.f32.gmra.mxu0 %v777
        %v1102 = vpop.f32.mrf.mxu0
        %v1103 = vadd.f32 0.0, %v1102
        %1104 = vmatmul.f32.gmra.mxu0 %v780
        %v1105 = vpop.f32.mrf.mxu0
        %v1106 = vadd.f32 0.0, %v1105
        %1107 = vmatmul.f32.gmra.mxu0 %v783
        %v1108 = vpop.f32.mrf.mxu0
        %v1109 = vadd.f32 0.0, %v1108
        %1110 = vdwg.mxu0
        %v1111 = vadd.f32 %v1048, %v1103
        %v1112 = vadd.f32 %v1051, %v1106
        %v1113 = vadd.f32 %v1054, %v1109
        %1114 = vmatpush.msra.mxu0 0.0
        %1115 = vmatpush.msra.mxu0 0.0
        %1116 = vmatpush.msra.mxu0 0.0
        %1117 = vmatpush.msra.mxu0 0.0
        %1118 = vmatpush.msra.mxu0 %v775
        %1119 = vmatpush.msra.mxu0 %v774
        %1120 = vmatpush.msra.mxu0 %v773
        %1121 = vmatpush.msra.mxu0 %v772
        %1122 = vmatpush.msra.mxu0 %v771
        %1123 = vmatpush.msra.mxu0 %v770
        %1124 = vmatpush.msra.mxu0 %v769
        %1125 = vmatpush.msra.mxu0 %v768
        %1126 = vmatpush.msra.mxu0 %v767
        %1127 = vmatpush.msra.mxu0 %v766
        %1128 = vmatpush.msra.mxu0 %v765
        %1129 = vmatpush.msra.mxu0 %v764
        %1130 = vmatmul.f32.gmra.mxu0 %v873
        %v1131 = vpop.f32.mrf.mxu0
        %v1132 = vadd.f32 0.0, %v1131
        %1133 = vmatmul.f32.gmra.mxu0 %v876
        %v1134 = vpop.f32.mrf.mxu0
        %v1135 = vadd.f32 0.0, %v1134
        %1136 = vmatmul.f32.gmra.mxu0 %v879
        %v1137 = vpop.f32.mrf.mxu0
        %v1138 = vadd.f32 0.0, %v1137
        %1139 = vdwg.mxu0
        %v1140 = vadd.f32 %v1082, %v1132
        %v1141 = vadd.f32 %v1083, %v1135
        %v1142 = vadd.f32 %v1084, %v1138
        %1143 = vmatpush.msra.mxu0 0.0
        %1144 = vmatpush.msra.mxu0 0.0
        %1145 = vmatpush.msra.mxu0 0.0
        %1146 = vmatpush.msra.mxu0 0.0
        %1147 = vmatpush.msra.mxu0 %v826
        %1148 = vmatpush.msra.mxu0 %v825
        %1149 = vmatpush.msra.mxu0 %v824
        %1150 = vmatpush.msra.mxu0 %v823
        %1151 = vmatpush.msra.mxu0 %v822
        %1152 = vmatpush.msra.mxu0 %v821
        %1153 = vmatpush.msra.mxu0 %v820
        %1154 = vmatpush.msra.mxu0 %v819
        %1155 = vmatpush.msra.mxu0 %v818
        %1156 = vmatpush.msra.mxu0 %v817
        %1157 = vmatpush.msra.mxu0 %v816
        %1158 = vmatpush.msra.mxu0 %v815
        %1159 = vmatmul.f32.gmra.mxu0 %v873
        %v1160 = vpop.f32.mrf.mxu0
        %v1161 = vadd.f32 0.0, %v1160
        %1162 = vmatmul.f32.gmra.mxu0 %v876
        %v1163 = vpop.f32.mrf.mxu0
        %v1164 = vadd.f32 0.0, %v1163
        %1165 = vmatmul.f32.gmra.mxu0 %v879
        %v1166 = vpop.f32.mrf.mxu0
        %v1167 = vadd.f32 0.0, %v1166
        %1168 = vdwg.mxu0
        %v1169 = vadd.f32 %v1111, %v1161
        %v1170 = vadd.f32 %v1112, %v1164
        %v1171 = vadd.f32 %v1113, %v1167
        %v1172 = vld [vmem:[%s509 + $0x1] sm:$0xff]
        %v1173 = vld [vmem:[%s509 + $0x9] sm:$0xff]
        %v1174 = vld [vmem:[%s509 + $0x11] sm:$0xff]
        %v1176 = vsel %vm526, %v1172, 0
        %v1179 = vsel %vm526, %v1173, 0
        %v1182 = vsel %vm526, %v1174, 0
        %1184 = vmatpush.msra.mxu0 0.0
        %1185 = vmatpush.msra.mxu0 0.0
        %1186 = vmatpush.msra.mxu0 0.0
        %1187 = vmatpush.msra.mxu0 0.0
        %1188 = vmatpush.msra.mxu0 %v871
        %1189 = vmatpush.msra.mxu0 %v870
        %1190 = vmatpush.msra.mxu0 %v869
        %1191 = vmatpush.msra.mxu0 %v868
        %1192 = vmatpush.msra.mxu0 %v867
        %1193 = vmatpush.msra.mxu0 %v866
        %1194 = vmatpush.msra.mxu0 %v865
        %1195 = vmatpush.msra.mxu0 %v864
        %1196 = vmatpush.msra.mxu0 %v863
        %1197 = vmatpush.msra.mxu0 %v862
        %1198 = vmatpush.msra.mxu0 %v861
        %1199 = vmatpush.msra.mxu0 %v860
        %1200 = vmatmul.f32.gmra.mxu0 %v1176
        %v1201 = vpop.f32.mrf.mxu0
        %v1202 = vadd.f32 0.0, %v1201
        %1203 = vmatmul.f32.gmra.mxu0 %v1179
        %v1204 = vpop.f32.mrf.mxu0
        %v1205 = vadd.f32 0.0, %v1204
        %1206 = vmatmul.f32.gmra.mxu0 %v1182
        %v1207 = vpop.f32.mrf.mxu0
        %v1208 = vadd.f32 0.0, %v1207
        %1209 = vdwg.mxu0
        %v1210 = vadd.f32 %v1140, %v1202
        %v1211 = vadd.f32 %v1141, %v1205
        %v1212 = vadd.f32 %v1142, %v1208
        %1213 = vmatpush.msra.mxu0 0.0
        %1214 = vmatpush.msra.mxu0 0.0
        %1215 = vmatpush.msra.mxu0 0.0
        %1216 = vmatpush.msra.mxu0 0.0
        %1217 = vmatpush.msra.mxu0 %v922
        %1218 = vmatpush.msra.mxu0 %v921
        %1219 = vmatpush.msra.mxu0 %v920
        %1220 = vmatpush.msra.mxu0 %v919
        %1221 = vmatpush.msra.mxu0 %v918
        %1222 = vmatpush.msra.mxu0 %v917
        %1223 = vmatpush.msra.mxu0 %v916
        %1224 = vmatpush.msra.mxu0 %v915
        %1225 = vmatpush.msra.mxu0 %v914
        %1226 = vmatpush.msra.mxu0 %v913
        %1227 = vmatpush.msra.mxu0 %v912
        %1228 = vmatpush.msra.mxu0 %v911
        %1229 = vmatmul.f32.gmra.mxu0 %v1176
        %v1230 = vpop.f32.mrf.mxu0
        %v1231 = vadd.f32 0.0, %v1230
        %1232 = vmatmul.f32.gmra.mxu0 %v1179
        %v1233 = vpop.f32.mrf.mxu0
        %v1234 = vadd.f32 0.0, %v1233
        %1235 = vmatmul.f32.gmra.mxu0 %v1182
        %v1236 = vpop.f32.mrf.mxu0
        %v1237 = vadd.f32 0.0, %v1236
        %1238 = vdwg.mxu0
        %v1239 = vadd.f32 %v1169, %v1231
        %v1240 = vadd.f32 %v1170, %v1234
        %v1241 = vadd.f32 %v1171, %v1237
        %v1242 = vmax.f32 %v907, %v949
        %v1243 = vmax.f32 %v908, %v950
        %v1244 = vmax.f32 %v909, %v951
        %v1245 = vmax.f32 %v1210, %v1239
        %v1246 = vmax.f32 %v1211, %v1240
        %v1247 = vmax.f32 %v1212, %v1241
        %v1248 = vmax.f32 %v1242, %v1245
        %v1249 = vmax.f32 %v1243, %v1246
        %v1250 = vmax.f32 %v1244, %v1247
        %v1251 = vld [vmem:[%s2] sm:$0x1]
        %v1253 = vperm.slane %v1251, 0
        %v1255 = vadd.f32 %v1248, %v1253
        %v1256 = vadd.f32 %v1249, %v1253
        %v1257 = vadd.f32 %v1250, %v1253
        %v1258 = vmax.f32 %v1255, 0.0
        %v1259 = vmax.f32 %v1256, 0.0
        %v1260 = vmax.f32 %v1257, 0.0
        %1261 = vst [vmem:[#allocation2] sm:$0xff] %v1258
        %1262 = vst [vmem:[#allocation2 + $0x8] sm:$0xff] %v1259
        %1263 = vst [vmem:[#allocation2 + $0x10] sm:$0xff] %v1260
        %v1264 = vld [vmem:[%s662] sm:$0xff]
        %v1265 = vld [vmem:[%s662 + $0x8] sm:$0xff]
        %v1266 = vld [vmem:[%s662 + $0x10] sm:$0xff]
        %v1267 = vld [vmem:[%s1] sm:$0xff]
        %v1268 = vld [vmem:[%s1 + $0x8] sm:$0xff]
        %v1269 = vld [vmem:[%s1 + $0x10] sm:$0xff]
        %v1270 = vld [vmem:[%s1 + $0x18] sm:$0xff]
        %v1271 = vld [vmem:[%s1 + $0x20] sm:$0xff]
        %v1272 = vld [vmem:[%s1 + $0x28] sm:$0xff]
        %v1273 = vld [vmem:[%s1 + $0x30] sm:$0xff]
        %v1274 = vld [vmem:[%s1 + $0x38] sm:$0xff]
        %v1275 = vld [vmem:[%s1 + $0x40] sm:$0xff]
        %v1276 = vld [vmem:[%s1 + $0x48] sm:$0xff]
        %v1277 = vld [vmem:[%s1 + $0x50] sm:$0xff]
        %v1278 = vld [vmem:[%s1 + $0x58] sm:$0xff]
        %v1279 = vld [vmem:[%s496] sm:$0xff]
        %v1280 = vld [vmem:[%s496 + $0x8] sm:$0xff]
        %v1281 = vld [vmem:[%s496 + $0x10] sm:$0xff]
        %v1282 = vld [vmem:[%s496 + $0x18] sm:$0xff]
        %v1283 = vld [vmem:[%s496 + $0x20] sm:$0xff]
        %v1284 = vld [vmem:[%s496 + $0x28] sm:$0xff]
        %v1285 = vld [vmem:[%s496 + $0x30] sm:$0xff]
        %v1286 = vld [vmem:[%s496 + $0x38] sm:$0xff]
        %v1287 = vld [vmem:[%s496 + $0x40] sm:$0xff]
        %v1288 = vld [vmem:[%s496 + $0x48] sm:$0xff]
        %v1289 = vld [vmem:[%s496 + $0x50] sm:$0xff]
        %v1290 = vld [vmem:[%s496 + $0x58] sm:$0xff]
        %v1291 = vld [vmem:[%s759] sm:$0xff]
        %v1292 = vld [vmem:[%s759 + $0x8] sm:$0xff]
        %v1293 = vld [vmem:[%s759 + $0x10] sm:$0xff]
        %v1294 = vld [vmem:[%s513] sm:$0xff]
        %v1295 = vld [vmem:[%s513 + $0x8] sm:$0xff]
        %v1296 = vld [vmem:[%s513 + $0x10] sm:$0xff]
        %v1297 = vld [vmem:[%s513 + $0x18] sm:$0xff]
        %v1298 = vld [vmem:[%s513 + $0x20] sm:$0xff]
        %v1299 = vld [vmem:[%s513 + $0x28] sm:$0xff]
        %v1300 = vld [vmem:[%s513 + $0x30] sm:$0xff]
        %v1301 = vld [vmem:[%s513 + $0x38] sm:$0xff]
        %v1302 = vld [vmem:[%s513 + $0x40] sm:$0xff]
        %v1303 = vld [vmem:[%s513 + $0x48] sm:$0xff]
        %v1304 = vld [vmem:[%s513 + $0x50] sm:$0xff]
        %v1305 = vld [vmem:[%s513 + $0x58] sm:$0xff]
        %v1307 = vsel %vm526, %v1291, 0
        %v1310 = vsel %vm526, %v1292, 0
        %v1313 = vsel %vm526, %v1293, 0
        %1315 = vmatpush.msra.mxu0 0.0
        %1316 = vmatpush.msra.mxu0 0.0
        %1317 = vmatpush.msra.mxu0 0.0
        %1318 = vmatpush.msra.mxu0 0.0
        %1319 = vmatpush.msra.mxu0 %v1305
        %1320 = vmatpush.msra.mxu0 %v1304
        %1321 = vmatpush.msra.mxu0 %v1303
        %1322 = vmatpush.msra.mxu0 %v1302
        %1323 = vmatpush.msra.mxu0 %v1301
        %1324 = vmatpush.msra.mxu0 %v1300
        %1325 = vmatpush.msra.mxu0 %v1299
        %1326 = vmatpush.msra.mxu0 %v1298
        %1327 = vmatpush.msra.mxu0 %v1297
        %1328 = vmatpush.msra.mxu0 %v1296
        %1329 = vmatpush.msra.mxu0 %v1295
        %1330 = vmatpush.msra.mxu0 %v1294
        %1331 = vmatmul.f32.gmra.mxu0 %v1307
        %v1332 = vpop.f32.mrf.mxu0
        %v1333 = vadd.f32 0.0, %v1332
        %1334 = vmatmul.f32.gmra.mxu0 %v1310
        %v1335 = vpop.f32.mrf.mxu0
        %v1336 = vadd.f32 0.0, %v1335
        %1337 = vmatmul.f32.gmra.mxu0 %v1313
        %v1338 = vpop.f32.mrf.mxu0
        %v1339 = vadd.f32 0.0, %v1338
        %1340 = vdwg.mxu0
        %v1342 = vsel %vm526, %v1264, 0
        %v1345 = vsel %vm526, %v1265, 0
        %v1348 = vsel %vm526, %v1266, 0
        %1350 = vmatpush.msra.mxu0 0.0
        %1351 = vmatpush.msra.mxu0 0.0
        %1352 = vmatpush.msra.mxu0 0.0
        %1353 = vmatpush.msra.mxu0 0.0
        %1354 = vmatpush.msra.mxu0 %v1278
        %1355 = vmatpush.msra.mxu0 %v1277
        %1356 = vmatpush.msra.mxu0 %v1276
        %1357 = vmatpush.msra.mxu0 %v1275
        %1358 = vmatpush.msra.mxu0 %v1274
        %1359 = vmatpush.msra.mxu0 %v1273
        %1360 = vmatpush.msra.mxu0 %v1272
        %1361 = vmatpush.msra.mxu0 %v1271
        %1362 = vmatpush.msra.mxu0 %v1270
        %1363 = vmatpush.msra.mxu0 %v1269
        %1364 = vmatpush.msra.mxu0 %v1268
        %1365 = vmatpush.msra.mxu0 %v1267
        %1366 = vmatmul.f32.gmra.mxu0 %v1342
        %v1367 = vpop.f32.mrf.mxu0
        %v1368 = vadd.f32 %v1333, %v1367
        %1369 = vmatmul.f32.gmra.mxu0 %v1345
        %v1370 = vpop.f32.mrf.mxu0
        %v1371 = vadd.f32 %v1336, %v1370
        %1372 = vmatmul.f32.gmra.mxu0 %v1348
        %v1373 = vpop.f32.mrf.mxu0
        %v1374 = vadd.f32 %v1339, %v1373
        %1375 = vdwg.mxu0
        %v1376 = vld [vmem:[%s597] sm:$0xff]
        %v1377 = vld [vmem:[%s597 + $0x8] sm:$0xff]
        %v1378 = vld [vmem:[%s597 + $0x10] sm:$0xff]
        %v1379 = vld [vmem:[%s597 + $0x18] sm:$0xff]
        %v1380 = vld [vmem:[%s597 + $0x20] sm:$0xff]
        %v1381 = vld [vmem:[%s597 + $0x28] sm:$0xff]
        %v1382 = vld [vmem:[%s597 + $0x30] sm:$0xff]
        %v1383 = vld [vmem:[%s597 + $0x38] sm:$0xff]
        %v1384 = vld [vmem:[%s597 + $0x40] sm:$0xff]
        %v1385 = vld [vmem:[%s597 + $0x48] sm:$0xff]
        %v1386 = vld [vmem:[%s597 + $0x50] sm:$0xff]
        %v1387 = vld [vmem:[%s597 + $0x58] sm:$0xff]
        %1388 = vmatpush.msra.mxu0 0.0
        %1389 = vmatpush.msra.mxu0 0.0
        %1390 = vmatpush.msra.mxu0 0.0
        %1391 = vmatpush.msra.mxu0 0.0
        %1392 = vmatpush.msra.mxu0 %v1387
        %1393 = vmatpush.msra.mxu0 %v1386
        %1394 = vmatpush.msra.mxu0 %v1385
        %1395 = vmatpush.msra.mxu0 %v1384
        %1396 = vmatpush.msra.mxu0 %v1383
        %1397 = vmatpush.msra.mxu0 %v1382
        %1398 = vmatpush.msra.mxu0 %v1381
        %1399 = vmatpush.msra.mxu0 %v1380
        %1400 = vmatpush.msra.mxu0 %v1379
        %1401 = vmatpush.msra.mxu0 %v1378
        %1402 = vmatpush.msra.mxu0 %v1377
        %1403 = vmatpush.msra.mxu0 %v1376
        %1404 = vmatmul.f32.gmra.mxu0 %v1307
        %v1405 = vpop.f32.mrf.mxu0
        %v1406 = vadd.f32 0.0, %v1405
        %1407 = vmatmul.f32.gmra.mxu0 %v1310
        %v1408 = vpop.f32.mrf.mxu0
        %v1409 = vadd.f32 0.0, %v1408
        %1410 = vmatmul.f32.gmra.mxu0 %v1313
        %v1411 = vpop.f32.mrf.mxu0
        %v1412 = vadd.f32 0.0, %v1411
        %1413 = vdwg.mxu0
        %1414 = vmatpush.msra.mxu0 0.0
        %1415 = vmatpush.msra.mxu0 0.0
        %1416 = vmatpush.msra.mxu0 0.0
        %1417 = vmatpush.msra.mxu0 0.0
        %1418 = vmatpush.msra.mxu0 %v1290
        %1419 = vmatpush.msra.mxu0 %v1289
        %1420 = vmatpush.msra.mxu0 %v1288
        %1421 = vmatpush.msra.mxu0 %v1287
        %1422 = vmatpush.msra.mxu0 %v1286
        %1423 = vmatpush.msra.mxu0 %v1285
        %1424 = vmatpush.msra.mxu0 %v1284
        %1425 = vmatpush.msra.mxu0 %v1283
        %1426 = vmatpush.msra.mxu0 %v1282
        %1427 = vmatpush.msra.mxu0 %v1281
        %1428 = vmatpush.msra.mxu0 %v1280
        %1429 = vmatpush.msra.mxu0 %v1279
        %1430 = vmatmul.f32.gmra.mxu0 %v1342
        %v1431 = vpop.f32.mrf.mxu0
        %v1432 = vadd.f32 %v1406, %v1431
        %1433 = vmatmul.f32.gmra.mxu0 %v1345
        %v1434 = vpop.f32.mrf.mxu0
        %v1435 = vadd.f32 %v1409, %v1434
        %1436 = vmatmul.f32.gmra.mxu0 %v1348
        %v1437 = vpop.f32.mrf.mxu0
        %v1438 = vadd.f32 %v1412, %v1437
        %1439 = vdwg.mxu0
        %v1440 = vld [vmem:[%s441 + $0x1] sm:$0xff]
        %v1441 = vld [vmem:[%s441 + $0x9] sm:$0xff]
        %v1442 = vld [vmem:[%s441 + $0x11] sm:$0xff]
        %v1443 = vld [vmem:[%s666] sm:$0xff]
        %v1444 = vld [vmem:[%s666 + $0x8] sm:$0xff]
        %v1445 = vld [vmem:[%s666 + $0x10] sm:$0xff]
        %v1446 = vld [vmem:[%s666 + $0x18] sm:$0xff]
        %v1447 = vld [vmem:[%s666 + $0x20] sm:$0xff]
        %v1448 = vld [vmem:[%s666 + $0x28] sm:$0xff]
        %v1449 = vld [vmem:[%s666 + $0x30] sm:$0xff]
        %v1450 = vld [vmem:[%s666 + $0x38] sm:$0xff]
        %v1451 = vld [vmem:[%s666 + $0x40] sm:$0xff]
        %v1452 = vld [vmem:[%s666 + $0x48] sm:$0xff]
        %v1453 = vld [vmem:[%s666 + $0x50] sm:$0xff]
        %v1454 = vld [vmem:[%s666 + $0x58] sm:$0xff]
        %v1456 = vsel %vm526, %v1440, 0
        %v1459 = vsel %vm526, %v1441, 0
        %v1462 = vsel %vm526, %v1442, 0
        %1464 = vmatpush.msra.mxu0 0.0
        %1465 = vmatpush.msra.mxu0 0.0
        %1466 = vmatpush.msra.mxu0 0.0
        %1467 = vmatpush.msra.mxu0 0.0
        %1468 = vmatpush.msra.mxu0 %v1454
        %1469 = vmatpush.msra.mxu0 %v1453
        %1470 = vmatpush.msra.mxu0 %v1452
        %1471 = vmatpush.msra.mxu0 %v1451
        %1472 = vmatpush.msra.mxu0 %v1450
        %1473 = vmatpush.msra.mxu0 %v1449
        %1474 = vmatpush.msra.mxu0 %v1448
        %1475 = vmatpush.msra.mxu0 %v1447
        %1476 = vmatpush.msra.mxu0 %v1446
        %1477 = vmatpush.msra.mxu0 %v1445
        %1478 = vmatpush.msra.mxu0 %v1444
        %1479 = vmatpush.msra.mxu0 %v1443
        %1480 = vmatmul.f32.gmra.mxu0 %v1456
        %v1481 = vpop.f32.mrf.mxu0
        %v1482 = vadd.f32 0.0, %v1481
        %1483 = vmatmul.f32.gmra.mxu0 %v1459
        %v1484 = vpop.f32.mrf.mxu0
        %v1485 = vadd.f32 0.0, %v1484
        %1486 = vmatmul.f32.gmra.mxu0 %v1462
        %v1487 = vpop.f32.mrf.mxu0
        %v1488 = vadd.f32 0.0, %v1487
        %1489 = vdwg.mxu0
        %v1490 = vadd.f32 %v1368, %v1482
        %v1491 = vadd.f32 %v1371, %v1485
        %v1492 = vadd.f32 %v1374, %v1488
        %v1493 = vld [vmem:[%s717] sm:$0xff]
        %v1494 = vld [vmem:[%s717 + $0x8] sm:$0xff]
        %v1495 = vld [vmem:[%s717 + $0x10] sm:$0xff]
        %v1496 = vld [vmem:[%s717 + $0x18] sm:$0xff]
        %v1497 = vld [vmem:[%s717 + $0x20] sm:$0xff]
        %v1498 = vld [vmem:[%s717 + $0x28] sm:$0xff]
        %v1499 = vld [vmem:[%s717 + $0x30] sm:$0xff]
        %v1500 = vld [vmem:[%s717 + $0x38] sm:$0xff]
        %v1501 = vld [vmem:[%s717 + $0x40] sm:$0xff]
        %v1502 = vld [vmem:[%s717 + $0x48] sm:$0xff]
        %v1503 = vld [vmem:[%s717 + $0x50] sm:$0xff]
        %v1504 = vld [vmem:[%s717 + $0x58] sm:$0xff]
        %1505 = vmatpush.msra.mxu0 0.0
        %1506 = vmatpush.msra.mxu0 0.0
        %1507 = vmatpush.msra.mxu0 0.0
        %1508 = vmatpush.msra.mxu0 0.0
        %1509 = vmatpush.msra.mxu0 %v1504
        %1510 = vmatpush.msra.mxu0 %v1503
        %1511 = vmatpush.msra.mxu0 %v1502
        %1512 = vmatpush.msra.mxu0 %v1501
        %1513 = vmatpush.msra.mxu0 %v1500
        %1514 = vmatpush.msra.mxu0 %v1499
        %1515 = vmatpush.msra.mxu0 %v1498
        %1516 = vmatpush.msra.mxu0 %v1497
        %1517 = vmatpush.msra.mxu0 %v1496
        %1518 = vmatpush.msra.mxu0 %v1495
        %1519 = vmatpush.msra.mxu0 %v1494
        %1520 = vmatpush.msra.mxu0 %v1493
        %1521 = vmatmul.f32.gmra.mxu0 %v1456
        %v1522 = vpop.f32.mrf.mxu0
        %v1523 = vadd.f32 0.0, %v1522
        %1524 = vmatmul.f32.gmra.mxu0 %v1459
        %v1525 = vpop.f32.mrf.mxu0
        %v1526 = vadd.f32 0.0, %v1525
        %1527 = vmatmul.f32.gmra.mxu0 %v1462
        %v1528 = vpop.f32.mrf.mxu0
        %v1529 = vadd.f32 0.0, %v1528
        %1530 = vdwg.mxu0
        %v1531 = vadd.f32 %v1432, %v1523
        %v1532 = vadd.f32 %v1435, %v1526
        %v1533 = vadd.f32 %v1438, %v1529
        %v1534 = vld [vmem:[%s509 + $0x1] sm:$0xff]
        %v1535 = vld [vmem:[%s509 + $0x9] sm:$0xff]
        %v1536 = vld [vmem:[%s509 + $0x11] sm:$0xff]
        %v1537 = vld [vmem:[%s763] sm:$0xff]
        %v1538 = vld [vmem:[%s763 + $0x8] sm:$0xff]
        %v1539 = vld [vmem:[%s763 + $0x10] sm:$0xff]
        %v1540 = vld [vmem:[%s763 + $0x18] sm:$0xff]
        %v1541 = vld [vmem:[%s763 + $0x20] sm:$0xff]
        %v1542 = vld [vmem:[%s763 + $0x28] sm:$0xff]
        %v1543 = vld [vmem:[%s763 + $0x30] sm:$0xff]
        %v1544 = vld [vmem:[%s763 + $0x38] sm:$0xff]
        %v1545 = vld [vmem:[%s763 + $0x40] sm:$0xff]
        %v1546 = vld [vmem:[%s763 + $0x48] sm:$0xff]
        %v1547 = vld [vmem:[%s763 + $0x50] sm:$0xff]
        %v1548 = vld [vmem:[%s763 + $0x58] sm:$0xff]
        %v1550 = vsel %vm526, %v1534, 0
        %v1553 = vsel %vm526, %v1535, 0
        %v1556 = vsel %vm526, %v1536, 0
        %1558 = vmatpush.msra.mxu0 0.0
        %1559 = vmatpush.msra.mxu0 0.0
        %1560 = vmatpush.msra.mxu0 0.0
        %1561 = vmatpush.msra.mxu0 0.0
        %1562 = vmatpush.msra.mxu0 %v1548
        %1563 = vmatpush.msra.mxu0 %v1547
        %1564 = vmatpush.msra.mxu0 %v1546
        %1565 = vmatpush.msra.mxu0 %v1545
        %1566 = vmatpush.msra.mxu0 %v1544
        %1567 = vmatpush.msra.mxu0 %v1543
        %1568 = vmatpush.msra.mxu0 %v1542
        %1569 = vmatpush.msra.mxu0 %v1541
        %1570 = vmatpush.msra.mxu0 %v1540
        %1571 = vmatpush.msra.mxu0 %v1539
        %1572 = vmatpush.msra.mxu0 %v1538
        %1573 = vmatpush.msra.mxu0 %v1537
        %1574 = vmatmul.f32.gmra.mxu0 %v1550
        %v1575 = vpop.f32.mrf.mxu0
        %v1576 = vadd.f32 0.0, %v1575
        %1577 = vmatmul.f32.gmra.mxu0 %v1553
        %v1578 = vpop.f32.mrf.mxu0
        %v1579 = vadd.f32 0.0, %v1578
        %1580 = vmatmul.f32.gmra.mxu0 %v1556
        %v1581 = vpop.f32.mrf.mxu0
        %v1582 = vadd.f32 0.0, %v1581
        %1583 = vdwg.mxu0
        %v1584 = vadd.f32 %v1490, %v1576
        %v1585 = vadd.f32 %v1491, %v1579
        %v1586 = vadd.f32 %v1492, %v1582
        %v1587 = vld [vmem:[%s814] sm:$0xff]
        %v1588 = vld [vmem:[%s814 + $0x8] sm:$0xff]
        %v1589 = vld [vmem:[%s814 + $0x10] sm:$0xff]
        %v1590 = vld [vmem:[%s814 + $0x18] sm:$0xff]
        %v1591 = vld [vmem:[%s814 + $0x20] sm:$0xff]
        %v1592 = vld [vmem:[%s814 + $0x28] sm:$0xff]
        %v1593 = vld [vmem:[%s814 + $0x30] sm:$0xff]
        %v1594 = vld [vmem:[%s814 + $0x38] sm:$0xff]
        %v1595 = vld [vmem:[%s814 + $0x40] sm:$0xff]
        %v1596 = vld [vmem:[%s814 + $0x48] sm:$0xff]
        %v1597 = vld [vmem:[%s814 + $0x50] sm:$0xff]
        %v1598 = vld [vmem:[%s814 + $0x58] sm:$0xff]
        %1599 = vmatpush.msra.mxu0 0.0
        %1600 = vmatpush.msra.mxu0 0.0
        %1601 = vmatpush.msra.mxu0 0.0
        %1602 = vmatpush.msra.mxu0 0.0
        %1603 = vmatpush.msra.mxu0 %v1598
        %1604 = vmatpush.msra.mxu0 %v1597
        %1605 = vmatpush.msra.mxu0 %v1596
        %1606 = vmatpush.msra.mxu0 %v1595
        %1607 = vmatpush.msra.mxu0 %v1594
        %1608 = vmatpush.msra.mxu0 %v1593
        %1609 = vmatpush.msra.mxu0 %v1592
        %1610 = vmatpush.msra.mxu0 %v1591
        %1611 = vmatpush.msra.mxu0 %v1590
        %1612 = vmatpush.msra.mxu0 %v1589
        %1613 = vmatpush.msra.mxu0 %v1588
        %1614 = vmatpush.msra.mxu0 %v1587
        %1615 = vmatmul.f32.gmra.mxu0 %v1550
        %v1616 = vpop.f32.mrf.mxu0
        %v1617 = vadd.f32 0.0, %v1616
        %1618 = vmatmul.f32.gmra.mxu0 %v1553
        %v1619 = vpop.f32.mrf.mxu0
        %v1620 = vadd.f32 0.0, %v1619
        %1621 = vmatmul.f32.gmra.mxu0 %v1556
        %v1622 = vpop.f32.mrf.mxu0
        %v1623 = vadd.f32 0.0, %v1622
        %1624 = vdwg.mxu0
        %v1625 = vadd.f32 %v1531, %v1617
        %v1626 = vadd.f32 %v1532, %v1620
        %v1627 = vadd.f32 %v1533, %v1623
        %v1628 = vld [vmem:[%s662 + $0x1] sm:$0xff]
        %v1629 = vld [vmem:[%s662 + $0x9] sm:$0xff]
        %v1630 = vld [vmem:[%s662 + $0x11] sm:$0xff]
        %v1631 = vld [vmem:[%s859] sm:$0xff]
        %v1632 = vld [vmem:[%s859 + $0x8] sm:$0xff]
        %v1633 = vld [vmem:[%s859 + $0x10] sm:$0xff]
        %v1634 = vld [vmem:[%s859 + $0x18] sm:$0xff]
        %v1635 = vld [vmem:[%s859 + $0x20] sm:$0xff]
        %v1636 = vld [vmem:[%s859 + $0x28] sm:$0xff]
        %v1637 = vld [vmem:[%s859 + $0x30] sm:$0xff]
        %v1638 = vld [vmem:[%s859 + $0x38] sm:$0xff]
        %v1639 = vld [vmem:[%s859 + $0x40] sm:$0xff]
        %v1640 = vld [vmem:[%s859 + $0x48] sm:$0xff]
        %v1641 = vld [vmem:[%s859 + $0x50] sm:$0xff]
        %v1642 = vld [vmem:[%s859 + $0x58] sm:$0xff]
        %v1644 = vsel %vm526, %v1628, 0
        %v1647 = vsel %vm526, %v1629, 0
        %v1650 = vsel %vm526, %v1630, 0
        %1652 = vmatpush.msra.mxu0 0.0
        %1653 = vmatpush.msra.mxu0 0.0
        %1654 = vmatpush.msra.mxu0 0.0
        %1655 = vmatpush.msra.mxu0 0.0
        %1656 = vmatpush.msra.mxu0 %v1642
        %1657 = vmatpush.msra.mxu0 %v1641
        %1658 = vmatpush.msra.mxu0 %v1640
        %1659 = vmatpush.msra.mxu0 %v1639
        %1660 = vmatpush.msra.mxu0 %v1638
        %1661 = vmatpush.msra.mxu0 %v1637
        %1662 = vmatpush.msra.mxu0 %v1636
        %1663 = vmatpush.msra.mxu0 %v1635
        %1664 = vmatpush.msra.mxu0 %v1634
        %1665 = vmatpush.msra.mxu0 %v1633
        %1666 = vmatpush.msra.mxu0 %v1632
        %1667 = vmatpush.msra.mxu0 %v1631
        %1668 = vmatmul.f32.gmra.mxu0 %v1644
        %v1669 = vpop.f32.mrf.mxu0
        %v1670 = vadd.f32 0.0, %v1669
        %1671 = vmatmul.f32.gmra.mxu0 %v1647
        %v1672 = vpop.f32.mrf.mxu0
        %v1673 = vadd.f32 0.0, %v1672
        %1674 = vmatmul.f32.gmra.mxu0 %v1650
        %v1675 = vpop.f32.mrf.mxu0
        %v1676 = vadd.f32 0.0, %v1675
        %1677 = vdwg.mxu0
        %v1678 = vadd.f32 %v1584, %v1670
        %v1679 = vadd.f32 %v1585, %v1673
        %v1680 = vadd.f32 %v1586, %v1676
        %v1681 = vld [vmem:[%s910] sm:$0xff]
        %v1682 = vld [vmem:[%s910 + $0x8] sm:$0xff]
        %v1683 = vld [vmem:[%s910 + $0x10] sm:$0xff]
        %v1684 = vld [vmem:[%s910 + $0x18] sm:$0xff]
        %v1685 = vld [vmem:[%s910 + $0x20] sm:$0xff]
        %v1686 = vld [vmem:[%s910 + $0x28] sm:$0xff]
        %v1687 = vld [vmem:[%s910 + $0x30] sm:$0xff]
        %v1688 = vld [vmem:[%s910 + $0x38] sm:$0xff]
        %v1689 = vld [vmem:[%s910 + $0x40] sm:$0xff]
        %v1690 = vld [vmem:[%s910 + $0x48] sm:$0xff]
        %v1691 = vld [vmem:[%s910 + $0x50] sm:$0xff]
        %v1692 = vld [vmem:[%s910 + $0x58] sm:$0xff]
        %1693 = vmatpush.msra.mxu0 0.0
        %1694 = vmatpush.msra.mxu0 0.0
        %1695 = vmatpush.msra.mxu0 0.0
        %1696 = vmatpush.msra.mxu0 0.0
        %1697 = vmatpush.msra.mxu0 %v1692
        %1698 = vmatpush.msra.mxu0 %v1691
        %1699 = vmatpush.msra.mxu0 %v1690
        %1700 = vmatpush.msra.mxu0 %v1689
        %1701 = vmatpush.msra.mxu0 %v1688
        %1702 = vmatpush.msra.mxu0 %v1687
        %1703 = vmatpush.msra.mxu0 %v1686
        %1704 = vmatpush.msra.mxu0 %v1685
        %1705 = vmatpush.msra.mxu0 %v1684
        %1706 = vmatpush.msra.mxu0 %v1683
        %1707 = vmatpush.msra.mxu0 %v1682
        %1708 = vmatpush.msra.mxu0 %v1681
        %1709 = vmatmul.f32.gmra.mxu0 %v1644
        %v1710 = vpop.f32.mrf.mxu0
        %v1711 = vadd.f32 0.0, %v1710
        %1712 = vmatmul.f32.gmra.mxu0 %v1647
        %v1713 = vpop.f32.mrf.mxu0
        %v1714 = vadd.f32 0.0, %v1713
        %1715 = vmatmul.f32.gmra.mxu0 %v1650
        %v1716 = vpop.f32.mrf.mxu0
        %v1717 = vadd.f32 0.0, %v1716
        %1718 = vdwg.mxu0
        %v1719 = vadd.f32 %v1625, %v1711
        %v1720 = vadd.f32 %v1626, %v1714
        %v1721 = vadd.f32 %v1627, %v1717
        %1722 = vmatpush.msra.mxu0 0.0
        %1723 = vmatpush.msra.mxu0 0.0
        %1724 = vmatpush.msra.mxu0 0.0
        %1725 = vmatpush.msra.mxu0 0.0
        %1726 = vmatpush.msra.mxu0 %v1305
        %1727 = vmatpush.msra.mxu0 %v1304
        %1728 = vmatpush.msra.mxu0 %v1303
        %1729 = vmatpush.msra.mxu0 %v1302
        %1730 = vmatpush.msra.mxu0 %v1301
        %1731 = vmatpush.msra.mxu0 %v1300
        %1732 = vmatpush.msra.mxu0 %v1299
        %1733 = vmatpush.msra.mxu0 %v1298
        %1734 = vmatpush.msra.mxu0 %v1297
        %1735 = vmatpush.msra.mxu0 %v1296
        %1736 = vmatpush.msra.mxu0 %v1295
        %1737 = vmatpush.msra.mxu0 %v1294
        %1738 = vmatmul.f32.gmra.mxu0 %v1456
        %v1739 = vpop.f32.mrf.mxu0
        %v1740 = vadd.f32 0.0, %v1739
        %1741 = vmatmul.f32.gmra.mxu0 %v1459
        %v1742 = vpop.f32.mrf.mxu0
        %v1743 = vadd.f32 0.0, %v1742
        %1744 = vmatmul.f32.gmra.mxu0 %v1462
        %v1745 = vpop.f32.mrf.mxu0
        %v1746 = vadd.f32 0.0, %v1745
        %1747 = vdwg.mxu0
        %1748 = vmatpush.msra.mxu0 0.0
        %1749 = vmatpush.msra.mxu0 0.0
        %1750 = vmatpush.msra.mxu0 0.0
        %1751 = vmatpush.msra.mxu0 0.0
        %1752 = vmatpush.msra.mxu0 %v1278
        %1753 = vmatpush.msra.mxu0 %v1277
        %1754 = vmatpush.msra.mxu0 %v1276
        %1755 = vmatpush.msra.mxu0 %v1275
        %1756 = vmatpush.msra.mxu0 %v1274
        %1757 = vmatpush.msra.mxu0 %v1273
        %1758 = vmatpush.msra.mxu0 %v1272
        %1759 = vmatpush.msra.mxu0 %v1271
        %1760 = vmatpush.msra.mxu0 %v1270
        %1761 = vmatpush.msra.mxu0 %v1269
        %1762 = vmatpush.msra.mxu0 %v1268
        %1763 = vmatpush.msra.mxu0 %v1267
        %1764 = vmatmul.f32.gmra.mxu0 %v1307
        %v1765 = vpop.f32.mrf.mxu0
        %v1766 = vadd.f32 %v1740, %v1765
        %1767 = vmatmul.f32.gmra.mxu0 %v1310
        %v1768 = vpop.f32.mrf.mxu0
        %v1769 = vadd.f32 %v1743, %v1768
        %1770 = vmatmul.f32.gmra.mxu0 %v1313
        %v1771 = vpop.f32.mrf.mxu0
        %v1772 = vadd.f32 %v1746, %v1771
        %1773 = vdwg.mxu0
        %1774 = vmatpush.msra.mxu0 0.0
        %1775 = vmatpush.msra.mxu0 0.0
        %1776 = vmatpush.msra.mxu0 0.0
        %1777 = vmatpush.msra.mxu0 0.0
        %1778 = vmatpush.msra.mxu0 %v1387
        %1779 = vmatpush.msra.mxu0 %v1386
        %1780 = vmatpush.msra.mxu0 %v1385
        %1781 = vmatpush.msra.mxu0 %v1384
        %1782 = vmatpush.msra.mxu0 %v1383
        %1783 = vmatpush.msra.mxu0 %v1382
        %1784 = vmatpush.msra.mxu0 %v1381
        %1785 = vmatpush.msra.mxu0 %v1380
        %1786 = vmatpush.msra.mxu0 %v1379
        %1787 = vmatpush.msra.mxu0 %v1378
        %1788 = vmatpush.msra.mxu0 %v1377
        %1789 = vmatpush.msra.mxu0 %v1376
        %1790 = vmatmul.f32.gmra.mxu0 %v1456
        %v1791 = vpop.f32.mrf.mxu0
        %v1792 = vadd.f32 0.0, %v1791
        %1793 = vmatmul.f32.gmra.mxu0 %v1459
        %v1794 = vpop.f32.mrf.mxu0
        %v1795 = vadd.f32 0.0, %v1794
        %1796 = vmatmul.f32.gmra.mxu0 %v1462
        %v1797 = vpop.f32.mrf.mxu0
        %v1798 = vadd.f32 0.0, %v1797
        %1799 = vdwg.mxu0
        %1800 = vmatpush.msra.mxu0 0.0
        %1801 = vmatpush.msra.mxu0 0.0
        %1802 = vmatpush.msra.mxu0 0.0
        %1803 = vmatpush.msra.mxu0 0.0
        %1804 = vmatpush.msra.mxu0 %v1290
        %1805 = vmatpush.msra.mxu0 %v1289
        %1806 = vmatpush.msra.mxu0 %v1288
        %1807 = vmatpush.msra.mxu0 %v1287
        %1808 = vmatpush.msra.mxu0 %v1286
        %1809 = vmatpush.msra.mxu0 %v1285
        %1810 = vmatpush.msra.mxu0 %v1284
        %1811 = vmatpush.msra.mxu0 %v1283
        %1812 = vmatpush.msra.mxu0 %v1282
        %1813 = vmatpush.msra.mxu0 %v1281
        %1814 = vmatpush.msra.mxu0 %v1280
        %1815 = vmatpush.msra.mxu0 %v1279
        %1816 = vmatmul.f32.gmra.mxu0 %v1307
        %v1817 = vpop.f32.mrf.mxu0
        %v1818 = vadd.f32 %v1792, %v1817
        %1819 = vmatmul.f32.gmra.mxu0 %v1310
        %v1820 = vpop.f32.mrf.mxu0
        %v1821 = vadd.f32 %v1795, %v1820
        %1822 = vmatmul.f32.gmra.mxu0 %v1313
        %v1823 = vpop.f32.mrf.mxu0
        %v1824 = vadd.f32 %v1798, %v1823
        %1825 = vdwg.mxu0
        %1826 = vmatpush.msra.mxu0 0.0
        %1827 = vmatpush.msra.mxu0 0.0
        %1828 = vmatpush.msra.mxu0 0.0
        %1829 = vmatpush.msra.mxu0 0.0
        %1830 = vmatpush.msra.mxu0 %v1454
        %1831 = vmatpush.msra.mxu0 %v1453
        %1832 = vmatpush.msra.mxu0 %v1452
        %1833 = vmatpush.msra.mxu0 %v1451
        %1834 = vmatpush.msra.mxu0 %v1450
        %1835 = vmatpush.msra.mxu0 %v1449
        %1836 = vmatpush.msra.mxu0 %v1448
        %1837 = vmatpush.msra.mxu0 %v1447
        %1838 = vmatpush.msra.mxu0 %v1446
        %1839 = vmatpush.msra.mxu0 %v1445
        %1840 = vmatpush.msra.mxu0 %v1444
        %1841 = vmatpush.msra.mxu0 %v1443
        %1842 = vmatmul.f32.gmra.mxu0 %v1550
        %v1843 = vpop.f32.mrf.mxu0
        %v1844 = vadd.f32 0.0, %v1843
        %1845 = vmatmul.f32.gmra.mxu0 %v1553
        %v1846 = vpop.f32.mrf.mxu0
        %v1847 = vadd.f32 0.0, %v1846
        %1848 = vmatmul.f32.gmra.mxu0 %v1556
        %v1849 = vpop.f32.mrf.mxu0
        %v1850 = vadd.f32 0.0, %v1849
        %1851 = vdwg.mxu0
        %v1852 = vadd.f32 %v1766, %v1844
        %v1853 = vadd.f32 %v1769, %v1847
        %v1854 = vadd.f32 %v1772, %v1850
        %1855 = vmatpush.msra.mxu0 0.0
        %1856 = vmatpush.msra.mxu0 0.0
        %1857 = vmatpush.msra.mxu0 0.0
        %1858 = vmatpush.msra.mxu0 0.0
        %1859 = vmatpush.msra.mxu0 %v1504
        %1860 = vmatpush.msra.mxu0 %v1503
        %1861 = vmatpush.msra.mxu0 %v1502
        %1862 = vmatpush.msra.mxu0 %v1501
        %1863 = vmatpush.msra.mxu0 %v1500
        %1864 = vmatpush.msra.mxu0 %v1499
        %1865 = vmatpush.msra.mxu0 %v1498
        %1866 = vmatpush.msra.mxu0 %v1497
        %1867 = vmatpush.msra.mxu0 %v1496
        %1868 = vmatpush.msra.mxu0 %v1495
        %1869 = vmatpush.msra.mxu0 %v1494
        %1870 = vmatpush.msra.mxu0 %v1493
        %1871 = vmatmul.f32.gmra.mxu0 %v1550
        %v1872 = vpop.f32.mrf.mxu0
        %v1873 = vadd.f32 0.0, %v1872
        %1874 = vmatmul.f32.gmra.mxu0 %v1553
        %v1875 = vpop.f32.mrf.mxu0
        %v1876 = vadd.f32 0.0, %v1875
        %1877 = vmatmul.f32.gmra.mxu0 %v1556
        %v1878 = vpop.f32.mrf.mxu0
        %v1879 = vadd.f32 0.0, %v1878
        %1880 = vdwg.mxu0
        %v1881 = vadd.f32 %v1818, %v1873
        %v1882 = vadd.f32 %v1821, %v1876
        %v1883 = vadd.f32 %v1824, %v1879
        %1884 = vmatpush.msra.mxu0 0.0
        %1885 = vmatpush.msra.mxu0 0.0
        %1886 = vmatpush.msra.mxu0 0.0
        %1887 = vmatpush.msra.mxu0 0.0
        %1888 = vmatpush.msra.mxu0 %v1548
        %1889 = vmatpush.msra.mxu0 %v1547
        %1890 = vmatpush.msra.mxu0 %v1546
        %1891 = vmatpush.msra.mxu0 %v1545
        %1892 = vmatpush.msra.mxu0 %v1544
        %1893 = vmatpush.msra.mxu0 %v1543
        %1894 = vmatpush.msra.mxu0 %v1542
        %1895 = vmatpush.msra.mxu0 %v1541
        %1896 = vmatpush.msra.mxu0 %v1540
        %1897 = vmatpush.msra.mxu0 %v1539
        %1898 = vmatpush.msra.mxu0 %v1538
        %1899 = vmatpush.msra.mxu0 %v1537
        %1900 = vmatmul.f32.gmra.mxu0 %v1644
        %v1901 = vpop.f32.mrf.mxu0
        %v1902 = vadd.f32 0.0, %v1901
        %1903 = vmatmul.f32.gmra.mxu0 %v1647
        %v1904 = vpop.f32.mrf.mxu0
        %v1905 = vadd.f32 0.0, %v1904
        %1906 = vmatmul.f32.gmra.mxu0 %v1650
        %v1907 = vpop.f32.mrf.mxu0
        %v1908 = vadd.f32 0.0, %v1907
        %1909 = vdwg.mxu0
        %v1910 = vadd.f32 %v1852, %v1902
        %v1911 = vadd.f32 %v1853, %v1905
        %v1912 = vadd.f32 %v1854, %v1908
        %1913 = vmatpush.msra.mxu0 0.0
        %1914 = vmatpush.msra.mxu0 0.0
        %1915 = vmatpush.msra.mxu0 0.0
        %1916 = vmatpush.msra.mxu0 0.0
        %1917 = vmatpush.msra.mxu0 %v1598
        %1918 = vmatpush.msra.mxu0 %v1597
        %1919 = vmatpush.msra.mxu0 %v1596
        %1920 = vmatpush.msra.mxu0 %v1595
        %1921 = vmatpush.msra.mxu0 %v1594
        %1922 = vmatpush.msra.mxu0 %v1593
        %1923 = vmatpush.msra.mxu0 %v1592
        %1924 = vmatpush.msra.mxu0 %v1591
        %1925 = vmatpush.msra.mxu0 %v1590
        %1926 = vmatpush.msra.mxu0 %v1589
        %1927 = vmatpush.msra.mxu0 %v1588
        %1928 = vmatpush.msra.mxu0 %v1587
        %1929 = vmatmul.f32.gmra.mxu0 %v1644
        %v1930 = vpop.f32.mrf.mxu0
        %v1931 = vadd.f32 0.0, %v1930
        %1932 = vmatmul.f32.gmra.mxu0 %v1647
        %v1933 = vpop.f32.mrf.mxu0
        %v1934 = vadd.f32 0.0, %v1933
        %1935 = vmatmul.f32.gmra.mxu0 %v1650
        %v1936 = vpop.f32.mrf.mxu0
        %v1937 = vadd.f32 0.0, %v1936
        %1938 = vdwg.mxu0
        %v1939 = vadd.f32 %v1881, %v1931
        %v1940 = vadd.f32 %v1882, %v1934
        %v1941 = vadd.f32 %v1883, %v1937
        %v1942 = vld [vmem:[%s759 + $0x1] sm:$0xff]
        %v1943 = vld [vmem:[%s759 + $0x9] sm:$0xff]
        %v1944 = vld [vmem:[%s759 + $0x11] sm:$0xff]
        %v1946 = vsel %vm526, %v1942, 0
        %v1949 = vsel %vm526, %v1943, 0
        %v1952 = vsel %vm526, %v1944, 0
        %1954 = vmatpush.msra.mxu0 0.0
        %1955 = vmatpush.msra.mxu0 0.0
        %1956 = vmatpush.msra.mxu0 0.0
        %1957 = vmatpush.msra.mxu0 0.0
        %1958 = vmatpush.msra.mxu0 %v1642
        %1959 = vmatpush.msra.mxu0 %v1641
        %1960 = vmatpush.msra.mxu0 %v1640
        %1961 = vmatpush.msra.mxu0 %v1639
        %1962 = vmatpush.msra.mxu0 %v1638
        %1963 = vmatpush.msra.mxu0 %v1637
        %1964 = vmatpush.msra.mxu0 %v1636
        %1965 = vmatpush.msra.mxu0 %v1635
        %1966 = vmatpush.msra.mxu0 %v1634
        %1967 = vmatpush.msra.mxu0 %v1633
        %1968 = vmatpush.msra.mxu0 %v1632
        %1969 = vmatpush.msra.mxu0 %v1631
        %1970 = vmatmul.f32.gmra.mxu0 %v1946
        %v1971 = vpop.f32.mrf.mxu0
        %v1972 = vadd.f32 0.0, %v1971
        %1973 = vmatmul.f32.gmra.mxu0 %v1949
        %v1974 = vpop.f32.mrf.mxu0
        %v1975 = vadd.f32 0.0, %v1974
        %1976 = vmatmul.f32.gmra.mxu0 %v1952
        %v1977 = vpop.f32.mrf.mxu0
        %v1978 = vadd.f32 0.0, %v1977
        %1979 = vdwg.mxu0
        %v1980 = vadd.f32 %v1910, %v1972
        %v1981 = vadd.f32 %v1911, %v1975
        %v1982 = vadd.f32 %v1912, %v1978
        %1983 = vmatpush.msra.mxu0 0.0
        %1984 = vmatpush.msra.mxu0 0.0
        %1985 = vmatpush.msra.mxu0 0.0
        %1986 = vmatpush.msra.mxu0 0.0
        %1987 = vmatpush.msra.mxu0 %v1692
        %1988 = vmatpush.msra.mxu0 %v1691
        %1989 = vmatpush.msra.mxu0 %v1690
        %1990 = vmatpush.msra.mxu0 %v1689
        %1991 = vmatpush.msra.mxu0 %v1688
        %1992 = vmatpush.msra.mxu0 %v1687
        %1993 = vmatpush.msra.mxu0 %v1686
        %1994 = vmatpush.msra.mxu0 %v1685
        %1995 = vmatpush.msra.mxu0 %v1684
        %1996 = vmatpush.msra.mxu0 %v1683
        %1997 = vmatpush.msra.mxu0 %v1682
        %1998 = vmatpush.msra.mxu0 %v1681
        %1999 = vmatmul.f32.gmra.mxu0 %v1946
        %v2000 = vpop.f32.mrf.mxu0
        %v2001 = vadd.f32 0.0, %v2000
        %2002 = vmatmul.f32.gmra.mxu0 %v1949
        %v2003 = vpop.f32.mrf.mxu0
        %v2004 = vadd.f32 0.0, %v2003
        %2005 = vmatmul.f32.gmra.mxu0 %v1952
        %v2006 = vpop.f32.mrf.mxu0
        %v2007 = vadd.f32 0.0, %v2006
        %2008 = vdwg.mxu0
        %v2009 = vadd.f32 %v1939, %v2001
        %v2010 = vadd.f32 %v1940, %v2004
        %v2011 = vadd.f32 %v1941, %v2007
        %v2012 = vmax.f32 %v1678, %v1719
        %v2013 = vmax.f32 %v1679, %v1720
        %v2014 = vmax.f32 %v1680, %v1721
        %v2015 = vmax.f32 %v1980, %v2009
        %v2016 = vmax.f32 %v1981, %v2010
        %v2017 = vmax.f32 %v1982, %v2011
        %v2018 = vmax.f32 %v2012, %v2015
        %v2019 = vmax.f32 %v2013, %v2016
        %v2020 = vmax.f32 %v2014, %v2017
        %v2021 = vld [vmem:[%s2] sm:$0x1]
        %v2023 = vperm.slane %v2021, 0
        %v2025 = vadd.f32 %v2018, %v2023
        %v2026 = vadd.f32 %v2019, %v2023
        %v2027 = vadd.f32 %v2020, %v2023
        %v2028 = vmax.f32 %v2025, 0.0
        %v2029 = vmax.f32 %v2026, 0.0
        %v2030 = vmax.f32 %v2027, 0.0
        %s2031 = scalar_lea.vmem [#allocation2], 24
        %2032 = vst [vmem:[%s2031] sm:$0xff] %v2028
        %2033 = vst [vmem:[%s2031 + $0x8] sm:$0xff] %v2029
        %2034 = vst [vmem:[%s2031 + $0x10] sm:$0xff] %v2030
        %v2035 = vld [vmem:[#allocation2] sm:$0xff]
        %v2036 = vld [vmem:[#allocation2 + $0x8] sm:$0xff]
        %v2037 = vld [vmem:[%s3] sm:$0xff]
        %v2038 = vld [vmem:[%s3 + $0x8] sm:$0xff]
        %v2039 = vld [vmem:[%s3 + $0x10] sm:$0xff]
        %v2040 = vld [vmem:[%s3 + $0x18] sm:$0xff]
        %v2041 = vld [vmem:[%s3 + $0x20] sm:$0xff]
        %v2042 = vld [vmem:[%s3 + $0x28] sm:$0xff]
        %v2043 = vld [vmem:[%s3 + $0x30] sm:$0xff]
        %v2044 = vld [vmem:[%s3 + $0x38] sm:$0xff]
        %v2045 = vld [vmem:[%s3 + $0x40] sm:$0xff]
        %v2046 = vld [vmem:[%s3 + $0x48] sm:$0xff]
        %v2047 = vld [vmem:[%s3 + $0x50] sm:$0xff]
        %v2048 = vld [vmem:[%s3 + $0x58] sm:$0xff]
        %v2049 = vld [vmem:[%s3 + $0x60] sm:$0xff]
        %v2050 = vld [vmem:[%s3 + $0x68] sm:$0xff]
        %v2051 = vld [vmem:[%s3 + $0x70] sm:$0xff]
        %v2052 = vld [vmem:[%s3 + $0x78] sm:$0xff]
        %s2053 = scalar_lea.vmem %s3, 640
        %v2054 = vld [vmem:[%s2053] sm:$0xff]
        %v2055 = vld [vmem:[%s2053 + $0x8] sm:$0xff]
        %v2056 = vld [vmem:[%s2053 + $0x10] sm:$0xff]
        %v2057 = vld [vmem:[%s2053 + $0x18] sm:$0xff]
        %v2058 = vld [vmem:[%s2053 + $0x20] sm:$0xff]
        %v2059 = vld [vmem:[%s2053 + $0x28] sm:$0xff]
        %v2060 = vld [vmem:[%s2053 + $0x30] sm:$0xff]
        %v2061 = vld [vmem:[%s2053 + $0x38] sm:$0xff]
        %v2062 = vld [vmem:[%s2053 + $0x40] sm:$0xff]
        %v2063 = vld [vmem:[%s2053 + $0x48] sm:$0xff]
        %v2064 = vld [vmem:[%s2053 + $0x50] sm:$0xff]
        %v2065 = vld [vmem:[%s2053 + $0x58] sm:$0xff]
        %v2066 = vld [vmem:[%s2053 + $0x60] sm:$0xff]
        %v2067 = vld [vmem:[%s2053 + $0x68] sm:$0xff]
        %v2068 = vld [vmem:[%s2053 + $0x70] sm:$0xff]
        %v2069 = vld [vmem:[%s2053 + $0x78] sm:$0xff]
        %v2070 = vld [vmem:[%s2031] sm:$0xff]
        %v2071 = vld [vmem:[%s2031 + $0x8] sm:$0xff]
        %s2072 = scalar_lea.vmem %s3, 128
        %v2073 = vld [vmem:[%s2072] sm:$0xff]
        %v2074 = vld [vmem:[%s2072 + $0x8] sm:$0xff]
        %v2075 = vld [vmem:[%s2072 + $0x10] sm:$0xff]
        %v2076 = vld [vmem:[%s2072 + $0x18] sm:$0xff]
        %v2077 = vld [vmem:[%s2072 + $0x20] sm:$0xff]
        %v2078 = vld [vmem:[%s2072 + $0x28] sm:$0xff]
        %v2079 = vld [vmem:[%s2072 + $0x30] sm:$0xff]
        %v2080 = vld [vmem:[%s2072 + $0x38] sm:$0xff]
        %v2081 = vld [vmem:[%s2072 + $0x40] sm:$0xff]
        %v2082 = vld [vmem:[%s2072 + $0x48] sm:$0xff]
        %v2083 = vld [vmem:[%s2072 + $0x50] sm:$0xff]
        %v2084 = vld [vmem:[%s2072 + $0x58] sm:$0xff]
        %v2085 = vld [vmem:[%s2072 + $0x60] sm:$0xff]
        %v2086 = vld [vmem:[%s2072 + $0x68] sm:$0xff]
        %v2087 = vld [vmem:[%s2072 + $0x70] sm:$0xff]
        %v2088 = vld [vmem:[%s2072 + $0x78] sm:$0xff]
        %2089 = vmatpush.msra.mxu0 %v2088
        %2090 = vmatpush.msra.mxu0 %v2087
        %2091 = vmatpush.msra.mxu0 %v2086
        %2092 = vmatpush.msra.mxu0 %v2085
        %2093 = vmatpush.msra.mxu0 %v2084
        %2094 = vmatpush.msra.mxu0 %v2083
        %2095 = vmatpush.msra.mxu0 %v2082
        %2096 = vmatpush.msra.mxu0 %v2081
        %2097 = vmatpush.msra.mxu0 %v2080
        %2098 = vmatpush.msra.mxu0 %v2079
        %2099 = vmatpush.msra.mxu0 %v2078
        %2100 = vmatpush.msra.mxu0 %v2077
        %2101 = vmatpush.msra.mxu0 %v2076
        %2102 = vmatpush.msra.mxu0 %v2075
        %2103 = vmatpush.msra.mxu0 %v2074
        %2104 = vmatpush.msra.mxu0 %v2073
        %2105 = vmatmul.f32.gmra.mxu0 %v2070
        %v2106 = vpop.f32.mrf.mxu0
        %v2107 = vadd.f32 0.0, %v2106
        %2108 = vmatmul.f32.gmra.mxu0 %v2071
        %v2109 = vpop.f32.mrf.mxu0
        %v2110 = vadd.f32 0.0, %v2109
        %2111 = vdwg.mxu0
        %2112 = vmatpush.msra.mxu0 %v2052
        %2113 = vmatpush.msra.mxu0 %v2051
        %2114 = vmatpush.msra.mxu0 %v2050
        %2115 = vmatpush.msra.mxu0 %v2049
        %2116 = vmatpush.msra.mxu0 %v2048
        %2117 = vmatpush.msra.mxu0 %v2047
        %2118 = vmatpush.msra.mxu0 %v2046
        %2119 = vmatpush.msra.mxu0 %v2045
        %2120 = vmatpush.msra.mxu0 %v2044
        %2121 = vmatpush.msra.mxu0 %v2043
        %2122 = vmatpush.msra.mxu0 %v2042
        %2123 = vmatpush.msra.mxu0 %v2041
        %2124 = vmatpush.msra.mxu0 %v2040
        %2125 = vmatpush.msra.mxu0 %v2039
        %2126 = vmatpush.msra.mxu0 %v2038
        %2127 = vmatpush.msra.mxu0 %v2037
        %2128 = vmatmul.f32.gmra.mxu0 %v2035
        %v2129 = vpop.f32.mrf.mxu0
        %v2130 = vadd.f32 %v2107, %v2129
        %2131 = vmatmul.f32.gmra.mxu0 %v2036
        %v2132 = vpop.f32.mrf.mxu0
        %v2133 = vadd.f32 %v2110, %v2132
        %2134 = vdwg.mxu0
        %s2135 = scalar_lea.vmem %s3, 768
        %v2136 = vld [vmem:[%s2135] sm:$0xff]
        %v2137 = vld [vmem:[%s2135 + $0x8] sm:$0xff]
        %v2138 = vld [vmem:[%s2135 + $0x10] sm:$0xff]
        %v2139 = vld [vmem:[%s2135 + $0x18] sm:$0xff]
        %v2140 = vld [vmem:[%s2135 + $0x20] sm:$0xff]
        %v2141 = vld [vmem:[%s2135 + $0x28] sm:$0xff]
        %v2142 = vld [vmem:[%s2135 + $0x30] sm:$0xff]
        %v2143 = vld [vmem:[%s2135 + $0x38] sm:$0xff]
        %v2144 = vld [vmem:[%s2135 + $0x40] sm:$0xff]
        %v2145 = vld [vmem:[%s2135 + $0x48] sm:$0xff]
        %v2146 = vld [vmem:[%s2135 + $0x50] sm:$0xff]
        %v2147 = vld [vmem:[%s2135 + $0x58] sm:$0xff]
        %v2148 = vld [vmem:[%s2135 + $0x60] sm:$0xff]
        %v2149 = vld [vmem:[%s2135 + $0x68] sm:$0xff]
        %v2150 = vld [vmem:[%s2135 + $0x70] sm:$0xff]
        %v2151 = vld [vmem:[%s2135 + $0x78] sm:$0xff]
        %2152 = vmatpush.msra.mxu0 %v2151
        %2153 = vmatpush.msra.mxu0 %v2150
        %2154 = vmatpush.msra.mxu0 %v2149
        %2155 = vmatpush.msra.mxu0 %v2148
        %2156 = vmatpush.msra.mxu0 %v2147
        %2157 = vmatpush.msra.mxu0 %v2146
        %2158 = vmatpush.msra.mxu0 %v2145
        %2159 = vmatpush.msra.mxu0 %v2144
        %2160 = vmatpush.msra.mxu0 %v2143
        %2161 = vmatpush.msra.mxu0 %v2142
        %2162 = vmatpush.msra.mxu0 %v2141
        %2163 = vmatpush.msra.mxu0 %v2140
        %2164 = vmatpush.msra.mxu0 %v2139
        %2165 = vmatpush.msra.mxu0 %v2138
        %2166 = vmatpush.msra.mxu0 %v2137
        %2167 = vmatpush.msra.mxu0 %v2136
        %2168 = vmatmul.f32.gmra.mxu0 %v2070
        %v2169 = vpop.f32.mrf.mxu0
        %v2170 = vadd.f32 0.0, %v2169
        %2171 = vmatmul.f32.gmra.mxu0 %v2071
        %v2172 = vpop.f32.mrf.mxu0
        %v2173 = vadd.f32 0.0, %v2172
        %2174 = vdwg.mxu0
        %2175 = vmatpush.msra.mxu0 %v2069
        %2176 = vmatpush.msra.mxu0 %v2068
        %2177 = vmatpush.msra.mxu0 %v2067
        %2178 = vmatpush.msra.mxu0 %v2066
        %2179 = vmatpush.msra.mxu0 %v2065
        %2180 = vmatpush.msra.mxu0 %v2064
        %2181 = vmatpush.msra.mxu0 %v2063
        %2182 = vmatpush.msra.mxu0 %v2062
        %2183 = vmatpush.msra.mxu0 %v2061
        %2184 = vmatpush.msra.mxu0 %v2060
        %2185 = vmatpush.msra.mxu0 %v2059
        %2186 = vmatpush.msra.mxu0 %v2058
        %2187 = vmatpush.msra.mxu0 %v2057
        %2188 = vmatpush.msra.mxu0 %v2056
        %2189 = vmatpush.msra.mxu0 %v2055
        %2190 = vmatpush.msra.mxu0 %v2054
        %2191 = vmatmul.f32.gmra.mxu0 %v2035
        %v2192 = vpop.f32.mrf.mxu0
        %v2193 = vadd.f32 %v2170, %v2192
        %2194 = vmatmul.f32.gmra.mxu0 %v2036
        %v2195 = vpop.f32.mrf.mxu0
        %v2196 = vadd.f32 %v2173, %v2195
        %2197 = vdwg.mxu0
        %v2198 = vld [vmem:[#allocation2 + $0x1] sm:$0xff]
        %v2199 = vld [vmem:[#allocation2 + $0x9] sm:$0xff]
        %s2200 = scalar_lea.vmem %s3, 256
        %v2201 = vld [vmem:[%s2200] sm:$0xff]
        %v2202 = vld [vmem:[%s2200 + $0x8] sm:$0xff]
        %v2203 = vld [vmem:[%s2200 + $0x10] sm:$0xff]
        %v2204 = vld [vmem:[%s2200 + $0x18] sm:$0xff]
        %v2205 = vld [vmem:[%s2200 + $0x20] sm:$0xff]
        %v2206 = vld [vmem:[%s2200 + $0x28] sm:$0xff]
        %v2207 = vld [vmem:[%s2200 + $0x30] sm:$0xff]
        %v2208 = vld [vmem:[%s2200 + $0x38] sm:$0xff]
        %v2209 = vld [vmem:[%s2200 + $0x40] sm:$0xff]
        %v2210 = vld [vmem:[%s2200 + $0x48] sm:$0xff]
        %v2211 = vld [vmem:[%s2200 + $0x50] sm:$0xff]
        %v2212 = vld [vmem:[%s2200 + $0x58] sm:$0xff]
        %v2213 = vld [vmem:[%s2200 + $0x60] sm:$0xff]
        %v2214 = vld [vmem:[%s2200 + $0x68] sm:$0xff]
        %v2215 = vld [vmem:[%s2200 + $0x70] sm:$0xff]
        %v2216 = vld [vmem:[%s2200 + $0x78] sm:$0xff]
        %2217 = vmatpush.msra.mxu0 %v2216
        %2218 = vmatpush.msra.mxu0 %v2215
        %2219 = vmatpush.msra.mxu0 %v2214
        %2220 = vmatpush.msra.mxu0 %v2213
        %2221 = vmatpush.msra.mxu0 %v2212
        %2222 = vmatpush.msra.mxu0 %v2211
        %2223 = vmatpush.msra.mxu0 %v2210
        %2224 = vmatpush.msra.mxu0 %v2209
        %2225 = vmatpush.msra.mxu0 %v2208
        %2226 = vmatpush.msra.mxu0 %v2207
        %2227 = vmatpush.msra.mxu0 %v2206
        %2228 = vmatpush.msra.mxu0 %v2205
        %2229 = vmatpush.msra.mxu0 %v2204
        %2230 = vmatpush.msra.mxu0 %v2203
        %2231 = vmatpush.msra.mxu0 %v2202
        %2232 = vmatpush.msra.mxu0 %v2201
        %2233 = vmatmul.f32.gmra.mxu0 %v2198
        %v2234 = vpop.f32.mrf.mxu0
        %v2235 = vadd.f32 0.0, %v2234
        %2236 = vmatmul.f32.gmra.mxu0 %v2199
        %v2237 = vpop.f32.mrf.mxu0
        %v2238 = vadd.f32 0.0, %v2237
        %2239 = vdwg.mxu0
        %v2240 = vadd.f32 %v2130, %v2235
        %v2241 = vadd.f32 %v2133, %v2238
        %s2242 = scalar_lea.vmem %s3, 896
        %v2243 = vld [vmem:[%s2242] sm:$0xff]
        %v2244 = vld [vmem:[%s2242 + $0x8] sm:$0xff]
        %v2245 = vld [vmem:[%s2242 + $0x10] sm:$0xff]
        %v2246 = vld [vmem:[%s2242 + $0x18] sm:$0xff]
        %v2247 = vld [vmem:[%s2242 + $0x20] sm:$0xff]
        %v2248 = vld [vmem:[%s2242 + $0x28] sm:$0xff]
        %v2249 = vld [vmem:[%s2242 + $0x30] sm:$0xff]
        %v2250 = vld [vmem:[%s2242 + $0x38] sm:$0xff]
        %v2251 = vld [vmem:[%s2242 + $0x40] sm:$0xff]
        %v2252 = vld [vmem:[%s2242 + $0x48] sm:$0xff]
        %v2253 = vld [vmem:[%s2242 + $0x50] sm:$0xff]
        %v2254 = vld [vmem:[%s2242 + $0x58] sm:$0xff]
        %v2255 = vld [vmem:[%s2242 + $0x60] sm:$0xff]
        %v2256 = vld [vmem:[%s2242 + $0x68] sm:$0xff]
        %v2257 = vld [vmem:[%s2242 + $0x70] sm:$0xff]
        %v2258 = vld [vmem:[%s2242 + $0x78] sm:$0xff]
        %2259 = vmatpush.msra.mxu0 %v2258
        %2260 = vmatpush.msra.mxu0 %v2257
        %2261 = vmatpush.msra.mxu0 %v2256
        %2262 = vmatpush.msra.mxu0 %v2255
        %2263 = vmatpush.msra.mxu0 %v2254
        %2264 = vmatpush.msra.mxu0 %v2253
        %2265 = vmatpush.msra.mxu0 %v2252
        %2266 = vmatpush.msra.mxu0 %v2251
        %2267 = vmatpush.msra.mxu0 %v2250
        %2268 = vmatpush.msra.mxu0 %v2249
        %2269 = vmatpush.msra.mxu0 %v2248
        %2270 = vmatpush.msra.mxu0 %v2247
        %2271 = vmatpush.msra.mxu0 %v2246
        %2272 = vmatpush.msra.mxu0 %v2245
        %2273 = vmatpush.msra.mxu0 %v2244
        %2274 = vmatpush.msra.mxu0 %v2243
        %2275 = vmatmul.f32.gmra.mxu0 %v2198
        %v2276 = vpop.f32.mrf.mxu0
        %v2277 = vadd.f32 0.0, %v2276
        %2278 = vmatmul.f32.gmra.mxu0 %v2199
        %v2279 = vpop.f32.mrf.mxu0
        %v2280 = vadd.f32 0.0, %v2279
        %2281 = vdwg.mxu0
        %v2282 = vadd.f32 %v2193, %v2277
        %v2283 = vadd.f32 %v2196, %v2280
        %v2284 = vld [vmem:[%s2031 + $0x1] sm:$0xff]
        %v2285 = vld [vmem:[%s2031 + $0x9] sm:$0xff]
        %s2286 = scalar_lea.vmem %s3, 384
        %v2287 = vld [vmem:[%s2286] sm:$0xff]
        %v2288 = vld [vmem:[%s2286 + $0x8] sm:$0xff]
        %v2289 = vld [vmem:[%s2286 + $0x10] sm:$0xff]
        %v2290 = vld [vmem:[%s2286 + $0x18] sm:$0xff]
        %v2291 = vld [vmem:[%s2286 + $0x20] sm:$0xff]
        %v2292 = vld [vmem:[%s2286 + $0x28] sm:$0xff]
        %v2293 = vld [vmem:[%s2286 + $0x30] sm:$0xff]
        %v2294 = vld [vmem:[%s2286 + $0x38] sm:$0xff]
        %v2295 = vld [vmem:[%s2286 + $0x40] sm:$0xff]
        %v2296 = vld [vmem:[%s2286 + $0x48] sm:$0xff]
        %v2297 = vld [vmem:[%s2286 + $0x50] sm:$0xff]
        %v2298 = vld [vmem:[%s2286 + $0x58] sm:$0xff]
        %v2299 = vld [vmem:[%s2286 + $0x60] sm:$0xff]
        %v2300 = vld [vmem:[%s2286 + $0x68] sm:$0xff]
        %v2301 = vld [vmem:[%s2286 + $0x70] sm:$0xff]
        %v2302 = vld [vmem:[%s2286 + $0x78] sm:$0xff]
        %2303 = vmatpush.msra.mxu0 %v2302
        %2304 = vmatpush.msra.mxu0 %v2301
        %2305 = vmatpush.msra.mxu0 %v2300
        %2306 = vmatpush.msra.mxu0 %v2299
        %2307 = vmatpush.msra.mxu0 %v2298
        %2308 = vmatpush.msra.mxu0 %v2297
        %2309 = vmatpush.msra.mxu0 %v2296
        %2310 = vmatpush.msra.mxu0 %v2295
        %2311 = vmatpush.msra.mxu0 %v2294
        %2312 = vmatpush.msra.mxu0 %v2293
        %2313 = vmatpush.msra.mxu0 %v2292
        %2314 = vmatpush.msra.mxu0 %v2291
        %2315 = vmatpush.msra.mxu0 %v2290
        %2316 = vmatpush.msra.mxu0 %v2289
        %2317 = vmatpush.msra.mxu0 %v2288
        %2318 = vmatpush.msra.mxu0 %v2287
        %2319 = vmatmul.f32.gmra.mxu0 %v2284
        %v2320 = vpop.f32.mrf.mxu0
        %v2321 = vadd.f32 0.0, %v2320
        %2322 = vmatmul.f32.gmra.mxu0 %v2285
        %v2323 = vpop.f32.mrf.mxu0
        %v2324 = vadd.f32 0.0, %v2323
        %2325 = vdwg.mxu0
        %v2326 = vadd.f32 %v2240, %v2321
        %v2327 = vadd.f32 %v2241, %v2324
        %s2328 = scalar_lea.vmem %s3, 1024
        %v2329 = vld [vmem:[%s2328] sm:$0xff]
        %v2330 = vld [vmem:[%s2328 + $0x8] sm:$0xff]
        %v2331 = vld [vmem:[%s2328 + $0x10] sm:$0xff]
        %v2332 = vld [vmem:[%s2328 + $0x18] sm:$0xff]
        %v2333 = vld [vmem:[%s2328 + $0x20] sm:$0xff]
        %v2334 = vld [vmem:[%s2328 + $0x28] sm:$0xff]
        %v2335 = vld [vmem:[%s2328 + $0x30] sm:$0xff]
        %v2336 = vld [vmem:[%s2328 + $0x38] sm:$0xff]
        %v2337 = vld [vmem:[%s2328 + $0x40] sm:$0xff]
        %v2338 = vld [vmem:[%s2328 + $0x48] sm:$0xff]
        %v2339 = vld [vmem:[%s2328 + $0x50] sm:$0xff]
        %v2340 = vld [vmem:[%s2328 + $0x58] sm:$0xff]
        %v2341 = vld [vmem:[%s2328 + $0x60] sm:$0xff]
        %v2342 = vld [vmem:[%s2328 + $0x68] sm:$0xff]
        %v2343 = vld [vmem:[%s2328 + $0x70] sm:$0xff]
        %v2344 = vld [vmem:[%s2328 + $0x78] sm:$0xff]
        %2345 = vmatpush.msra.mxu0 %v2344
        %2346 = vmatpush.msra.mxu0 %v2343
        %2347 = vmatpush.msra.mxu0 %v2342
        %2348 = vmatpush.msra.mxu0 %v2341
        %2349 = vmatpush.msra.mxu0 %v2340
        %2350 = vmatpush.msra.mxu0 %v2339
        %2351 = vmatpush.msra.mxu0 %v2338
        %2352 = vmatpush.msra.mxu0 %v2337
        %2353 = vmatpush.msra.mxu0 %v2336
        %2354 = vmatpush.msra.mxu0 %v2335
        %2355 = vmatpush.msra.mxu0 %v2334
        %2356 = vmatpush.msra.mxu0 %v2333
        %2357 = vmatpush.msra.mxu0 %v2332
        %2358 = vmatpush.msra.mxu0 %v2331
        %2359 = vmatpush.msra.mxu0 %v2330
        %2360 = vmatpush.msra.mxu0 %v2329
        %2361 = vmatmul.f32.gmra.mxu0 %v2284
        %v2362 = vpop.f32.mrf.mxu0
        %v2363 = vadd.f32 0.0, %v2362
        %2364 = vmatmul.f32.gmra.mxu0 %v2285
        %v2365 = vpop.f32.mrf.mxu0
        %v2366 = vadd.f32 0.0, %v2365
        %2367 = vdwg.mxu0
        %v2368 = vadd.f32 %v2282, %v2363
        %v2369 = vadd.f32 %v2283, %v2366
        %v2370 = vld [vmem:[#allocation2 + $0x2] sm:$0xff]
        %v2371 = vld [vmem:[#allocation2 + $0xa] sm:$0xff]
        %s2372 = scalar_lea.vmem %s3, 512
        %v2373 = vld [vmem:[%s2372] sm:$0xff]
        %v2374 = vld [vmem:[%s2372 + $0x8] sm:$0xff]
        %v2375 = vld [vmem:[%s2372 + $0x10] sm:$0xff]
        %v2376 = vld [vmem:[%s2372 + $0x18] sm:$0xff]
        %v2377 = vld [vmem:[%s2372 + $0x20] sm:$0xff]
        %v2378 = vld [vmem:[%s2372 + $0x28] sm:$0xff]
        %v2379 = vld [vmem:[%s2372 + $0x30] sm:$0xff]
        %v2380 = vld [vmem:[%s2372 + $0x38] sm:$0xff]
        %v2381 = vld [vmem:[%s2372 + $0x40] sm:$0xff]
        %v2382 = vld [vmem:[%s2372 + $0x48] sm:$0xff]
        %v2383 = vld [vmem:[%s2372 + $0x50] sm:$0xff]
        %v2384 = vld [vmem:[%s2372 + $0x58] sm:$0xff]
        %v2385 = vld [vmem:[%s2372 + $0x60] sm:$0xff]
        %v2386 = vld [vmem:[%s2372 + $0x68] sm:$0xff]
        %v2387 = vld [vmem:[%s2372 + $0x70] sm:$0xff]
        %v2388 = vld [vmem:[%s2372 + $0x78] sm:$0xff]
        %2389 = vmatpush.msra.mxu0 %v2388
        %2390 = vmatpush.msra.mxu0 %v2387
        %2391 = vmatpush.msra.mxu0 %v2386
        %2392 = vmatpush.msra.mxu0 %v2385
        %2393 = vmatpush.msra.mxu0 %v2384
        %2394 = vmatpush.msra.mxu0 %v2383
        %2395 = vmatpush.msra.mxu0 %v2382
        %2396 = vmatpush.msra.mxu0 %v2381
        %2397 = vmatpush.msra.mxu0 %v2380
        %2398 = vmatpush.msra.mxu0 %v2379
        %2399 = vmatpush.msra.mxu0 %v2378
        %2400 = vmatpush.msra.mxu0 %v2377
        %2401 = vmatpush.msra.mxu0 %v2376
        %2402 = vmatpush.msra.mxu0 %v2375
        %2403 = vmatpush.msra.mxu0 %v2374
        %2404 = vmatpush.msra.mxu0 %v2373
        %2405 = vmatmul.f32.gmra.mxu0 %v2370
        %v2406 = vpop.f32.mrf.mxu0
        %v2407 = vadd.f32 0.0, %v2406
        %2408 = vmatmul.f32.gmra.mxu0 %v2371
        %v2409 = vpop.f32.mrf.mxu0
        %v2410 = vadd.f32 0.0, %v2409
        %2411 = vdwg.mxu0
        %v2412 = vadd.f32 %v2326, %v2407
        %v2413 = vadd.f32 %v2327, %v2410
        %s2414 = scalar_lea.vmem %s3, 1152
        %v2415 = vld [vmem:[%s2414] sm:$0xff]
        %v2416 = vld [vmem:[%s2414 + $0x8] sm:$0xff]
        %v2417 = vld [vmem:[%s2414 + $0x10] sm:$0xff]
        %v2418 = vld [vmem:[%s2414 + $0x18] sm:$0xff]
        %v2419 = vld [vmem:[%s2414 + $0x20] sm:$0xff]
        %v2420 = vld [vmem:[%s2414 + $0x28] sm:$0xff]
        %v2421 = vld [vmem:[%s2414 + $0x30] sm:$0xff]
        %v2422 = vld [vmem:[%s2414 + $0x38] sm:$0xff]
        %v2423 = vld [vmem:[%s2414 + $0x40] sm:$0xff]
        %v2424 = vld [vmem:[%s2414 + $0x48] sm:$0xff]
        %v2425 = vld [vmem:[%s2414 + $0x50] sm:$0xff]
        %v2426 = vld [vmem:[%s2414 + $0x58] sm:$0xff]
        %v2427 = vld [vmem:[%s2414 + $0x60] sm:$0xff]
        %v2428 = vld [vmem:[%s2414 + $0x68] sm:$0xff]
        %v2429 = vld [vmem:[%s2414 + $0x70] sm:$0xff]
        %v2430 = vld [vmem:[%s2414 + $0x78] sm:$0xff]
        %2431 = vmatpush.msra.mxu0 %v2430
        %2432 = vmatpush.msra.mxu0 %v2429
        %2433 = vmatpush.msra.mxu0 %v2428
        %2434 = vmatpush.msra.mxu0 %v2427
        %2435 = vmatpush.msra.mxu0 %v2426
        %2436 = vmatpush.msra.mxu0 %v2425
        %2437 = vmatpush.msra.mxu0 %v2424
        %2438 = vmatpush.msra.mxu0 %v2423
        %2439 = vmatpush.msra.mxu0 %v2422
        %2440 = vmatpush.msra.mxu0 %v2421
        %2441 = vmatpush.msra.mxu0 %v2420
        %2442 = vmatpush.msra.mxu0 %v2419
        %2443 = vmatpush.msra.mxu0 %v2418
        %2444 = vmatpush.msra.mxu0 %v2417
        %2445 = vmatpush.msra.mxu0 %v2416
        %2446 = vmatpush.msra.mxu0 %v2415
        %2447 = vmatmul.f32.gmra.mxu0 %v2370
        %v2448 = vpop.f32.mrf.mxu0
        %v2449 = vadd.f32 0.0, %v2448
        %2450 = vmatmul.f32.gmra.mxu0 %v2371
        %v2451 = vpop.f32.mrf.mxu0
        %v2452 = vadd.f32 0.0, %v2451
        %2453 = vdwg.mxu0
        %v2454 = vadd.f32 %v2368, %v2449
        %v2455 = vadd.f32 %v2369, %v2452
        %2456 = vmatpush.msra.mxu0 %v2088
        %2457 = vmatpush.msra.mxu0 %v2087
        %2458 = vmatpush.msra.mxu0 %v2086
        %2459 = vmatpush.msra.mxu0 %v2085
        %2460 = vmatpush.msra.mxu0 %v2084
        %2461 = vmatpush.msra.mxu0 %v2083
        %2462 = vmatpush.msra.mxu0 %v2082
        %2463 = vmatpush.msra.mxu0 %v2081
        %2464 = vmatpush.msra.mxu0 %v2080
        %2465 = vmatpush.msra.mxu0 %v2079
        %2466 = vmatpush.msra.mxu0 %v2078
        %2467 = vmatpush.msra.mxu0 %v2077
        %2468 = vmatpush.msra.mxu0 %v2076
        %2469 = vmatpush.msra.mxu0 %v2075
        %2470 = vmatpush.msra.mxu0 %v2074
        %2471 = vmatpush.msra.mxu0 %v2073
        %2472 = vmatmul.f32.gmra.mxu0 %v2198
        %v2473 = vpop.f32.mrf.mxu0
        %v2474 = vadd.f32 0.0, %v2473
        %2475 = vmatmul.f32.gmra.mxu0 %v2199
        %v2476 = vpop.f32.mrf.mxu0
        %v2477 = vadd.f32 0.0, %v2476
        %2478 = vdwg.mxu0
        %2479 = vmatpush.msra.mxu0 %v2052
        %2480 = vmatpush.msra.mxu0 %v2051
        %2481 = vmatpush.msra.mxu0 %v2050
        %2482 = vmatpush.msra.mxu0 %v2049
        %2483 = vmatpush.msra.mxu0 %v2048
        %2484 = vmatpush.msra.mxu0 %v2047
        %2485 = vmatpush.msra.mxu0 %v2046
        %2486 = vmatpush.msra.mxu0 %v2045
        %2487 = vmatpush.msra.mxu0 %v2044
        %2488 = vmatpush.msra.mxu0 %v2043
        %2489 = vmatpush.msra.mxu0 %v2042
        %2490 = vmatpush.msra.mxu0 %v2041
        %2491 = vmatpush.msra.mxu0 %v2040
        %2492 = vmatpush.msra.mxu0 %v2039
        %2493 = vmatpush.msra.mxu0 %v2038
        %2494 = vmatpush.msra.mxu0 %v2037
        %2495 = vmatmul.f32.gmra.mxu0 %v2070
        %v2496 = vpop.f32.mrf.mxu0
        %v2497 = vadd.f32 %v2474, %v2496
        %2498 = vmatmul.f32.gmra.mxu0 %v2071
        %v2499 = vpop.f32.mrf.mxu0
        %v2500 = vadd.f32 %v2477, %v2499
        %2501 = vdwg.mxu0
        %2502 = vmatpush.msra.mxu0 %v2151
        %2503 = vmatpush.msra.mxu0 %v2150
        %2504 = vmatpush.msra.mxu0 %v2149
        %2505 = vmatpush.msra.mxu0 %v2148
        %2506 = vmatpush.msra.mxu0 %v2147
        %2507 = vmatpush.msra.mxu0 %v2146
        %2508 = vmatpush.msra.mxu0 %v2145
        %2509 = vmatpush.msra.mxu0 %v2144
        %2510 = vmatpush.msra.mxu0 %v2143
        %2511 = vmatpush.msra.mxu0 %v2142
        %2512 = vmatpush.msra.mxu0 %v2141
        %2513 = vmatpush.msra.mxu0 %v2140
        %2514 = vmatpush.msra.mxu0 %v2139
        %2515 = vmatpush.msra.mxu0 %v2138
        %2516 = vmatpush.msra.mxu0 %v2137
        %2517 = vmatpush.msra.mxu0 %v2136
        %2518 = vmatmul.f32.gmra.mxu0 %v2198
        %v2519 = vpop.f32.mrf.mxu0
        %v2520 = vadd.f32 0.0, %v2519
        %2521 = vmatmul.f32.gmra.mxu0 %v2199
        %v2522 = vpop.f32.mrf.mxu0
        %v2523 = vadd.f32 0.0, %v2522
        %2524 = vdwg.mxu0
        %2525 = vmatpush.msra.mxu0 %v2069
        %2526 = vmatpush.msra.mxu0 %v2068
        %2527 = vmatpush.msra.mxu0 %v2067
        %2528 = vmatpush.msra.mxu0 %v2066
        %2529 = vmatpush.msra.mxu0 %v2065
        %2530 = vmatpush.msra.mxu0 %v2064
        %2531 = vmatpush.msra.mxu0 %v2063
        %2532 = vmatpush.msra.mxu0 %v2062
        %2533 = vmatpush.msra.mxu0 %v2061
        %2534 = vmatpush.msra.mxu0 %v2060
        %2535 = vmatpush.msra.mxu0 %v2059
        %2536 = vmatpush.msra.mxu0 %v2058
        %2537 = vmatpush.msra.mxu0 %v2057
        %2538 = vmatpush.msra.mxu0 %v2056
        %2539 = vmatpush.msra.mxu0 %v2055
        %2540 = vmatpush.msra.mxu0 %v2054
        %2541 = vmatmul.f32.gmra.mxu0 %v2070
        %v2542 = vpop.f32.mrf.mxu0
        %v2543 = vadd.f32 %v2520, %v2542
        %2544 = vmatmul.f32.gmra.mxu0 %v2071
        %v2545 = vpop.f32.mrf.mxu0
        %v2546 = vadd.f32 %v2523, %v2545
        %2547 = vdwg.mxu0
        %2548 = vmatpush.msra.mxu0 %v2216
        %2549 = vmatpush.msra.mxu0 %v2215
        %2550 = vmatpush.msra.mxu0 %v2214
        %2551 = vmatpush.msra.mxu0 %v2213
        %2552 = vmatpush.msra.mxu0 %v2212
        %2553 = vmatpush.msra.mxu0 %v2211
        %2554 = vmatpush.msra.mxu0 %v2210
        %2555 = vmatpush.msra.mxu0 %v2209
        %2556 = vmatpush.msra.mxu0 %v2208
        %2557 = vmatpush.msra.mxu0 %v2207
        %2558 = vmatpush.msra.mxu0 %v2206
        %2559 = vmatpush.msra.mxu0 %v2205
        %2560 = vmatpush.msra.mxu0 %v2204
        %2561 = vmatpush.msra.mxu0 %v2203
        %2562 = vmatpush.msra.mxu0 %v2202
        %2563 = vmatpush.msra.mxu0 %v2201
        %2564 = vmatmul.f32.gmra.mxu0 %v2284
        %v2565 = vpop.f32.mrf.mxu0
        %v2566 = vadd.f32 0.0, %v2565
        %2567 = vmatmul.f32.gmra.mxu0 %v2285
        %v2568 = vpop.f32.mrf.mxu0
        %v2569 = vadd.f32 0.0, %v2568
        %2570 = vdwg.mxu0
        %v2571 = vadd.f32 %v2497, %v2566
        %v2572 = vadd.f32 %v2500, %v2569
        %2573 = vmatpush.msra.mxu0 %v2258
        %2574 = vmatpush.msra.mxu0 %v2257
        %2575 = vmatpush.msra.mxu0 %v2256
        %2576 = vmatpush.msra.mxu0 %v2255
        %2577 = vmatpush.msra.mxu0 %v2254
        %2578 = vmatpush.msra.mxu0 %v2253
        %2579 = vmatpush.msra.mxu0 %v2252
        %2580 = vmatpush.msra.mxu0 %v2251
        %2581 = vmatpush.msra.mxu0 %v2250
        %2582 = vmatpush.msra.mxu0 %v2249
        %2583 = vmatpush.msra.mxu0 %v2248
        %2584 = vmatpush.msra.mxu0 %v2247
        %2585 = vmatpush.msra.mxu0 %v2246
        %2586 = vmatpush.msra.mxu0 %v2245
        %2587 = vmatpush.msra.mxu0 %v2244
        %2588 = vmatpush.msra.mxu0 %v2243
        %2589 = vmatmul.f32.gmra.mxu0 %v2284
        %v2590 = vpop.f32.mrf.mxu0
        %v2591 = vadd.f32 0.0, %v2590
        %2592 = vmatmul.f32.gmra.mxu0 %v2285
        %v2593 = vpop.f32.mrf.mxu0
        %v2594 = vadd.f32 0.0, %v2593
        %2595 = vdwg.mxu0
        %v2596 = vadd.f32 %v2543, %v2591
        %v2597 = vadd.f32 %v2546, %v2594
        %2598 = vmatpush.msra.mxu0 %v2302
        %2599 = vmatpush.msra.mxu0 %v2301
        %2600 = vmatpush.msra.mxu0 %v2300
        %2601 = vmatpush.msra.mxu0 %v2299
        %2602 = vmatpush.msra.mxu0 %v2298
        %2603 = vmatpush.msra.mxu0 %v2297
        %2604 = vmatpush.msra.mxu0 %v2296
        %2605 = vmatpush.msra.mxu0 %v2295
        %2606 = vmatpush.msra.mxu0 %v2294
        %2607 = vmatpush.msra.mxu0 %v2293
        %2608 = vmatpush.msra.mxu0 %v2292
        %2609 = vmatpush.msra.mxu0 %v2291
        %2610 = vmatpush.msra.mxu0 %v2290
        %2611 = vmatpush.msra.mxu0 %v2289
        %2612 = vmatpush.msra.mxu0 %v2288
        %2613 = vmatpush.msra.mxu0 %v2287
        %2614 = vmatmul.f32.gmra.mxu0 %v2370
        %v2615 = vpop.f32.mrf.mxu0
        %v2616 = vadd.f32 0.0, %v2615
        %2617 = vmatmul.f32.gmra.mxu0 %v2371
        %v2618 = vpop.f32.mrf.mxu0
        %v2619 = vadd.f32 0.0, %v2618
        %2620 = vdwg.mxu0
        %v2621 = vadd.f32 %v2571, %v2616
        %v2622 = vadd.f32 %v2572, %v2619
        %2623 = vmatpush.msra.mxu0 %v2344
        %2624 = vmatpush.msra.mxu0 %v2343
        %2625 = vmatpush.msra.mxu0 %v2342
        %2626 = vmatpush.msra.mxu0 %v2341
        %2627 = vmatpush.msra.mxu0 %v2340
        %2628 = vmatpush.msra.mxu0 %v2339
        %2629 = vmatpush.msra.mxu0 %v2338
        %2630 = vmatpush.msra.mxu0 %v2337
        %2631 = vmatpush.msra.mxu0 %v2336
        %2632 = vmatpush.msra.mxu0 %v2335
        %2633 = vmatpush.msra.mxu0 %v2334
        %2634 = vmatpush.msra.mxu0 %v2333
        %2635 = vmatpush.msra.mxu0 %v2332
        %2636 = vmatpush.msra.mxu0 %v2331
        %2637 = vmatpush.msra.mxu0 %v2330
        %2638 = vmatpush.msra.mxu0 %v2329
        %2639 = vmatmul.f32.gmra.mxu0 %v2370
        %v2640 = vpop.f32.mrf.mxu0
        %v2641 = vadd.f32 0.0, %v2640
        %2642 = vmatmul.f32.gmra.mxu0 %v2371
        %v2643 = vpop.f32.mrf.mxu0
        %v2644 = vadd.f32 0.0, %v2643
        %2645 = vdwg.mxu0
        %v2646 = vadd.f32 %v2596, %v2641
        %v2647 = vadd.f32 %v2597, %v2644
        %v2648 = vld [vmem:[%s2031 + $0x2] sm:$0xff]
        %v2649 = vld [vmem:[%s2031 + $0xa] sm:$0xff]
        %2650 = vmatpush.msra.mxu0 %v2388
        %2651 = vmatpush.msra.mxu0 %v2387
        %2652 = vmatpush.msra.mxu0 %v2386
        %2653 = vmatpush.msra.mxu0 %v2385
        %2654 = vmatpush.msra.mxu0 %v2384
        %2655 = vmatpush.msra.mxu0 %v2383
        %2656 = vmatpush.msra.mxu0 %v2382
        %2657 = vmatpush.msra.mxu0 %v2381
        %2658 = vmatpush.msra.mxu0 %v2380
        %2659 = vmatpush.msra.mxu0 %v2379
        %2660 = vmatpush.msra.mxu0 %v2378
        %2661 = vmatpush.msra.mxu0 %v2377
        %2662 = vmatpush.msra.mxu0 %v2376
        %2663 = vmatpush.msra.mxu0 %v2375
        %2664 = vmatpush.msra.mxu0 %v2374
        %2665 = vmatpush.msra.mxu0 %v2373
        %2666 = vmatmul.f32.gmra.mxu0 %v2648
        %v2667 = vpop.f32.mrf.mxu0
        %v2668 = vadd.f32 0.0, %v2667
        %2669 = vmatmul.f32.gmra.mxu0 %v2649
        %v2670 = vpop.f32.mrf.mxu0
        %v2671 = vadd.f32 0.0, %v2670
        %2672 = vdwg.mxu0
        %v2673 = vadd.f32 %v2621, %v2668
        %v2674 = vadd.f32 %v2622, %v2671
        %2675 = vmatpush.msra.mxu0 %v2430
        %2676 = vmatpush.msra.mxu0 %v2429
        %2677 = vmatpush.msra.mxu0 %v2428
        %2678 = vmatpush.msra.mxu0 %v2427
        %2679 = vmatpush.msra.mxu0 %v2426
        %2680 = vmatpush.msra.mxu0 %v2425
        %2681 = vmatpush.msra.mxu0 %v2424
        %2682 = vmatpush.msra.mxu0 %v2423
        %2683 = vmatpush.msra.mxu0 %v2422
        %2684 = vmatpush.msra.mxu0 %v2421
        %2685 = vmatpush.msra.mxu0 %v2420
        %2686 = vmatpush.msra.mxu0 %v2419
        %2687 = vmatpush.msra.mxu0 %v2418
        %2688 = vmatpush.msra.mxu0 %v2417
        %2689 = vmatpush.msra.mxu0 %v2416
        %2690 = vmatpush.msra.mxu0 %v2415
        %2691 = vmatmul.f32.gmra.mxu0 %v2648
        %v2692 = vpop.f32.mrf.mxu0
        %v2693 = vadd.f32 0.0, %v2692
        %2694 = vmatmul.f32.gmra.mxu0 %v2649
        %v2695 = vpop.f32.mrf.mxu0
        %v2696 = vadd.f32 0.0, %v2695
        %2697 = vdwg.mxu0
        %v2698 = vadd.f32 %v2646, %v2693
        %v2699 = vadd.f32 %v2647, %v2696
        %v2700 = vmax.f32 %v2412, %v2454
        %v2701 = vmax.f32 %v2413, %v2455
        %v2702 = vmax.f32 %v2673, %v2698
        %v2703 = vmax.f32 %v2674, %v2699
        %v2704 = vmax.f32 %v2700, %v2702
        %v2705 = vmax.f32 %v2701, %v2703
        %v2706 = vld [vmem:[%s4] sm:$0x1]
        %v2708 = vperm.slane %v2706, 0
        %v2710 = vadd.f32 %v2704, %v2708
        %v2711 = vadd.f32 %v2705, %v2708
        %v2712 = vmax.f32 %v2710, 0.0
        %v2713 = vmax.f32 %v2711, 0.0
        %2714 = vst [vmem:[#allocation3] sm:$0xff] %v2712
        %2715 = vst [vmem:[#allocation3 + $0x8] sm:$0xff] %v2713
        %v2716 = vld [vmem:[#allocation3] sm:$0xff]
        %v2717 = vld [vmem:[%s5] sm:$0xff]
        %v2718 = vld [vmem:[%s5 + $0x8] sm:$0xff]
        %v2719 = vld [vmem:[%s5 + $0x10] sm:$0xff]
        %v2720 = vld [vmem:[%s5 + $0x18] sm:$0xff]
        %v2721 = vld [vmem:[%s5 + $0x20] sm:$0xff]
        %v2722 = vld [vmem:[%s5 + $0x28] sm:$0xff]
        %v2723 = vld [vmem:[%s5 + $0x30] sm:$0xff]
        %v2724 = vld [vmem:[%s5 + $0x38] sm:$0xff]
        %v2725 = vld [vmem:[%s5 + $0x40] sm:$0xff]
        %v2726 = vld [vmem:[%s5 + $0x48] sm:$0xff]
        %v2727 = vld [vmem:[%s5 + $0x50] sm:$0xff]
        %v2728 = vld [vmem:[%s5 + $0x58] sm:$0xff]
        %v2729 = vld [vmem:[%s5 + $0x60] sm:$0xff]
        %v2730 = vld [vmem:[%s5 + $0x68] sm:$0xff]
        %v2731 = vld [vmem:[%s5 + $0x70] sm:$0xff]
        %v2732 = vld [vmem:[%s5 + $0x78] sm:$0xff]
        %v2733 = vld [vmem:[#allocation3 + $0x1] sm:$0xff]
        %s2734 = scalar_lea.vmem %s5, 128
        %v2735 = vld [vmem:[%s2734] sm:$0xff]
        %v2736 = vld [vmem:[%s2734 + $0x8] sm:$0xff]
        %v2737 = vld [vmem:[%s2734 + $0x10] sm:$0xff]
        %v2738 = vld [vmem:[%s2734 + $0x18] sm:$0xff]
        %v2739 = vld [vmem:[%s2734 + $0x20] sm:$0xff]
        %v2740 = vld [vmem:[%s2734 + $0x28] sm:$0xff]
        %v2741 = vld [vmem:[%s2734 + $0x30] sm:$0xff]
        %v2742 = vld [vmem:[%s2734 + $0x38] sm:$0xff]
        %v2743 = vld [vmem:[%s2734 + $0x40] sm:$0xff]
        %v2744 = vld [vmem:[%s2734 + $0x48] sm:$0xff]
        %v2745 = vld [vmem:[%s2734 + $0x50] sm:$0xff]
        %v2746 = vld [vmem:[%s2734 + $0x58] sm:$0xff]
        %v2747 = vld [vmem:[%s2734 + $0x60] sm:$0xff]
        %v2748 = vld [vmem:[%s2734 + $0x68] sm:$0xff]
        %v2749 = vld [vmem:[%s2734 + $0x70] sm:$0xff]
        %v2750 = vld [vmem:[%s2734 + $0x78] sm:$0xff]
        %2751 = vmatpush.msra.mxu0 %v2750
        %2752 = vmatpush.msra.mxu0 %v2749
        %2753 = vmatpush.msra.mxu0 %v2748
        %2754 = vmatpush.msra.mxu0 %v2747
        %2755 = vmatpush.msra.mxu0 %v2746
        %2756 = vmatpush.msra.mxu0 %v2745
        %2757 = vmatpush.msra.mxu0 %v2744
        %2758 = vmatpush.msra.mxu0 %v2743
        %2759 = vmatpush.msra.mxu0 %v2742
        %2760 = vmatpush.msra.mxu0 %v2741
        %2761 = vmatpush.msra.mxu0 %v2740
        %2762 = vmatpush.msra.mxu0 %v2739
        %2763 = vmatpush.msra.mxu0 %v2738
        %2764 = vmatpush.msra.mxu0 %v2737
        %2765 = vmatpush.msra.mxu0 %v2736
        %2766 = vmatpush.msra.mxu0 %v2735
        %2767 = vmatmul.f32.gmra.mxu0 %v2733
        %v2768 = vpop.f32.mrf.mxu0
        %v2769 = vadd.f32 0.0, %v2768
        %2770 = vdwg.mxu0
        %2771 = vmatpush.msra.mxu0 %v2732
        %2772 = vmatpush.msra.mxu0 %v2731
        %2773 = vmatpush.msra.mxu0 %v2730
        %2774 = vmatpush.msra.mxu0 %v2729
        %2775 = vmatpush.msra.mxu0 %v2728
        %2776 = vmatpush.msra.mxu0 %v2727
        %2777 = vmatpush.msra.mxu0 %v2726
        %2778 = vmatpush.msra.mxu0 %v2725
        %2779 = vmatpush.msra.mxu0 %v2724
        %2780 = vmatpush.msra.mxu0 %v2723
        %2781 = vmatpush.msra.mxu0 %v2722
        %2782 = vmatpush.msra.mxu0 %v2721
        %2783 = vmatpush.msra.mxu0 %v2720
        %2784 = vmatpush.msra.mxu0 %v2719
        %2785 = vmatpush.msra.mxu0 %v2718
        %2786 = vmatpush.msra.mxu0 %v2717
        %2787 = vmatmul.f32.gmra.mxu0 %v2716
        %v2788 = vpop.f32.mrf.mxu0
        %v2789 = vadd.f32 %v2769, %v2788
        %2790 = vdwg.mxu0
        %v2791 = vld [vmem:[#allocation3 + $0x2] sm:$0xff]
        %s2792 = scalar_lea.vmem %s5, 256
        %v2793 = vld [vmem:[%s2792] sm:$0xff]
        %v2794 = vld [vmem:[%s2792 + $0x8] sm:$0xff]
        %v2795 = vld [vmem:[%s2792 + $0x10] sm:$0xff]
        %v2796 = vld [vmem:[%s2792 + $0x18] sm:$0xff]
        %v2797 = vld [vmem:[%s2792 + $0x20] sm:$0xff]
        %v2798 = vld [vmem:[%s2792 + $0x28] sm:$0xff]
        %v2799 = vld [vmem:[%s2792 + $0x30] sm:$0xff]
        %v2800 = vld [vmem:[%s2792 + $0x38] sm:$0xff]
        %v2801 = vld [vmem:[%s2792 + $0x40] sm:$0xff]
        %v2802 = vld [vmem:[%s2792 + $0x48] sm:$0xff]
        %v2803 = vld [vmem:[%s2792 + $0x50] sm:$0xff]
        %v2804 = vld [vmem:[%s2792 + $0x58] sm:$0xff]
        %v2805 = vld [vmem:[%s2792 + $0x60] sm:$0xff]
        %v2806 = vld [vmem:[%s2792 + $0x68] sm:$0xff]
        %v2807 = vld [vmem:[%s2792 + $0x70] sm:$0xff]
        %v2808 = vld [vmem:[%s2792 + $0x78] sm:$0xff]
        %2809 = vmatpush.msra.mxu0 %v2808
        %2810 = vmatpush.msra.mxu0 %v2807
        %2811 = vmatpush.msra.mxu0 %v2806
        %2812 = vmatpush.msra.mxu0 %v2805
        %2813 = vmatpush.msra.mxu0 %v2804
        %2814 = vmatpush.msra.mxu0 %v2803
        %2815 = vmatpush.msra.mxu0 %v2802
        %2816 = vmatpush.msra.mxu0 %v2801
        %2817 = vmatpush.msra.mxu0 %v2800
        %2818 = vmatpush.msra.mxu0 %v2799
        %2819 = vmatpush.msra.mxu0 %v2798
        %2820 = vmatpush.msra.mxu0 %v2797
        %2821 = vmatpush.msra.mxu0 %v2796
        %2822 = vmatpush.msra.mxu0 %v2795
        %2823 = vmatpush.msra.mxu0 %v2794
        %2824 = vmatpush.msra.mxu0 %v2793
        %2825 = vmatmul.f32.gmra.mxu0 %v2791
        %v2826 = vpop.f32.mrf.mxu0
        %v2827 = vadd.f32 0.0, %v2826
        %2828 = vdwg.mxu0
        %v2829 = vadd.f32 %v2789, %v2827
        %v2830 = vld [vmem:[#allocation3 + $0x3] sm:$0xff]
        %s2831 = scalar_lea.vmem %s5, 384
        %v2832 = vld [vmem:[%s2831] sm:$0xff]
        %v2833 = vld [vmem:[%s2831 + $0x8] sm:$0xff]
        %v2834 = vld [vmem:[%s2831 + $0x10] sm:$0xff]
        %v2835 = vld [vmem:[%s2831 + $0x18] sm:$0xff]
        %v2836 = vld [vmem:[%s2831 + $0x20] sm:$0xff]
        %v2837 = vld [vmem:[%s2831 + $0x28] sm:$0xff]
        %v2838 = vld [vmem:[%s2831 + $0x30] sm:$0xff]
        %v2839 = vld [vmem:[%s2831 + $0x38] sm:$0xff]
        %v2840 = vld [vmem:[%s2831 + $0x40] sm:$0xff]
        %v2841 = vld [vmem:[%s2831 + $0x48] sm:$0xff]
        %v2842 = vld [vmem:[%s2831 + $0x50] sm:$0xff]
        %v2843 = vld [vmem:[%s2831 + $0x58] sm:$0xff]
        %v2844 = vld [vmem:[%s2831 + $0x60] sm:$0xff]
        %v2845 = vld [vmem:[%s2831 + $0x68] sm:$0xff]
        %v2846 = vld [vmem:[%s2831 + $0x70] sm:$0xff]
        %v2847 = vld [vmem:[%s2831 + $0x78] sm:$0xff]
        %2848 = vmatpush.msra.mxu0 %v2847
        %2849 = vmatpush.msra.mxu0 %v2846
        %2850 = vmatpush.msra.mxu0 %v2845
        %2851 = vmatpush.msra.mxu0 %v2844
        %2852 = vmatpush.msra.mxu0 %v2843
        %2853 = vmatpush.msra.mxu0 %v2842
        %2854 = vmatpush.msra.mxu0 %v2841
        %2855 = vmatpush.msra.mxu0 %v2840
        %2856 = vmatpush.msra.mxu0 %v2839
        %2857 = vmatpush.msra.mxu0 %v2838
        %2858 = vmatpush.msra.mxu0 %v2837
        %2859 = vmatpush.msra.mxu0 %v2836
        %2860 = vmatpush.msra.mxu0 %v2835
        %2861 = vmatpush.msra.mxu0 %v2834
        %2862 = vmatpush.msra.mxu0 %v2833
        %2863 = vmatpush.msra.mxu0 %v2832
        %2864 = vmatmul.f32.gmra.mxu0 %v2830
        %v2865 = vpop.f32.mrf.mxu0
        %v2866 = vadd.f32 0.0, %v2865
        %2867 = vdwg.mxu0
        %v2868 = vadd.f32 %v2829, %v2866
        %v2869 = vld [vmem:[#allocation3 + $0x4] sm:$0xff]
        %s2870 = scalar_lea.vmem %s5, 512
        %v2871 = vld [vmem:[%s2870] sm:$0xff]
        %v2872 = vld [vmem:[%s2870 + $0x8] sm:$0xff]
        %v2873 = vld [vmem:[%s2870 + $0x10] sm:$0xff]
        %v2874 = vld [vmem:[%s2870 + $0x18] sm:$0xff]
        %v2875 = vld [vmem:[%s2870 + $0x20] sm:$0xff]
        %v2876 = vld [vmem:[%s2870 + $0x28] sm:$0xff]
        %v2877 = vld [vmem:[%s2870 + $0x30] sm:$0xff]
        %v2878 = vld [vmem:[%s2870 + $0x38] sm:$0xff]
        %v2879 = vld [vmem:[%s2870 + $0x40] sm:$0xff]
        %v2880 = vld [vmem:[%s2870 + $0x48] sm:$0xff]
        %v2881 = vld [vmem:[%s2870 + $0x50] sm:$0xff]
        %v2882 = vld [vmem:[%s2870 + $0x58] sm:$0xff]
        %v2883 = vld [vmem:[%s2870 + $0x60] sm:$0xff]
        %v2884 = vld [vmem:[%s2870 + $0x68] sm:$0xff]
        %v2885 = vld [vmem:[%s2870 + $0x70] sm:$0xff]
        %v2886 = vld [vmem:[%s2870 + $0x78] sm:$0xff]
        %2887 = vmatpush.msra.mxu0 %v2886
        %2888 = vmatpush.msra.mxu0 %v2885
        %2889 = vmatpush.msra.mxu0 %v2884
        %2890 = vmatpush.msra.mxu0 %v2883
        %2891 = vmatpush.msra.mxu0 %v2882
        %2892 = vmatpush.msra.mxu0 %v2881
        %2893 = vmatpush.msra.mxu0 %v2880
        %2894 = vmatpush.msra.mxu0 %v2879
        %2895 = vmatpush.msra.mxu0 %v2878
        %2896 = vmatpush.msra.mxu0 %v2877
        %2897 = vmatpush.msra.mxu0 %v2876
        %2898 = vmatpush.msra.mxu0 %v2875
        %2899 = vmatpush.msra.mxu0 %v2874
        %2900 = vmatpush.msra.mxu0 %v2873
        %2901 = vmatpush.msra.mxu0 %v2872
        %2902 = vmatpush.msra.mxu0 %v2871
        %2903 = vmatmul.f32.gmra.mxu0 %v2869
        %v2904 = vpop.f32.mrf.mxu0
        %v2905 = vadd.f32 0.0, %v2904
        %2906 = vdwg.mxu0
        %v2907 = vadd.f32 %v2868, %v2905
        %v2908 = vld [vmem:[%s6] sm:$0x1]
        %v2910 = vperm.slane %v2908, 0
        %v2912 = vadd.f32 %v2907, %v2910
        %v2913 = vmax.f32 %v2912, 0.0
        %v2914 = vld [vmem:[%s7] sm:$0xff]
        %v2915 = vld [vmem:[%s7 + $0x8] sm:$0xff]
        %v2916 = vld [vmem:[%s7 + $0x10] sm:$0xff]
        %v2917 = vld [vmem:[%s7 + $0x18] sm:$0xff]
        %v2918 = vld [vmem:[%s7 + $0x20] sm:$0xff]
        %v2919 = vld [vmem:[%s7 + $0x28] sm:$0xff]
        %v2920 = vld [vmem:[%s7 + $0x30] sm:$0xff]
        %v2921 = vld [vmem:[%s7 + $0x38] sm:$0xff]
        %v2922 = vld [vmem:[%s7 + $0x40] sm:$0xff]
        %v2923 = vld [vmem:[%s7 + $0x48] sm:$0xff]
        %v2924 = vld [vmem:[%s7 + $0x50] sm:$0xff]
        %v2925 = vld [vmem:[%s7 + $0x58] sm:$0xff]
        %v2926 = vld [vmem:[%s7 + $0x60] sm:$0xff]
        %v2927 = vld [vmem:[%s7 + $0x68] sm:$0xff]
        %v2928 = vld [vmem:[%s7 + $0x70] sm:$0xff]
        %v2929 = vld [vmem:[%s7 + $0x78] sm:$0xff]
        %v2930 = vld [vmem:[%s8] sm:$0x1]
        %v2932 = vperm.slane %v2930, 0
        %2934 = vmatpush.msra.mxu0 %v2929
        %2935 = vmatpush.msra.mxu0 %v2928
        %2936 = vmatpush.msra.mxu0 %v2927
        %2937 = vmatpush.msra.mxu0 %v2926
        %2938 = vmatpush.msra.mxu0 %v2925
        %2939 = vmatpush.msra.mxu0 %v2924
        %2940 = vmatpush.msra.mxu0 %v2923
        %2941 = vmatpush.msra.mxu0 %v2922
        %2942 = vmatpush.msra.mxu0 %v2921
        %2943 = vmatpush.msra.mxu0 %v2920
        %2944 = vmatpush.msra.mxu0 %v2919
        %2945 = vmatpush.msra.mxu0 %v2918
        %2946 = vmatpush.msra.mxu0 %v2917
        %2947 = vmatpush.msra.mxu0 %v2916
        %2948 = vmatpush.msra.mxu0 %v2915
        %2949 = vmatpush.msra.mxu0 %v2914
        %2950 = vmatmul.f32.gmra.mxu0 %v2913
        %v2951 = vpop.f32.mrf.mxu0
        %v2952 = vadd.f32 %v2932, %v2951
        %2953 = vdwg.mxu0
        %v2954 = vmax.f32 %v2952, 0.0
        %v2955 = vld [vmem:[%s9] sm:$0xff]
        %v2956 = vld [vmem:[%s9 + $0x8] sm:$0xff]
        %v2957 = vld [vmem:[%s9 + $0x10] sm:$0xff]
        %v2958 = vld [vmem:[%s9 + $0x18] sm:$0xff]
        %v2959 = vld [vmem:[%s9 + $0x20] sm:$0xff]
        %v2960 = vld [vmem:[%s9 + $0x28] sm:$0xff]
        %v2961 = vld [vmem:[%s9 + $0x30] sm:$0xff]
        %v2962 = vld [vmem:[%s9 + $0x38] sm:$0xff]
        %v2963 = vld [vmem:[%s9 + $0x40] sm:$0xff]
        %v2964 = vld [vmem:[%s9 + $0x48] sm:$0xff]
        %v2965 = vld [vmem:[%s9 + $0x50] sm:$0xff]
        %v2966 = vld [vmem:[%s9 + $0x58] sm:$0xff]
        %v2967 = vld [vmem:[%s9 + $0x60] sm:$0xff]
        %v2968 = vld [vmem:[%s9 + $0x68] sm:$0xff]
        %v2969 = vld [vmem:[%s9 + $0x70] sm:$0xff]
        %v2970 = vld [vmem:[%s9 + $0x78] sm:$0xff]
        %v2971 = vld [vmem:[%s10] sm:$0x1]
        %v2973 = vperm.slane %v2971, 0
        %2975 = vmatpush.msra.mxu0 %v2970
        %2976 = vmatpush.msra.mxu0 %v2969
        %2977 = vmatpush.msra.mxu0 %v2968
        %2978 = vmatpush.msra.mxu0 %v2967
        %2979 = vmatpush.msra.mxu0 %v2966
        %2980 = vmatpush.msra.mxu0 %v2965
        %2981 = vmatpush.msra.mxu0 %v2964
        %2982 = vmatpush.msra.mxu0 %v2963
        %2983 = vmatpush.msra.mxu0 %v2962
        %2984 = vmatpush.msra.mxu0 %v2961
        %2985 = vmatpush.msra.mxu0 %v2960
        %2986 = vmatpush.msra.mxu0 %v2959
        %2987 = vmatpush.msra.mxu0 %v2958
        %2988 = vmatpush.msra.mxu0 %v2957
        %2989 = vmatpush.msra.mxu0 %v2956
        %2990 = vmatpush.msra.mxu0 %v2955
        %2991 = vmatmul.f32.gmra.mxu0 %v2954
        %v2992 = vpop.f32.mrf.mxu0
        %v2993 = vadd.f32 %v2973, %v2992
        %2994 = vdwg.mxu0
        %2995 = vst [vmem:[%s480] sm:$0xff] %v2993
        %p2996 = scmp.lt.s32.totalorder %s22, 1
        %s2997 = scalar_select %p2996, %s22, 1
        %s2998 = smul.addr %s2997, 8
        %s2999 = scalar_lea.vmem %s11, %s2998
        // Predicated region
        $region103: #{net_forward.1} parent=97 // pred_check
          %p3000 = pneg %p276
        $region104: #{net_forward.1} parent=97 // pred_check_branch
          %3002 = sbr.rel (%p3000) target = $region106
        $region105: #{net_forward.1} parent=97 // pred_region
          _
        $region106: #{net_forward.1} parent=97 // pred_fallthru
          _
      $region98: #{net_forward.1} parent=5 // pred_fallthru
        _
      %p3003 = scmp.le.s32.totalorder 2, %s17
      // Predicated region
      $region107: #{net_forward.1} parent=5 // pred_check
        %p3004 = pneg %p3003
      $region108: #{net_forward.1} parent=5 // pred_check_branch
        %3006 = sbr.rel (%p3004) target = $region110
      $region109: #{net_forward.1} parent=5 // pred_region
        %s3007 = ssub.s32 %s17, 2
        // Predicated region
        $region111: #{net_forward.1} parent=109 // pred_check
          %p3008 = pneg %p282
        $region112: #{net_forward.1} parent=109 // pred_check_branch
          %3010 = sbr.rel (%p3008) target = $region114
        $region113: #{net_forward.1} parent=109 // pred_region
          %p3011 = scmp.lt.s32.totalorder %s23, 1
          %s3012 = scalar_select %p3011, %s23, 1
          %s3013 = smul.addr %s3012, 8
          %s3014 = scalar_lea.vmem %s11, %s3013
        $region114: #{net_forward.1} parent=109 // pred_fallthru
          _
      $region110: #{net_forward.1} parent=5 // pred_fallthru
        _
    $region6: #{net_forward.1} parent=1 // loop_footer
      %s21 = sadd.s32 1, %s17
    $region7: #{net_forward.1} parent=1 // loop_footer_branch
      %16 = sbr.rel target = $region3
    $region8: #{net_forward.1} parent=1 // loop_exit
      _

</llo_original>
